<compile_context>
chip_gen: v7x
topology: tpu7x:2x2x1
jax: 0.10.0
libtpu: 0.0.40
codegen_flags: <defaults>
</compile_context>

<pallas_src>
import functools

import jax
import jax.numpy as jnp
from jax import lax
from jax.experimental import pallas as pl
from jax.experimental.pallas import tpu as pltpu

LN_EPS = 1e-5
LANE = 128


def _round_up(x, m):
    return (x + m - 1) // m * m


def _const_spec(shape):
    """Whole-array block whose index is constant over the grid (fetched once, stays resident)."""
    zeros = (0,) * len(shape)
    return pl.BlockSpec(shape, lambda b, ti: zeros)


# ----------------------------------------------------------------------------
# Fused kernel: [conv(k) + ReLU + LayerNorm] x n_layers  +  Linear, one T-tile per step.
# ----------------------------------------------------------------------------
def _make_fused_kernel(*, n_layers, kernel_size, margin, tile_t, seq_len, compute_dtype):
    K = kernel_size
    P = K // 2

    def kernel(x_ref, *refs):
        conv_refs = refs[: 4 * n_layers]
        lin_w_ref = refs[4 * n_layers]
        lin_b_ref = refs[4 * n_layers + 1]
        o_ref = refs[4 * n_layers + 2]

        ti = pl.program_id(1)
        t0 = pl.multiple_of(ti * tile_t, 8)

        # Halo'd window for this tile: true-sequence rows
        # [ti*tile_t - margin, ti*tile_t + tile_t + margin); x_ref is pre-padded by `margin`
        # zero rows on the left so the slice start is simply ti*tile_t.
        win = tile_t + 2 * margin
        h = x_ref[0, pl.ds(t0, win), :].astype(compute_dtype)

        m = margin
        for l in range(n_layers):
            w_ref, b_ref, g_ref, beta_ref = conv_refs[4 * l: 4 * l + 4]
            m_out = m - P
            rows = tile_t + 2 * m_out

            # im2col: one [rows, K*Cin] x [K*Cin, Cout] MXU matmul per layer.
            cols = jnp.concatenate([h[k:k + rows, :] for k in range(K)], axis=-1)
            acc = jnp.dot(cols, w_ref[...], preferred_element_type=jnp.float32)

            # Bias + ReLU + LayerNorm over channels, all in f32.
            y = jnp.maximum(acc + b_ref[...], 0.0)
            mean = jnp.mean(y, axis=-1, keepdims=True)
            var = jnp.mean(jnp.square(y - mean), axis=-1, keepdims=True)
            hn = (y - mean) * lax.rsqrt(var + LN_EPS) * g_ref[...] + beta_ref[...]

            if l < n_layers - 1:
                # Re-zero rows outside the true sequence so the next conv sees the same
                # zero padding the PyTorch module applies at every layer.
                r = lax.broadcasted_iota(jnp.int32, (rows, 1), 0)
                gpos = ti * tile_t - m_out + r
                hn = jnp.where((gpos >= 0) & (gpos < seq_len), hn, 0.0)

            h = hn.astype(compute_dtype)
            m = m_out

        # Final Linear on the central tile_t rows; lane-dense (128-wide padded) store.
        center = h[m:m + tile_t, :]
        out = jnp.dot(center, lin_w_ref[...], preferred_element_type=jnp.float32)
        o_ref[0] = (out + lin_b_ref[...]).astype(o_ref.dtype)

    return kernel


# ----------------------------------------------------------------------------
# Wrapper: one pallas_call for the whole PitchPredictor forward pass.
# ----------------------------------------------------------------------------
def pitch_predictor_forward(x, params, *, tile_t=None, compute_dtype=jnp.float32):
    """x: [B, T, idim] -> [B, T, odim]. Mirrors PitchPredictor.forward (eval mode)."""
    B, T, idim = x.shape
    convs = params["convs"]
    n_layers = len(convs)
    K, _, n_chans = convs[0][0].shape
    P = K // 2
    odim = params["lin_b"].shape[0]

    halo = n_layers * P                       # total receptive-field halo of the conv stack
    margin = _round_up(halo, 4)               # 2*margin is sublane (8) aligned

    if tile_t is None:
        tile_t = min(256, _round_up(T, 8))
    tile_t = _round_up(tile_t, 8)
    t_ceil = _round_up(T, tile_t)
    n_t = t_ceil // tile_t
    t_padded = t_ceil + 2 * margin
    odim_pad = _round_up(odim, LANE)

    # Single zero-pad of the network INPUT only (inter-layer activations never leave VMEM).
    x_pad = jnp.pad(x, ((0, 0), (margin, t_padded - margin - T), (0, 0))).astype(compute_dtype)

    operands = [x_pad]
    in_specs = [pl.BlockSpec((1, t_padded, idim), lambda b, ti: (b, 0, 0))]
    for (w_kio, bias, gamma, beta) in convs:
        k, cin, cout = w_kio.shape
        w_flat = w_kio.reshape(k * cin, cout).astype(compute_dtype)   # im2col weight layout
        for arr in (w_flat,
                    bias.reshape(1, -1).astype(jnp.float32),
                    gamma.reshape(1, -1).astype(jnp.float32),
                    beta.reshape(1, -1).astype(jnp.float32)):
            operands.append(arr)
            in_specs.append(_const_spec(arr.shape))

    lin_w_pad = jnp.pad(params["lin_w_io"].astype(compute_dtype),
                        ((0, 0), (0, odim_pad - odim)))               # [n_chans, 128]
    lin_b_pad = jnp.pad(params["lin_b"].astype(jnp.float32),
                        (0, odim_pad - odim)).reshape(1, -1)          # [1, 128]
    operands += [lin_w_pad, lin_b_pad]
    in_specs += [_const_spec(lin_w_pad.shape), _const_spec(lin_b_pad.shape)]

    kernel = _make_fused_kernel(
        n_layers=n_layers, kernel_size=K, margin=margin, tile_t=tile_t,
        seq_len=T, compute_dtype=compute_dtype)

    flops = 2 * B * t_ceil * (K * idim * n_chans
                              + (n_layers - 1) * K * n_chans * n_chans
                              + n_chans * odim_pad)
    bytes_accessed = (x_pad.size * x_pad.dtype.itemsize
                      + sum(o.size * o.dtype.itemsize for o in operands[1:])
                      + B * t_ceil * odim_pad * 4)

    out = pl.pallas_call(
        kernel,
        grid=(B, n_t),
        out_shape=jax.ShapeDtypeStruct((B, t_ceil, odim_pad), jnp.float32),
        in_specs=in_specs,
        out_specs=pl.BlockSpec((1, tile_t, odim_pad), lambda b, ti: (b, ti, 0)),
        compiler_params=pltpu.CompilerParams(
            dimension_semantics=("parallel", "parallel"),
            vmem_limit_bytes=32 * 1024 * 1024),
        cost_estimate=pl.CostEstimate(
            flops=int(flops),
            transcendentals=int(B * t_ceil * n_layers),
            bytes_accessed=int(bytes_accessed)),
    )(*operands)

    return out[:, :T, :odim]


# ----------------------------------------------------------------------------
# Deterministic parameter construction (synthetic, matches torch shapes)
# ----------------------------------------------------------------------------
def init_params(key, idim, n_layers, n_chans, odim, kernel_size):
    params = {"convs": []}
    for idx in range(n_layers):
        in_chans = idim if idx == 0 else n_chans
        key, k1, k2 = jax.random.split(key, 3)
        # torch Conv1d weight is [Cout, Cin, K]; we store transposed to [K, Cin, Cout]
        w_oik = jax.random.normal(k1, (n_chans, in_chans, kernel_size), jnp.float32)
        w_oik = w_oik * (1.0 / jnp.sqrt(in_chans * kernel_size))
        w_kio = jnp.transpose(w_oik, (2, 1, 0))
        b = jax.random.normal(k2, (n_chans,), jnp.float32) * 0.01
        gamma = jnp.ones((n_chans,), jnp.float32)
        beta = jnp.zeros((n_chans,), jnp.float32)
        params["convs"].append((w_kio, b, gamma, beta))
    key, k1, k2 = jax.random.split(key, 3)
    lin_w = jax.random.normal(k1, (odim, n_chans), jnp.float32) / jnp.sqrt(n_chans)
    params["lin_w_io"] = lin_w.T                      # [n_chans, odim]
    params["lin_b"] = jax.random.normal(k2, (odim,), jnp.float32) * 0.01
    return params


# ----------------------------------------------------------------------------
# Pure-JAX reference (independent: uses lax.conv_general_dilated)
# ----------------------------------------------------------------------------
def reference_forward(x, params, kernel_size):
    h = x
    P = kernel_size // 2
    for (w_kio, b, g, be) in params["convs"]:
        y = lax.conv_general_dilated(
            h, w_kio, window_strides=(1,), padding=[(P, P)],
            dimension_numbers=("NWC", "WIO", "NWC"))
        y = y + b[None, None, :]
        y = jnp.maximum(y, 0.0)
        mean = jnp.mean(y, axis=-1, keepdims=True)
        var = jnp.mean(jnp.square(y - mean), axis=-1, keepdims=True)
        h = (y - mean) * lax.rsqrt(var + LN_EPS) * g + be
    return h @ params["lin_w_io"] + params["lin_b"]


if __name__ == "__main__":
    # Small shapes consistent with the module: x is [B, T, idim].
    # T=40 with tile_t=16 -> 3 time tiles, exercising the halo + boundary-masking paths.
    B, T, idim = 2, 40, 32
    n_layers, n_chans, odim, kernel_size = 5, 64, 2, 5
    tile_t = 16

    key = jax.random.PRNGKey(0)
    key, kx = jax.random.split(key)
    x = jax.random.normal(kx, (B, T, idim), jnp.float32)
    params = init_params(key, idim, n_layers, n_chans, odim, kernel_size)

    ref = reference_forward(x, params, kernel_size)

    # f32 path: strict check against the pure-JAX reference.
    fwd_f32 = jax.jit(functools.partial(
        pitch_predictor_forward, params=params, tile_t=tile_t, compute_dtype=jnp.float32))
    out_f32 = jax.block_until_ready(fwd_f32(x))
    assert out_f32.shape == (B, T, odim), out_f32.shape
    assert jnp.all(jnp.isfinite(out_f32))
    assert jnp.allclose(out_f32, ref, atol=2e-4, rtol=2e-4), \
        float(jnp.max(jnp.abs(out_f32 - ref)))

    # bf16 MXU path (f32 epilogue): looser tolerance sanity check.
    fwd_bf16 = jax.jit(functools.partial(
        pitch_predictor_forward, params=params, tile_t=tile_t, compute_dtype=jnp.bfloat16))
    out_bf16 = jax.block_until_ready(fwd_bf16(x))
    assert out_bf16.shape == (B, T, odim), out_bf16.shape
    assert jnp.all(jnp.isfinite(out_bf16))
    assert jnp.allclose(out_bf16, ref, atol=0.15, rtol=0.1), \
        float(jnp.max(jnp.abs(out_bf16 - ref)))

    print("KERNEL_OK")
</pallas_src>

<mosaic_0001>
module attributes {stable_mosaic.version = 11 : i64} {
  func.func @kernel(%arg0: i32, %arg1: i32, %arg2: memref<1x72x32xf32, #tpu.memory_space<vmem>>, %arg3: memref<160x64xf32, #tpu.memory_space<vmem>>, %arg4: memref<1x64xf32, #tpu.memory_space<vmem>>, %arg5: memref<1x64xf32, #tpu.memory_space<vmem>>, %arg6: memref<1x64xf32, #tpu.memory_space<vmem>>, %arg7: memref<320x64xf32, #tpu.memory_space<vmem>>, %arg8: memref<1x64xf32, #tpu.memory_space<vmem>>, %arg9: memref<1x64xf32, #tpu.memory_space<vmem>>, %arg10: memref<1x64xf32, #tpu.memory_space<vmem>>, %arg11: memref<320x64xf32, #tpu.memory_space<vmem>>, %arg12: memref<1x64xf32, #tpu.memory_space<vmem>>, %arg13: memref<1x64xf32, #tpu.memory_space<vmem>>, %arg14: memref<1x64xf32, #tpu.memory_space<vmem>>, %arg15: memref<320x64xf32, #tpu.memory_space<vmem>>, %arg16: memref<1x64xf32, #tpu.memory_space<vmem>>, %arg17: memref<1x64xf32, #tpu.memory_space<vmem>>, %arg18: memref<1x64xf32, #tpu.memory_space<vmem>>, %arg19: memref<320x64xf32, #tpu.memory_space<vmem>>, %arg20: memref<1x64xf32, #tpu.memory_space<vmem>>, %arg21: memref<1x64xf32, #tpu.memory_space<vmem>>, %arg22: memref<1x64xf32, #tpu.memory_space<vmem>>, %arg23: memref<64x128xf32, #tpu.memory_space<vmem>>, %arg24: memref<1x128xf32, #tpu.memory_space<vmem>>, %arg25: memref<1x16x128xf32, #tpu.memory_space<vmem>>) attributes {dimension_semantics = [#tpu.dimension_semantics<parallel>, #tpu.dimension_semantics<parallel>], iteration_bounds = array<i64: 2, 3>, scalar_prefetch = 0 : i64, scratch_operands = 0 : i64, tpu.core_type = #tpu.core_type<tc>, window_params = [{transform_indices = @transform_0, window_bounds = array<i64: 1, 72, 32>}, {pipeline_mode = #tpu.pipeline_mode<synchronous>, transform_indices = @transform_1, window_bounds = array<i64: 160, 64>}, {pipeline_mode = #tpu.pipeline_mode<synchronous>, transform_indices = @transform_2, window_bounds = array<i64: 1, 64>}, {pipeline_mode = #tpu.pipeline_mode<synchronous>, transform_indices = @transform_3, window_bounds = array<i64: 1, 64>}, {pipeline_mode = #tpu.pipeline_mode<synchronous>, transform_indices = @transform_4, window_bounds = array<i64: 1, 64>}, {pipeline_mode = #tpu.pipeline_mode<synchronous>, transform_indices = @transform_5, window_bounds = array<i64: 320, 64>}, {pipeline_mode = #tpu.pipeline_mode<synchronous>, transform_indices = @transform_6, window_bounds = array<i64: 1, 64>}, {pipeline_mode = #tpu.pipeline_mode<synchronous>, transform_indices = @transform_7, window_bounds = array<i64: 1, 64>}, {pipeline_mode = #tpu.pipeline_mode<synchronous>, transform_indices = @transform_8, window_bounds = array<i64: 1, 64>}, {pipeline_mode = #tpu.pipeline_mode<synchronous>, transform_indices = @transform_9, window_bounds = array<i64: 320, 64>}, {pipeline_mode = #tpu.pipeline_mode<synchronous>, transform_indices = @transform_10, window_bounds = array<i64: 1, 64>}, {pipeline_mode = #tpu.pipeline_mode<synchronous>, transform_indices = @transform_11, window_bounds = array<i64: 1, 64>}, {pipeline_mode = #tpu.pipeline_mode<synchronous>, transform_indices = @transform_12, window_bounds = array<i64: 1, 64>}, {pipeline_mode = #tpu.pipeline_mode<synchronous>, transform_indices = @transform_13, window_bounds = array<i64: 320, 64>}, {pipeline_mode = #tpu.pipeline_mode<synchronous>, transform_indices = @transform_14, window_bounds = array<i64: 1, 64>}, {pipeline_mode = #tpu.pipeline_mode<synchronous>, transform_indices = @transform_15, window_bounds = array<i64: 1, 64>}, {pipeline_mode = #tpu.pipeline_mode<synchronous>, transform_indices = @transform_16, window_bounds = array<i64: 1, 64>}, {pipeline_mode = #tpu.pipeline_mode<synchronous>, transform_indices = @transform_17, window_bounds = array<i64: 320, 64>}, {pipeline_mode = #tpu.pipeline_mode<synchronous>, transform_indices = @transform_18, window_bounds = array<i64: 1, 64>}, {pipeline_mode = #tpu.pipeline_mode<synchronous>, transform_indices = @transform_19, window_bounds = array<i64: 1, 64>}, {pipeline_mode = #tpu.pipeline_mode<synchronous>, transform_indices = @transform_20, window_bounds = array<i64: 1, 64>}, {pipeline_mode = #tpu.pipeline_mode<synchronous>, transform_indices = @transform_21, window_bounds = array<i64: 64, 128>}, {pipeline_mode = #tpu.pipeline_mode<synchronous>, transform_indices = @transform_22, window_bounds = array<i64: 1, 128>}, {transform_indices = @transform_23, window_bounds = array<i64: 1, 16, 128>}]} {
    %c16_i32 = arith.constant 16 : i32
    %0 = arith.muli %arg1, %c16_i32 : i32
    %1 = tpu.assume_multiple %0, 8 : i32
    %c0 = arith.constant 0 : index
    %2 = arith.index_cast %1 : i32 to index
    %c0_0 = arith.constant 0 : index
    %3 = vector.load %arg2[%c0, %2, %c0_0] : memref<1x72x32xf32, #tpu.memory_space<vmem>>, vector<1x40x32xf32>
    %4 = vector.shape_cast %3 : vector<1x40x32xf32> to vector<40x32xf32>
    %5 = vector.extract_strided_slice %4 {offsets = [0, 0], sizes = [36, 32], strides = [1, 1]} : vector<40x32xf32> to vector<36x32xf32>
    %6 = vector.extract_strided_slice %4 {offsets = [1, 0], sizes = [36, 32], strides = [1, 1]} : vector<40x32xf32> to vector<36x32xf32>
    %7 = vector.extract_strided_slice %4 {offsets = [2, 0], sizes = [36, 32], strides = [1, 1]} : vector<40x32xf32> to vector<36x32xf32>
    %8 = vector.extract_strided_slice %4 {offsets = [3, 0], sizes = [36, 32], strides = [1, 1]} : vector<40x32xf32> to vector<36x32xf32>
    %9 = vector.extract_strided_slice %4 {offsets = [4, 0], sizes = [36, 32], strides = [1, 1]} : vector<40x32xf32> to vector<36x32xf32>
    %10 = tpu.concatenate %5, %6, %7, %8, %9 in 1 : vector<36x32xf32>, vector<36x32xf32>, vector<36x32xf32>, vector<36x32xf32>, vector<36x32xf32> -> vector<36x160xf32>
    %c0_1 = arith.constant 0 : index
    %c0_2 = arith.constant 0 : index
    %11 = vector.load %arg3[%c0_1, %c0_2] : memref<160x64xf32, #tpu.memory_space<vmem>>, vector<160x64xf32>
    %cst = arith.constant dense<0.000000e+00> : vector<36x64xf32>
    %12 = tpu.matmul %10, %11, %cst {dimension_numbers = #tpu.dot_dimension_numbers<[1], [0], [0], [1], [0, 0, 1, 1], [], []>} : vector<36x160xf32>, vector<160x64xf32>, vector<36x64xf32> -> vector<36x64xf32>
    %c0_3 = arith.constant 0 : index
    %c0_4 = arith.constant 0 : index
    %13 = vector.load %arg4[%c0_3, %c0_4] : memref<1x64xf32, #tpu.memory_space<vmem>>, vector<1x64xf32>
    %14 = vector.broadcast %13 : vector<1x64xf32> to vector<36x64xf32>
    %15 = arith.addf %12, %14 : vector<36x64xf32>
    %cst_5 = arith.constant 0.000000e+00 : f32
    %16 = vector.broadcast %cst_5 : f32 to vector<36x64xf32>
    %17 = arith.maximumf %15, %16 : vector<36x64xf32>
    %cst_6 = arith.constant dense<0.000000e+00> : vector<36xf32>
    %18 = vector.multi_reduction <add>, %17, %cst_6 [1] : vector<36x64xf32> to vector<36xf32>
    %19 = vector.shape_cast %18 : vector<36xf32> to vector<36x1xf32>
    %cst_7 = arith.constant 6.400000e+01 : f32
    %20 = vector.broadcast %cst_7 : f32 to vector<36x1xf32>
    %21 = arith.divf %19, %20 : vector<36x1xf32>
    %22 = vector.broadcast %21 : vector<36x1xf32> to vector<36x64xf32>
    %23 = arith.subf %17, %22 : vector<36x64xf32>
    %24 = arith.mulf %23, %23 : vector<36x64xf32>
    %cst_8 = arith.constant dense<0.000000e+00> : vector<36xf32>
    %25 = vector.multi_reduction <add>, %24, %cst_8 [1] : vector<36x64xf32> to vector<36xf32>
    %26 = vector.shape_cast %25 : vector<36xf32> to vector<36x1xf32>
    %cst_9 = arith.constant 6.400000e+01 : f32
    %27 = vector.broadcast %cst_9 : f32 to vector<36x1xf32>
    %28 = arith.divf %26, %27 : vector<36x1xf32>
    %29 = vector.broadcast %21 : vector<36x1xf32> to vector<36x64xf32>
    %30 = arith.subf %17, %29 : vector<36x64xf32>
    %cst_10 = arith.constant 9.99999974E-6 : f32
    %31 = vector.broadcast %cst_10 : f32 to vector<36x1xf32>
    %32 = arith.addf %28, %31 : vector<36x1xf32>
    %33 = math.rsqrt %32 : vector<36x1xf32>
    %34 = vector.broadcast %33 : vector<36x1xf32> to vector<36x64xf32>
    %35 = arith.mulf %30, %34 : vector<36x64xf32>
    %c0_11 = arith.constant 0 : index
    %c0_12 = arith.constant 0 : index
    %36 = vector.load %arg5[%c0_11, %c0_12] : memref<1x64xf32, #tpu.memory_space<vmem>>, vector<1x64xf32>
    %37 = vector.broadcast %36 : vector<1x64xf32> to vector<36x64xf32>
    %38 = arith.mulf %35, %37 : vector<36x64xf32>
    %c0_13 = arith.constant 0 : index
    %c0_14 = arith.constant 0 : index
    %39 = vector.load %arg6[%c0_13, %c0_14] : memref<1x64xf32, #tpu.memory_space<vmem>>, vector<1x64xf32>
    %40 = vector.broadcast %39 : vector<1x64xf32> to vector<36x64xf32>
    %41 = arith.addf %38, %40 : vector<36x64xf32>
    %42 = tpu.iota {dimensions = array<i32: 0>} : vector<36x1xi32>
    %c16_i32_15 = arith.constant 16 : i32
    %43 = arith.muli %arg1, %c16_i32_15 : i32
    %c10_i32 = arith.constant 10 : i32
    %44 = arith.subi %43, %c10_i32 : i32
    %45 = vector.broadcast %44 : i32 to vector<36x1xi32>
    %46 = arith.addi %45, %42 : vector<36x1xi32>
    %c0_i32 = arith.constant 0 : i32
    %47 = vector.broadcast %c0_i32 : i32 to vector<36x1xi32>
    %48 = arith.cmpi sge, %46, %47 : vector<36x1xi32>
    %c40_i32 = arith.constant 40 : i32
    %49 = vector.broadcast %c40_i32 : i32 to vector<36x1xi32>
    %50 = arith.cmpi slt, %46, %49 : vector<36x1xi32>
    %51 = arith.andi %48, %50 : vector<36x1xi1>
    %cst_16 = arith.constant 0.000000e+00 : f32
    %52 = vector.shape_cast %51 : vector<36x1xi1> to vector<36x1xi1>
    %53 = vector.broadcast %52 : vector<36x1xi1> to vector<36x64xi1>
    %54 = vector.broadcast %cst_16 : f32 to vector<36x64xf32>
    %55 = arith.select %53, %41, %54 : vector<36x64xi1>, vector<36x64xf32>
    %56 = vector.extract_strided_slice %55 {offsets = [0, 0], sizes = [32, 64], strides = [1, 1]} : vector<36x64xf32> to vector<32x64xf32>
    %57 = vector.extract_strided_slice %55 {offsets = [1, 0], sizes = [32, 64], strides = [1, 1]} : vector<36x64xf32> to vector<32x64xf32>
    %58 = vector.extract_strided_slice %55 {offsets = [2, 0], sizes = [32, 64], strides = [1, 1]} : vector<36x64xf32> to vector<32x64xf32>
    %59 = vector.extract_strided_slice %55 {offsets = [3, 0], sizes = [32, 64], strides = [1, 1]} : vector<36x64xf32> to vector<32x64xf32>
    %60 = vector.extract_strided_slice %55 {offsets = [4, 0], sizes = [32, 64], strides = [1, 1]} : vector<36x64xf32> to vector<32x64xf32>
    %61 = tpu.concatenate %56, %57, %58, %59, %60 in 1 : vector<32x64xf32>, vector<32x64xf32>, vector<32x64xf32>, vector<32x64xf32>, vector<32x64xf32> -> vector<32x320xf32>
    %c0_17 = arith.constant 0 : index
    %c0_18 = arith.constant 0 : index
    %62 = vector.load %arg7[%c0_17, %c0_18] : memref<320x64xf32, #tpu.memory_space<vmem>>, vector<320x64xf32>
    %cst_19 = arith.constant dense<0.000000e+00> : vector<32x64xf32>
    %63 = tpu.matmul %61, %62, %cst_19 {dimension_numbers = #tpu.dot_dimension_numbers<[1], [0], [0], [1], [0, 0, 1, 1], [], []>} : vector<32x320xf32>, vector<320x64xf32>, vector<32x64xf32> -> vector<32x64xf32>
    %c0_20 = arith.constant 0 : index
    %c0_21 = arith.constant 0 : index
    %64 = vector.load %arg8[%c0_20, %c0_21] : memref<1x64xf32, #tpu.memory_space<vmem>>, vector<1x64xf32>
    %65 = vector.broadcast %64 : vector<1x64xf32> to vector<32x64xf32>
    %66 = arith.addf %63, %65 : vector<32x64xf32>
    %cst_22 = arith.constant 0.000000e+00 : f32
    %67 = vector.broadcast %cst_22 : f32 to vector<32x64xf32>
    %68 = arith.maximumf %66, %67 : vector<32x64xf32>
    %cst_23 = arith.constant dense<0.000000e+00> : vector<32xf32>
    %69 = vector.multi_reduction <add>, %68, %cst_23 [1] : vector<32x64xf32> to vector<32xf32>
    %70 = vector.shape_cast %69 : vector<32xf32> to vector<32x1xf32>
    %cst_24 = arith.constant 6.400000e+01 : f32
    %71 = vector.broadcast %cst_24 : f32 to vector<32x1xf32>
    %72 = arith.divf %70, %71 : vector<32x1xf32>
    %73 = vector.broadcast %72 : vector<32x1xf32> to vector<32x64xf32>
    %74 = arith.subf %68, %73 : vector<32x64xf32>
    %75 = arith.mulf %74, %74 : vector<32x64xf32>
    %cst_25 = arith.constant dense<0.000000e+00> : vector<32xf32>
    %76 = vector.multi_reduction <add>, %75, %cst_25 [1] : vector<32x64xf32> to vector<32xf32>
    %77 = vector.shape_cast %76 : vector<32xf32> to vector<32x1xf32>
    %cst_26 = arith.constant 6.400000e+01 : f32
    %78 = vector.broadcast %cst_26 : f32 to vector<32x1xf32>
    %79 = arith.divf %77, %78 : vector<32x1xf32>
    %80 = vector.broadcast %72 : vector<32x1xf32> to vector<32x64xf32>
    %81 = arith.subf %68, %80 : vector<32x64xf32>
    %cst_27 = arith.constant 9.99999974E-6 : f32
    %82 = vector.broadcast %cst_27 : f32 to vector<32x1xf32>
    %83 = arith.addf %79, %82 : vector<32x1xf32>
    %84 = math.rsqrt %83 : vector<32x1xf32>
    %85 = vector.broadcast %84 : vector<32x1xf32> to vector<32x64xf32>
    %86 = arith.mulf %81, %85 : vector<32x64xf32>
    %c0_28 = arith.constant 0 : index
    %c0_29 = arith.constant 0 : index
    %87 = vector.load %arg9[%c0_28, %c0_29] : memref<1x64xf32, #tpu.memory_space<vmem>>, vector<1x64xf32>
    %88 = vector.broadcast %87 : vector<1x64xf32> to vector<32x64xf32>
    %89 = arith.mulf %86, %88 : vector<32x64xf32>
    %c0_30 = arith.constant 0 : index
    %c0_31 = arith.constant 0 : index
    %90 = vector.load %arg10[%c0_30, %c0_31] : memref<1x64xf32, #tpu.memory_space<vmem>>, vector<1x64xf32>
    %91 = vector.broadcast %90 : vector<1x64xf32> to vector<32x64xf32>
    %92 = arith.addf %89, %91 : vector<32x64xf32>
    %93 = tpu.iota {dimensions = array<i32: 0>} : vector<32x1xi32>
    %c16_i32_32 = arith.constant 16 : i32
    %94 = arith.muli %arg1, %c16_i32_32 : i32
    %c8_i32 = arith.constant 8 : i32
    %95 = arith.subi %94, %c8_i32 : i32
    %96 = vector.broadcast %95 : i32 to vector<32x1xi32>
    %97 = arith.addi %96, %93 : vector<32x1xi32>
    %c0_i32_33 = arith.constant 0 : i32
    %98 = vector.broadcast %c0_i32_33 : i32 to vector<32x1xi32>
    %99 = arith.cmpi sge, %97, %98 : vector<32x1xi32>
    %c40_i32_34 = arith.constant 40 : i32
    %100 = vector.broadcast %c40_i32_34 : i32 to vector<32x1xi32>
    %101 = arith.cmpi slt, %97, %100 : vector<32x1xi32>
    %102 = arith.andi %99, %101 : vector<32x1xi1>
    %cst_35 = arith.constant 0.000000e+00 : f32
    %103 = vector.shape_cast %102 : vector<32x1xi1> to vector<32x1xi1>
    %104 = vector.broadcast %103 : vector<32x1xi1> to vector<32x64xi1>
    %105 = vector.broadcast %cst_35 : f32 to vector<32x64xf32>
    %106 = arith.select %104, %92, %105 : vector<32x64xi1>, vector<32x64xf32>
    %107 = vector.extract_strided_slice %106 {offsets = [0, 0], sizes = [28, 64], strides = [1, 1]} : vector<32x64xf32> to vector<28x64xf32>
    %108 = vector.extract_strided_slice %106 {offsets = [1, 0], sizes = [28, 64], strides = [1, 1]} : vector<32x64xf32> to vector<28x64xf32>
    %109 = vector.extract_strided_slice %106 {offsets = [2, 0], sizes = [28, 64], strides = [1, 1]} : vector<32x64xf32> to vector<28x64xf32>
    %110 = vector.extract_strided_slice %106 {offsets = [3, 0], sizes = [28, 64], strides = [1, 1]} : vector<32x64xf32> to vector<28x64xf32>
    %111 = vector.extract_strided_slice %106 {offsets = [4, 0], sizes = [28, 64], strides = [1, 1]} : vector<32x64xf32> to vector<28x64xf32>
    %112 = tpu.concatenate %107, %108, %109, %110, %111 in 1 : vector<28x64xf32>, vector<28x64xf32>, vector<28x64xf32>, vector<28x64xf32>, vector<28x64xf32> -> vector<28x320xf32>
    %c0_36 = arith.constant 0 : index
    %c0_37 = arith.constant 0 : index
    %113 = vector.load %arg11[%c0_36, %c0_37] : memref<320x64xf32, #tpu.memory_space<vmem>>, vector<320x64xf32>
    %cst_38 = arith.constant dense<0.000000e+00> : vector<28x64xf32>
    %114 = tpu.matmul %112, %113, %cst_38 {dimension_numbers = #tpu.dot_dimension_numbers<[1], [0], [0], [1], [0, 0, 1, 1], [], []>} : vector<28x320xf32>, vector<320x64xf32>, vector<28x64xf32> -> vector<28x64xf32>
    %c0_39 = arith.constant 0 : index
    %c0_40 = arith.constant 0 : index
    %115 = vector.load %arg12[%c0_39, %c0_40] : memref<1x64xf32, #tpu.memory_space<vmem>>, vector<1x64xf32>
    %116 = vector.broadcast %115 : vector<1x64xf32> to vector<28x64xf32>
    %117 = arith.addf %114, %116 : vector<28x64xf32>
    %cst_41 = arith.constant 0.000000e+00 : f32
    %118 = vector.broadcast %cst_41 : f32 to vector<28x64xf32>
    %119 = arith.maximumf %117, %118 : vector<28x64xf32>
    %cst_42 = arith.constant dense<0.000000e+00> : vector<28xf32>
    %120 = vector.multi_reduction <add>, %119, %cst_42 [1] : vector<28x64xf32> to vector<28xf32>
    %121 = vector.shape_cast %120 : vector<28xf32> to vector<28x1xf32>
    %cst_43 = arith.constant 6.400000e+01 : f32
    %122 = vector.broadcast %cst_43 : f32 to vector<28x1xf32>
    %123 = arith.divf %121, %122 : vector<28x1xf32>
    %124 = vector.broadcast %123 : vector<28x1xf32> to vector<28x64xf32>
    %125 = arith.subf %119, %124 : vector<28x64xf32>
    %126 = arith.mulf %125, %125 : vector<28x64xf32>
    %cst_44 = arith.constant dense<0.000000e+00> : vector<28xf32>
    %127 = vector.multi_reduction <add>, %126, %cst_44 [1] : vector<28x64xf32> to vector<28xf32>
    %128 = vector.shape_cast %127 : vector<28xf32> to vector<28x1xf32>
    %cst_45 = arith.constant 6.400000e+01 : f32
    %129 = vector.broadcast %cst_45 : f32 to vector<28x1xf32>
    %130 = arith.divf %128, %129 : vector<28x1xf32>
    %131 = vector.broadcast %123 : vector<28x1xf32> to vector<28x64xf32>
    %132 = arith.subf %119, %131 : vector<28x64xf32>
    %cst_46 = arith.constant 9.99999974E-6 : f32
    %133 = vector.broadcast %cst_46 : f32 to vector<28x1xf32>
    %134 = arith.addf %130, %133 : vector<28x1xf32>
    %135 = math.rsqrt %134 : vector<28x1xf32>
    %136 = vector.broadcast %135 : vector<28x1xf32> to vector<28x64xf32>
    %137 = arith.mulf %132, %136 : vector<28x64xf32>
    %c0_47 = arith.constant 0 : index
    %c0_48 = arith.constant 0 : index
    %138 = vector.load %arg13[%c0_47, %c0_48] : memref<1x64xf32, #tpu.memory_space<vmem>>, vector<1x64xf32>
    %139 = vector.broadcast %138 : vector<1x64xf32> to vector<28x64xf32>
    %140 = arith.mulf %137, %139 : vector<28x64xf32>
    %c0_49 = arith.constant 0 : index
    %c0_50 = arith.constant 0 : index
    %141 = vector.load %arg14[%c0_49, %c0_50] : memref<1x64xf32, #tpu.memory_space<vmem>>, vector<1x64xf32>
    %142 = vector.broadcast %141 : vector<1x64xf32> to vector<28x64xf32>
    %143 = arith.addf %140, %142 : vector<28x64xf32>
    %144 = tpu.iota {dimensions = array<i32: 0>} : vector<28x1xi32>
    %c16_i32_51 = arith.constant 16 : i32
    %145 = arith.muli %arg1, %c16_i32_51 : i32
    %c6_i32 = arith.constant 6 : i32
    %146 = arith.subi %145, %c6_i32 : i32
    %147 = vector.broadcast %146 : i32 to vector<28x1xi32>
    %148 = arith.addi %147, %144 : vector<28x1xi32>
    %c0_i32_52 = arith.constant 0 : i32
    %149 = vector.broadcast %c0_i32_52 : i32 to vector<28x1xi32>
    %150 = arith.cmpi sge, %148, %149 : vector<28x1xi32>
    %c40_i32_53 = arith.constant 40 : i32
    %151 = vector.broadcast %c40_i32_53 : i32 to vector<28x1xi32>
    %152 = arith.cmpi slt, %148, %151 : vector<28x1xi32>
    %153 = arith.andi %150, %152 : vector<28x1xi1>
    %cst_54 = arith.constant 0.000000e+00 : f32
    %154 = vector.shape_cast %153 : vector<28x1xi1> to vector<28x1xi1>
    %155 = vector.broadcast %154 : vector<28x1xi1> to vector<28x64xi1>
    %156 = vector.broadcast %cst_54 : f32 to vector<28x64xf32>
    %157 = arith.select %155, %143, %156 : vector<28x64xi1>, vector<28x64xf32>
    %158 = vector.extract_strided_slice %157 {offsets = [0, 0], sizes = [24, 64], strides = [1, 1]} : vector<28x64xf32> to vector<24x64xf32>
    %159 = vector.extract_strided_slice %157 {offsets = [1, 0], sizes = [24, 64], strides = [1, 1]} : vector<28x64xf32> to vector<24x64xf32>
    %160 = vector.extract_strided_slice %157 {offsets = [2, 0], sizes = [24, 64], strides = [1, 1]} : vector<28x64xf32> to vector<24x64xf32>
    %161 = vector.extract_strided_slice %157 {offsets = [3, 0], sizes = [24, 64], strides = [1, 1]} : vector<28x64xf32> to vector<24x64xf32>
    %162 = vector.extract_strided_slice %157 {offsets = [4, 0], sizes = [24, 64], strides = [1, 1]} : vector<28x64xf32> to vector<24x64xf32>
    %163 = tpu.concatenate %158, %159, %160, %161, %162 in 1 : vector<24x64xf32>, vector<24x64xf32>, vector<24x64xf32>, vector<24x64xf32>, vector<24x64xf32> -> vector<24x320xf32>
    %c0_55 = arith.constant 0 : index
    %c0_56 = arith.constant 0 : index
    %164 = vector.load %arg15[%c0_55, %c0_56] : memref<320x64xf32, #tpu.memory_space<vmem>>, vector<320x64xf32>
    %cst_57 = arith.constant dense<0.000000e+00> : vector<24x64xf32>
    %165 = tpu.matmul %163, %164, %cst_57 {dimension_numbers = #tpu.dot_dimension_numbers<[1], [0], [0], [1], [0, 0, 1, 1], [], []>} : vector<24x320xf32>, vector<320x64xf32>, vector<24x64xf32> -> vector<24x64xf32>
    %c0_58 = arith.constant 0 : index
    %c0_59 = arith.constant 0 : index
    %166 = vector.load %arg16[%c0_58, %c0_59] : memref<1x64xf32, #tpu.memory_space<vmem>>, vector<1x64xf32>
    %167 = vector.broadcast %166 : vector<1x64xf32> to vector<24x64xf32>
    %168 = arith.addf %165, %167 : vector<24x64xf32>
    %cst_60 = arith.constant 0.000000e+00 : f32
    %169 = vector.broadcast %cst_60 : f32 to vector<24x64xf32>
    %170 = arith.maximumf %168, %169 : vector<24x64xf32>
    %cst_61 = arith.constant dense<0.000000e+00> : vector<24xf32>
    %171 = vector.multi_reduction <add>, %170, %cst_61 [1] : vector<24x64xf32> to vector<24xf32>
    %172 = vector.shape_cast %171 : vector<24xf32> to vector<24x1xf32>
    %cst_62 = arith.constant 6.400000e+01 : f32
    %173 = vector.broadcast %cst_62 : f32 to vector<24x1xf32>
    %174 = arith.divf %172, %173 : vector<24x1xf32>
    %175 = vector.broadcast %174 : vector<24x1xf32> to vector<24x64xf32>
    %176 = arith.subf %170, %175 : vector<24x64xf32>
    %177 = arith.mulf %176, %176 : vector<24x64xf32>
    %cst_63 = arith.constant dense<0.000000e+00> : vector<24xf32>
    %178 = vector.multi_reduction <add>, %177, %cst_63 [1] : vector<24x64xf32> to vector<24xf32>
    %179 = vector.shape_cast %178 : vector<24xf32> to vector<24x1xf32>
    %cst_64 = arith.constant 6.400000e+01 : f32
    %180 = vector.broadcast %cst_64 : f32 to vector<24x1xf32>
    %181 = arith.divf %179, %180 : vector<24x1xf32>
    %182 = vector.broadcast %174 : vector<24x1xf32> to vector<24x64xf32>
    %183 = arith.subf %170, %182 : vector<24x64xf32>
    %cst_65 = arith.constant 9.99999974E-6 : f32
    %184 = vector.broadcast %cst_65 : f32 to vector<24x1xf32>
    %185 = arith.addf %181, %184 : vector<24x1xf32>
    %186 = math.rsqrt %185 : vector<24x1xf32>
    %187 = vector.broadcast %186 : vector<24x1xf32> to vector<24x64xf32>
    %188 = arith.mulf %183, %187 : vector<24x64xf32>
    %c0_66 = arith.constant 0 : index
    %c0_67 = arith.constant 0 : index
    %189 = vector.load %arg17[%c0_66, %c0_67] : memref<1x64xf32, #tpu.memory_space<vmem>>, vector<1x64xf32>
    %190 = vector.broadcast %189 : vector<1x64xf32> to vector<24x64xf32>
    %191 = arith.mulf %188, %190 : vector<24x64xf32>
    %c0_68 = arith.constant 0 : index
    %c0_69 = arith.constant 0 : index
    %192 = vector.load %arg18[%c0_68, %c0_69] : memref<1x64xf32, #tpu.memory_space<vmem>>, vector<1x64xf32>
    %193 = vector.broadcast %192 : vector<1x64xf32> to vector<24x64xf32>
    %194 = arith.addf %191, %193 : vector<24x64xf32>
    %195 = tpu.iota {dimensions = array<i32: 0>} : vector<24x1xi32>
    %c16_i32_70 = arith.constant 16 : i32
    %196 = arith.muli %arg1, %c16_i32_70 : i32
    %c4_i32 = arith.constant 4 : i32
    %197 = arith.subi %196, %c4_i32 : i32
    %198 = vector.broadcast %197 : i32 to vector<24x1xi32>
    %199 = arith.addi %198, %195 : vector<24x1xi32>
    %c0_i32_71 = arith.constant 0 : i32
    %200 = vector.broadcast %c0_i32_71 : i32 to vector<24x1xi32>
    %201 = arith.cmpi sge, %199, %200 : vector<24x1xi32>
    %c40_i32_72 = arith.constant 40 : i32
    %202 = vector.broadcast %c40_i32_72 : i32 to vector<24x1xi32>
    %203 = arith.cmpi slt, %199, %202 : vector<24x1xi32>
    %204 = arith.andi %201, %203 : vector<24x1xi1>
    %cst_73 = arith.constant 0.000000e+00 : f32
    %205 = vector.shape_cast %204 : vector<24x1xi1> to vector<24x1xi1>
    %206 = vector.broadcast %205 : vector<24x1xi1> to vector<24x64xi1>
    %207 = vector.broadcast %cst_73 : f32 to vector<24x64xf32>
    %208 = arith.select %206, %194, %207 : vector<24x64xi1>, vector<24x64xf32>
    %209 = vector.extract_strided_slice %208 {offsets = [0, 0], sizes = [20, 64], strides = [1, 1]} : vector<24x64xf32> to vector<20x64xf32>
    %210 = vector.extract_strided_slice %208 {offsets = [1, 0], sizes = [20, 64], strides = [1, 1]} : vector<24x64xf32> to vector<20x64xf32>
    %211 = vector.extract_strided_slice %208 {offsets = [2, 0], sizes = [20, 64], strides = [1, 1]} : vector<24x64xf32> to vector<20x64xf32>
    %212 = vector.extract_strided_slice %208 {offsets = [3, 0], sizes = [20, 64], strides = [1, 1]} : vector<24x64xf32> to vector<20x64xf32>
    %213 = vector.extract_strided_slice %208 {offsets = [4, 0], sizes = [20, 64], strides = [1, 1]} : vector<24x64xf32> to vector<20x64xf32>
    %214 = tpu.concatenate %209, %210, %211, %212, %213 in 1 : vector<20x64xf32>, vector<20x64xf32>, vector<20x64xf32>, vector<20x64xf32>, vector<20x64xf32> -> vector<20x320xf32>
    %c0_74 = arith.constant 0 : index
    %c0_75 = arith.constant 0 : index
    %215 = vector.load %arg19[%c0_74, %c0_75] : memref<320x64xf32, #tpu.memory_space<vmem>>, vector<320x64xf32>
    %cst_76 = arith.constant dense<0.000000e+00> : vector<20x64xf32>
    %216 = tpu.matmul %214, %215, %cst_76 {dimension_numbers = #tpu.dot_dimension_numbers<[1], [0], [0], [1], [0, 0, 1, 1], [], []>} : vector<20x320xf32>, vector<320x64xf32>, vector<20x64xf32> -> vector<20x64xf32>
    %c0_77 = arith.constant 0 : index
    %c0_78 = arith.constant 0 : index
    %217 = vector.load %arg20[%c0_77, %c0_78] : memref<1x64xf32, #tpu.memory_space<vmem>>, vector<1x64xf32>
    %218 = vector.broadcast %217 : vector<1x64xf32> to vector<20x64xf32>
    %219 = arith.addf %216, %218 : vector<20x64xf32>
    %cst_79 = arith.constant 0.000000e+00 : f32
    %220 = vector.broadcast %cst_79 : f32 to vector<20x64xf32>
    %221 = arith.maximumf %219, %220 : vector<20x64xf32>
    %cst_80 = arith.constant dense<0.000000e+00> : vector<20xf32>
    %222 = vector.multi_reduction <add>, %221, %cst_80 [1] : vector<20x64xf32> to vector<20xf32>
    %223 = vector.shape_cast %222 : vector<20xf32> to vector<20x1xf32>
    %cst_81 = arith.constant 6.400000e+01 : f32
    %224 = vector.broadcast %cst_81 : f32 to vector<20x1xf32>
    %225 = arith.divf %223, %224 : vector<20x1xf32>
    %226 = vector.broadcast %225 : vector<20x1xf32> to vector<20x64xf32>
    %227 = arith.subf %221, %226 : vector<20x64xf32>
    %228 = arith.mulf %227, %227 : vector<20x64xf32>
    %cst_82 = arith.constant dense<0.000000e+00> : vector<20xf32>
    %229 = vector.multi_reduction <add>, %228, %cst_82 [1] : vector<20x64xf32> to vector<20xf32>
    %230 = vector.shape_cast %229 : vector<20xf32> to vector<20x1xf32>
    %cst_83 = arith.constant 6.400000e+01 : f32
    %231 = vector.broadcast %cst_83 : f32 to vector<20x1xf32>
    %232 = arith.divf %230, %231 : vector<20x1xf32>
    %233 = vector.broadcast %225 : vector<20x1xf32> to vector<20x64xf32>
    %234 = arith.subf %221, %233 : vector<20x64xf32>
    %cst_84 = arith.constant 9.99999974E-6 : f32
    %235 = vector.broadcast %cst_84 : f32 to vector<20x1xf32>
    %236 = arith.addf %232, %235 : vector<20x1xf32>
    %237 = math.rsqrt %236 : vector<20x1xf32>
    %238 = vector.broadcast %237 : vector<20x1xf32> to vector<20x64xf32>
    %239 = arith.mulf %234, %238 : vector<20x64xf32>
    %c0_85 = arith.constant 0 : index
    %c0_86 = arith.constant 0 : index
    %240 = vector.load %arg21[%c0_85, %c0_86] : memref<1x64xf32, #tpu.memory_space<vmem>>, vector<1x64xf32>
    %241 = vector.broadcast %240 : vector<1x64xf32> to vector<20x64xf32>
    %242 = arith.mulf %239, %241 : vector<20x64xf32>
    %c0_87 = arith.constant 0 : index
    %c0_88 = arith.constant 0 : index
    %243 = vector.load %arg22[%c0_87, %c0_88] : memref<1x64xf32, #tpu.memory_space<vmem>>, vector<1x64xf32>
    %244 = vector.broadcast %243 : vector<1x64xf32> to vector<20x64xf32>
    %245 = arith.addf %242, %244 : vector<20x64xf32>
    %246 = vector.extract_strided_slice %245 {offsets = [2, 0], sizes = [16, 64], strides = [1, 1]} : vector<20x64xf32> to vector<16x64xf32>
    %c0_89 = arith.constant 0 : index
    %c0_90 = arith.constant 0 : index
    %247 = vector.load %arg23[%c0_89, %c0_90] : memref<64x128xf32, #tpu.memory_space<vmem>>, vector<64x128xf32>
    %cst_91 = arith.constant dense<0.000000e+00> : vector<16x128xf32>
    %248 = tpu.matmul %246, %247, %cst_91 {dimension_numbers = #tpu.dot_dimension_numbers<[1], [0], [0], [1], [0, 0, 1, 1], [], []>} : vector<16x64xf32>, vector<64x128xf32>, vector<16x128xf32> -> vector<16x128xf32>
    %c0_92 = arith.constant 0 : index
    %c0_93 = arith.constant 0 : index
    %249 = vector.load %arg24[%c0_92, %c0_93] : memref<1x128xf32, #tpu.memory_space<vmem>>, vector<1x128xf32>
    %250 = vector.broadcast %249 : vector<1x128xf32> to vector<16x128xf32>
    %251 = arith.addf %248, %250 : vector<16x128xf32>
    %c0_94 = arith.constant 0 : index
    %c0_95 = arith.constant 0 : index
    %c0_96 = arith.constant 0 : index
    %252 = vector.load %arg25[%c0_94, %c0_95, %c0_96] : memref<1x16x128xf32, #tpu.memory_space<vmem>>, vector<1x16x128xf32>
    %253 = vector.shape_cast %252 : vector<1x16x128xf32> to vector<16x128xf32>
    %254 = vector.shape_cast %251 : vector<16x128xf32> to vector<1x16x128xf32>
    tpu.vector_store %arg25[%c0_94, %c0_95, %c0_96], %254 {strides = array<i32>} : memref<1x16x128xf32, #tpu.memory_space<vmem>>, vector<1x16x128xf32>,
    return
  }
  func.func @transform_0(%arg0: i32, %arg1: i32) -> (i32, i32, i32) {
    %c0_i32 = arith.constant 0 : i32
    %c0_i32_0 = arith.constant 0 : i32
    %c0_i32_1 = arith.constant 0 : i32
    return %arg0, %c0_i32, %c0_i32_0 : i32, i32, i32
  }
  func.func @transform_1(%arg0: i32, %arg1: i32) -> (i32, i32) {
    %c0_i32 = arith.constant 0 : i32
    %c0_i32_0 = arith.constant 0 : i32
    %c0_i32_1 = arith.constant 0 : i32
    return %c0_i32, %c0_i32_0 : i32, i32
  }
  func.func @transform_2(%arg0: i32, %arg1: i32) -> (i32, i32) {
    %c0_i32 = arith.constant 0 : i32
    %c0_i32_0 = arith.constant 0 : i32
    %c0_i32_1 = arith.constant 0 : i32
    return %c0_i32, %c0_i32_0 : i32, i32
  }
  func.func @transform_3(%arg0: i32, %arg1: i32) -> (i32, i32) {
    %c0_i32 = arith.constant 0 : i32
    %c0_i32_0 = arith.constant 0 : i32
    %c0_i32_1 = arith.constant 0 : i32
    return %c0_i32, %c0_i32_0 : i32, i32
  }
  func.func @transform_4(%arg0: i32, %arg1: i32) -> (i32, i32) {
    %c0_i32 = arith.constant 0 : i32
    %c0_i32_0 = arith.constant 0 : i32
    %c0_i32_1 = arith.constant 0 : i32
    return %c0_i32, %c0_i32_0 : i32, i32
  }
  func.func @transform_5(%arg0: i32, %arg1: i32) -> (i32, i32) {
    %c0_i32 = arith.constant 0 : i32
    %c0_i32_0 = arith.constant 0 : i32
    %c0_i32_1 = arith.constant 0 : i32
    return %c0_i32, %c0_i32_0 : i32, i32
  }
  func.func @transform_6(%arg0: i32, %arg1: i32) -> (i32, i32) {
    %c0_i32 = arith.constant 0 : i32
    %c0_i32_0 = arith.constant 0 : i32
    %c0_i32_1 = arith.constant 0 : i32
    return %c0_i32, %c0_i32_0 : i32, i32
  }
  func.func @transform_7(%arg0: i32, %arg1: i32) -> (i32, i32) {
    %c0_i32 = arith.constant 0 : i32
    %c0_i32_0 = arith.constant 0 : i32
    %c0_i32_1 = arith.constant 0 : i32
    return %c0_i32, %c0_i32_0 : i32, i32
  }
  func.func @transform_8(%arg0: i32, %arg1: i32) -> (i32, i32) {
    %c0_i32 = arith.constant 0 : i32
    %c0_i32_0 = arith.constant 0 : i32
    %c0_i32_1 = arith.constant 0 : i32
    return %c0_i32, %c0_i32_0 : i32, i32
  }
  func.func @transform_9(%arg0: i32, %arg1: i32) -> (i32, i32) {
    %c0_i32 = arith.constant 0 : i32
    %c0_i32_0 = arith.constant 0 : i32
    %c0_i32_1 = arith.constant 0 : i32
    return %c0_i32, %c0_i32_0 : i32, i32
  }
  func.func @transform_10(%arg0: i32, %arg1: i32) -> (i32, i32) {
    %c0_i32 = arith.constant 0 : i32
    %c0_i32_0 = arith.constant 0 : i32
    %c0_i32_1 = arith.constant 0 : i32
    return %c0_i32, %c0_i32_0 : i32, i32
  }
  func.func @transform_11(%arg0: i32, %arg1: i32) -> (i32, i32) {
    %c0_i32 = arith.constant 0 : i32
    %c0_i32_0 = arith.constant 0 : i32
    %c0_i32_1 = arith.constant 0 : i32
    return %c0_i32, %c0_i32_0 : i32, i32
  }
  func.func @transform_12(%arg0: i32, %arg1: i32) -> (i32, i32) {
    %c0_i32 = arith.constant 0 : i32
    %c0_i32_0 = arith.constant 0 : i32
    %c0_i32_1 = arith.constant 0 : i32
    return %c0_i32, %c0_i32_0 : i32, i32
  }
  func.func @transform_13(%arg0: i32, %arg1: i32) -> (i32, i32) {
    %c0_i32 = arith.constant 0 : i32
    %c0_i32_0 = arith.constant 0 : i32
    %c0_i32_1 = arith.constant 0 : i32
    return %c0_i32, %c0_i32_0 : i32, i32
  }
  func.func @transform_14(%arg0: i32, %arg1: i32) -> (i32, i32) {
    %c0_i32 = arith.constant 0 : i32
    %c0_i32_0 = arith.constant 0 : i32
    %c0_i32_1 = arith.constant 0 : i32
    return %c0_i32, %c0_i32_0 : i32, i32
  }
  func.func @transform_15(%arg0: i32, %arg1: i32) -> (i32, i32) {
    %c0_i32 = arith.constant 0 : i32
    %c0_i32_0 = arith.constant 0 : i32
    %c0_i32_1 = arith.constant 0 : i32
    return %c0_i32, %c0_i32_0 : i32, i32
  }
  func.func @transform_16(%arg0: i32, %arg1: i32) -> (i32, i32) {
    %c0_i32 = arith.constant 0 : i32
    %c0_i32_0 = arith.constant 0 : i32
    %c0_i32_1 = arith.constant 0 : i32
    return %c0_i32, %c0_i32_0 : i32, i32
  }
  func.func @transform_17(%arg0: i32, %arg1: i32) -> (i32, i32) {
    %c0_i32 = arith.constant 0 : i32
    %c0_i32_0 = arith.constant 0 : i32
    %c0_i32_1 = arith.constant 0 : i32
    return %c0_i32, %c0_i32_0 : i32, i32
  }
  func.func @transform_18(%arg0: i32, %arg1: i32) -> (i32, i32) {
    %c0_i32 = arith.constant 0 : i32
    %c0_i32_0 = arith.constant 0 : i32
    %c0_i32_1 = arith.constant 0 : i32
    return %c0_i32, %c0_i32_0 : i32, i32
  }
  func.func @transform_19(%arg0: i32, %arg1: i32) -> (i32, i32) {
    %c0_i32 = arith.constant 0 : i32
    %c0_i32_0 = arith.constant 0 : i32
    %c0_i32_1 = arith.constant 0 : i32
    return %c0_i32, %c0_i32_0 : i32, i32
  }
  func.func @transform_20(%arg0: i32, %arg1: i32) -> (i32, i32) {
    %c0_i32 = arith.constant 0 : i32
    %c0_i32_0 = arith.constant 0 : i32
    %c0_i32_1 = arith.constant 0 : i32
    return %c0_i32, %c0_i32_0 : i32, i32
  }
  func.func @transform_21(%arg0: i32, %arg1: i32) -> (i32, i32) {
    %c0_i32 = arith.constant 0 : i32
    %c0_i32_0 = arith.constant 0 : i32
    %c0_i32_1 = arith.constant 0 : i32
    return %c0_i32, %c0_i32_0 : i32, i32
  }
  func.func @transform_22(%arg0: i32, %arg1: i32) -> (i32, i32) {
    %c0_i32 = arith.constant 0 : i32
    %c0_i32_0 = arith.constant 0 : i32
    %c0_i32_1 = arith.constant 0 : i32
    return %c0_i32, %c0_i32_0 : i32, i32
  }
  func.func @transform_23(%arg0: i32, %arg1: i32) -> (i32, i32, i32) {
    %c0_i32 = arith.constant 0 : i32
    %c0_i32_0 = arith.constant 0 : i32
    return %arg0, %arg1, %c0_i32 : i32, i32, i32
  }
}

</mosaic_0001>

<llo_original>
// kernel: pitch_predictor_forward.1
$region0: #{pitch_predictor_forward.1}
  #allocation0 [shape = 'u32[]', space=smem, size = 0x4, offset = 0x4, fixed_abs, tag = 'smem constant byte address 0x4 - core index']
  #allocation1 [shape = 'u32[144,128]{1,0:T(1,128)}', space=vmem, size = 0x12000, scoped, tag = 'internal scratch']
  %s0 = inlined_call_operand.vmem [shape: f32[2,72,32], index: 0, kind: input, shape index: {}]
  %s1 = inlined_call_operand.hbm [shape: f32[160,64], index: 1, kind: input, shape index: {}]
  %s2 = inlined_call_operand.vmem [shape: f32[1,64], index: 2, kind: input, shape index: {}]
  %s3 = inlined_call_operand.vmem [shape: f32[1,64], index: 3, kind: input, shape index: {}, may-alias: {3,7,11,15,19}]
  %s4 = inlined_call_operand.vmem [shape: f32[1,64], index: 4, kind: input, shape index: {}, may-alias: {4,8,12,16,20}]
  %s5 = inlined_call_operand.vmem [shape: f32[320,64], index: 5, kind: input, shape index: {}]
  %s6 = inlined_call_operand.vmem [shape: f32[1,64], index: 6, kind: input, shape index: {}]
  %s7 = inlined_call_operand.vmem [shape: f32[1,64], index: 7, kind: input, shape index: {}, may-alias: {3,7,11,15,19}]
  %s8 = inlined_call_operand.vmem [shape: f32[1,64], index: 8, kind: input, shape index: {}, may-alias: {4,8,12,16,20}]
  %s9 = inlined_call_operand.hbm [shape: f32[320,64], index: 9, kind: input, shape index: {}]
  %s10 = inlined_call_operand.vmem [shape: f32[1,64], index: 10, kind: input, shape index: {}]
  %s11 = inlined_call_operand.vmem [shape: f32[1,64], index: 11, kind: input, shape index: {}, may-alias: {3,7,11,15,19}]
  %s12 = inlined_call_operand.vmem [shape: f32[1,64], index: 12, kind: input, shape index: {}, may-alias: {4,8,12,16,20}]
  %s13 = inlined_call_operand.hbm [shape: f32[320,64], index: 13, kind: input, shape index: {}]
  %s14 = inlined_call_operand.vmem [shape: f32[1,64], index: 14, kind: input, shape index: {}]
  %s15 = inlined_call_operand.vmem [shape: f32[1,64], index: 15, kind: input, shape index: {}, may-alias: {3,7,11,15,19}]
  %s16 = inlined_call_operand.vmem [shape: f32[1,64], index: 16, kind: input, shape index: {}, may-alias: {4,8,12,16,20}]
  %s17 = inlined_call_operand.hbm [shape: f32[320,64], index: 17, kind: input, shape index: {}]
  %s18 = inlined_call_operand.vmem [shape: f32[1,64], index: 18, kind: input, shape index: {}]
  %s19 = inlined_call_operand.vmem [shape: f32[1,64], index: 19, kind: input, shape index: {}, may-alias: {3,7,11,15,19}]
  %s20 = inlined_call_operand.vmem [shape: f32[1,64], index: 20, kind: input, shape index: {}, may-alias: {4,8,12,16,20}]
  %s21 = inlined_call_operand.vmem [shape: f32[64,128], index: 21, kind: input, shape index: {}]
  %s22 = inlined_call_operand.vmem [shape: f32[1,128], index: 22, kind: input, shape index: {}]
  %s23 = inlined_call_operand.vmem [shape: f32[2,48,128], index: 23, kind: output, shape index: {}]
  %s24 = sld [smem:[#allocation0]]
  $region141: #{pitch_predictor_forward.1} parent=0
    _
  %s26 = ssub.s32 1, %s24
  %s27 = scalar_select 0, %s26, %s24
  $region1: #{pitch_predictor_forward.1} parent=0
    #allocation2 [shape = 'u8[81920]{0}', space=vmem, size = 0x14000, scoped, tag = 'input window, operand 1, single buffered']
    #allocation3 [shape = 's32[2]{0}', space=sflag, size = 0x8, scoped, tag = 'scoped memory for pitch_predictor_forward.1']
    #allocation4 [shape = 'u8[163840]{0}', space=vmem, size = 0x28000, scoped, tag = 'input window, operand 9, single buffered']
    #allocation5 [shape = 's32[1]{0}', space=sflag, size = 0x4, scoped, tag = 'scoped memory for pitch_predictor_forward.1']
    #allocation6 [shape = 'u8[163840]{0}', space=vmem, size = 0x28000, scoped, tag = 'input window, operand 13, single buffered']
    #allocation7 [shape = 'u8[163840]{0}', space=vmem, size = 0x28000, scoped, tag = 'input window, operand 17, single buffered']
    #allocation8 [shape = 's32[1]{0}', space=sflag, size = 0x4, scoped, tag = 'scoped memory for pitch_predictor_forward.1']
    %28 = vsyncpa [#allocation3], 0
    %29 = vsyncpa [#allocation5], 0
    %30 = vsyncpa [#allocation8], 0
    loop: start=0, step=1, limit=8
    $region2: #{pitch_predictor_forward.1} parent=1 // loop_pre_header
      _
    $region3: #{pitch_predictor_forward.1} parent=1 // loop_header
      %s32 = sphi 0, %s36
      %p33 = scmp.ge.s32.totalorder %s32, 8
      %s39 = sphi 0, %s51
      %s40 = sphi 0, %s47
      %s41 = sphi 0, %s39
      %s42 = sphi 0, %s40
      %s43 = sphi 0, %s41
      %s44 = sphi 0, %s42
      %s54 = sphi 0, %s56
      %s57 = sphi 0, %s54
      %s58 = sphi 0, %s57
      %s74 = sphi 0, %s58
      %s78 = sphi 0, %s78
      %s80 = sphi 0, %s78
      %s81 = sphi 0, %s80
      %s95 = sphi 0, %s81
      %s99 = sphi 0, %s99
      %s101 = sphi 0, %s99
      %s102 = sphi 0, %s101
      %s116 = sphi 0, %s102
      %s120 = sphi 0, %s120
      %s122 = sphi 0, %s120
      %s123 = sphi 0, %s122
      %s137 = sphi 0, %s123
      %s141 = sphi 0, %s141
      %s143 = sphi 0, %s141
      %s144 = sphi 0, %s143
      %s158 = sphi 0, %s144
      %s162 = sphi 0, %s162
      %s164 = sphi 0, %s162
      %s165 = sphi 0, %s164
      %s179 = sphi 0, %s165
      %s183 = sphi 0, %s183
      %s185 = sphi 0, %s183
      %s186 = sphi 0, %s185
      %s200 = sphi 0, %s186
      %s204 = sphi 0, %s204
      %s206 = sphi 0, %s204
      %s207 = sphi 0, %s206
      %s221 = sphi 0, %s207
      %s225 = sphi 0, %s225
      %s227 = sphi 0, %s225
      %s228 = sphi 0, %s227
      %s242 = sphi 0, %s228
      %s246 = sphi 0, %s246
      %s248 = sphi 0, %s246
      %s249 = sphi 0, %s248
      %s263 = sphi 0, %s249
      %s267 = sphi 0, %s267
      %s269 = sphi 0, %s267
      %s270 = sphi 0, %s269
      %s284 = sphi 0, %s270
      %s288 = sphi 0, %s288
      %s290 = sphi 0, %s288
      %s291 = sphi 0, %s290
      %s305 = sphi 0, %s291
      %s309 = sphi 0, %s309
      %s311 = sphi 0, %s309
      %s312 = sphi 0, %s311
      %s326 = sphi 0, %s312
      %s330 = sphi 0, %s330
      %s332 = sphi 0, %s330
      %s333 = sphi 0, %s332
      %s347 = sphi 0, %s333
      %s351 = sphi 0, %s351
      %s353 = sphi 0, %s351
      %s354 = sphi 0, %s353
      %s368 = sphi 0, %s354
      %s372 = sphi 0, %s372
      %s374 = sphi 0, %s372
      %s375 = sphi 0, %s374
      %s389 = sphi 0, %s375
      %s393 = sphi 0, %s393
      %s395 = sphi 0, %s393
      %s396 = sphi 0, %s395
      %s410 = sphi 0, %s396
      %s414 = sphi 0, %s414
      %s416 = sphi 0, %s414
      %s417 = sphi 0, %s416
      %s431 = sphi 0, %s417
      %s435 = sphi 0, %s435
      %s437 = sphi 0, %s435
      %s438 = sphi 0, %s437
      %s452 = sphi 0, %s438
      %s456 = sphi 0, %s456
      %s458 = sphi 0, %s456
      %s459 = sphi 0, %s458
      %s473 = sphi 0, %s459
      %s477 = sphi 0, %s477
      %s479 = sphi 0, %s477
      %s480 = sphi 0, %s479
      %s494 = sphi 0, %s480
      %s498 = sphi 0, %s498
      %s500 = sphi 0, %s498
      %s501 = sphi 0, %s500
      %s515 = sphi 0, %s501
      %s519 = sphi 0, %s519
      %s521 = sphi 0, %s519
      %s522 = sphi 0, %s521
      %s536 = sphi 0, %s522
      %s544 = sphi 0, %s546
      %s547 = sphi 0, %s544
      %s548 = sphi 0, %s547
      %s564 = sphi 0, %s548
    $region4: #{pitch_predictor_forward.1} parent=1 // loop_header_branch
      %35 = sbr.rel (%p33) target = $region8
    $region5: #{pitch_predictor_forward.1} parent=1 // loop_body
      %s37 = ssub.s32 %s32, 1
      %s38 = ssub.s32 %s32, 2
      %s45 = sadd.s32 1, %s40
      %p46 = scmp.ge.s32.totalorder %s45, 3
      %s47 = scalar_select %p46, 0, %s45
      %s48 = sadd.s32 1, %s39
      %s49 = scalar_select %p46, %s48, %s39
      %p50 = scmp.ge.s32.totalorder %s49, 2
      %s51 = scalar_select %p50, 0, %s49
      %s52 = ssub.s32 %s39, %s51
      %p53 = scmp.eq.s32.totalorder %s52, 0
      %s55 = sadd.s32 %s54, 1
      %s56 = scalar_select %p53, %s54, %s55
      %p59 = pneg %p53
      %p60 = scmp.eq.s32.totalorder %s32, 5
      %p61 = por %p59, %p60
      %p62 = scmp.ne.s32.totalorder %s54, %s57
      %p63 = scmp.eq.s32.totalorder %s32, 0
      %p64 = por %p62, %p63
      %p65 = scmp.ne.s32.totalorder %s54, %s57
      %p66 = scmp.eq.s32.totalorder %s37, 5
      %p67 = por %p65, %p66
      %p68 = scmp.ne.s32.totalorder %s57, %s58
      %p69 = scmp.eq.s32.totalorder %s37, 0
      %p70 = por %p68, %p69
      %p71 = scmp.ne.s32.totalorder %s57, %s58
      %p72 = scmp.eq.s32.totalorder %s38, 5
      %p73 = por %p71, %p72
      %p75 = scmp.ne.s32.totalorder %s58, %s74
      %p76 = scmp.eq.s32.totalorder %s38, 0
      %p77 = por %p75, %p76
      %s79 = sadd.s32 %s78, 1
      %p82 = scmp.eq.s32.totalorder %s32, 5
      %p83 = scmp.ne.s32.totalorder %s78, %s80
      %p84 = scmp.eq.s32.totalorder %s32, 0
      %p85 = por %p83, %p84
      %p86 = scmp.ne.s32.totalorder %s78, %s80
      %p87 = scmp.eq.s32.totalorder %s37, 5
      %p88 = por %p86, %p87
      %p89 = scmp.ne.s32.totalorder %s80, %s81
      %p90 = scmp.eq.s32.totalorder %s37, 0
      %p91 = por %p89, %p90
      %p92 = scmp.ne.s32.totalorder %s80, %s81
      %p93 = scmp.eq.s32.totalorder %s38, 5
      %p94 = por %p92, %p93
      %p96 = scmp.ne.s32.totalorder %s81, %s95
      %p97 = scmp.eq.s32.totalorder %s38, 0
      %p98 = por %p96, %p97
      %s100 = sadd.s32 %s99, 1
      %p103 = scmp.eq.s32.totalorder %s32, 5
      %p104 = scmp.ne.s32.totalorder %s99, %s101
      %p105 = scmp.eq.s32.totalorder %s32, 0
      %p106 = por %p104, %p105
      %p107 = scmp.ne.s32.totalorder %s99, %s101
      %p108 = scmp.eq.s32.totalorder %s37, 5
      %p109 = por %p107, %p108
      %p110 = scmp.ne.s32.totalorder %s101, %s102
      %p111 = scmp.eq.s32.totalorder %s37, 0
      %p112 = por %p110, %p111
      %p113 = scmp.ne.s32.totalorder %s101, %s102
      %p114 = scmp.eq.s32.totalorder %s38, 5
      %p115 = por %p113, %p114
      %p117 = scmp.ne.s32.totalorder %s102, %s116
      %p118 = scmp.eq.s32.totalorder %s38, 0
      %p119 = por %p117, %p118
      %s121 = sadd.s32 %s120, 1
      %p124 = scmp.eq.s32.totalorder %s32, 5
      %p125 = scmp.ne.s32.totalorder %s120, %s122
      %p126 = scmp.eq.s32.totalorder %s32, 0
      %p127 = por %p125, %p126
      %p128 = scmp.ne.s32.totalorder %s120, %s122
      %p129 = scmp.eq.s32.totalorder %s37, 5
      %p130 = por %p128, %p129
      %p131 = scmp.ne.s32.totalorder %s122, %s123
      %p132 = scmp.eq.s32.totalorder %s37, 0
      %p133 = por %p131, %p132
      %p134 = scmp.ne.s32.totalorder %s122, %s123
      %p135 = scmp.eq.s32.totalorder %s38, 5
      %p136 = por %p134, %p135
      %p138 = scmp.ne.s32.totalorder %s123, %s137
      %p139 = scmp.eq.s32.totalorder %s38, 0
      %p140 = por %p138, %p139
      %s142 = sadd.s32 %s141, 1
      %p145 = scmp.eq.s32.totalorder %s32, 5
      %p146 = scmp.ne.s32.totalorder %s141, %s143
      %p147 = scmp.eq.s32.totalorder %s32, 0
      %p148 = por %p146, %p147
      %p149 = scmp.ne.s32.totalorder %s141, %s143
      %p150 = scmp.eq.s32.totalorder %s37, 5
      %p151 = por %p149, %p150
      %p152 = scmp.ne.s32.totalorder %s143, %s144
      %p153 = scmp.eq.s32.totalorder %s37, 0
      %p154 = por %p152, %p153
      %p155 = scmp.ne.s32.totalorder %s143, %s144
      %p156 = scmp.eq.s32.totalorder %s38, 5
      %p157 = por %p155, %p156
      %p159 = scmp.ne.s32.totalorder %s144, %s158
      %p160 = scmp.eq.s32.totalorder %s38, 0
      %p161 = por %p159, %p160
      %s163 = sadd.s32 %s162, 1
      %p166 = scmp.eq.s32.totalorder %s32, 5
      %p167 = scmp.ne.s32.totalorder %s162, %s164
      %p168 = scmp.eq.s32.totalorder %s32, 0
      %p169 = por %p167, %p168
      %p170 = scmp.ne.s32.totalorder %s162, %s164
      %p171 = scmp.eq.s32.totalorder %s37, 5
      %p172 = por %p170, %p171
      %p173 = scmp.ne.s32.totalorder %s164, %s165
      %p174 = scmp.eq.s32.totalorder %s37, 0
      %p175 = por %p173, %p174
      %p176 = scmp.ne.s32.totalorder %s164, %s165
      %p177 = scmp.eq.s32.totalorder %s38, 5
      %p178 = por %p176, %p177
      %p180 = scmp.ne.s32.totalorder %s165, %s179
      %p181 = scmp.eq.s32.totalorder %s38, 0
      %p182 = por %p180, %p181
      %s184 = sadd.s32 %s183, 1
      %p187 = scmp.eq.s32.totalorder %s32, 5
      %p188 = scmp.ne.s32.totalorder %s183, %s185
      %p189 = scmp.eq.s32.totalorder %s32, 0
      %p190 = por %p188, %p189
      %p191 = scmp.ne.s32.totalorder %s183, %s185
      %p192 = scmp.eq.s32.totalorder %s37, 5
      %p193 = por %p191, %p192
      %p194 = scmp.ne.s32.totalorder %s185, %s186
      %p195 = scmp.eq.s32.totalorder %s37, 0
      %p196 = por %p194, %p195
      %p197 = scmp.ne.s32.totalorder %s185, %s186
      %p198 = scmp.eq.s32.totalorder %s38, 5
      %p199 = por %p197, %p198
      %p201 = scmp.ne.s32.totalorder %s186, %s200
      %p202 = scmp.eq.s32.totalorder %s38, 0
      %p203 = por %p201, %p202
      %s205 = sadd.s32 %s204, 1
      %p208 = scmp.eq.s32.totalorder %s32, 5
      %p209 = scmp.ne.s32.totalorder %s204, %s206
      %p210 = scmp.eq.s32.totalorder %s32, 0
      %p211 = por %p209, %p210
      %p212 = scmp.ne.s32.totalorder %s204, %s206
      %p213 = scmp.eq.s32.totalorder %s37, 5
      %p214 = por %p212, %p213
      %p215 = scmp.ne.s32.totalorder %s206, %s207
      %p216 = scmp.eq.s32.totalorder %s37, 0
      %p217 = por %p215, %p216
      %p218 = scmp.ne.s32.totalorder %s206, %s207
      %p219 = scmp.eq.s32.totalorder %s38, 5
      %p220 = por %p218, %p219
      %p222 = scmp.ne.s32.totalorder %s207, %s221
      %p223 = scmp.eq.s32.totalorder %s38, 0
      %p224 = por %p222, %p223
      %s226 = sadd.s32 %s225, 1
      %p229 = scmp.eq.s32.totalorder %s32, 5
      %p230 = scmp.ne.s32.totalorder %s225, %s227
      %p231 = scmp.eq.s32.totalorder %s32, 0
      %p232 = por %p230, %p231
      %p233 = scmp.ne.s32.totalorder %s225, %s227
      %p234 = scmp.eq.s32.totalorder %s37, 5
      %p235 = por %p233, %p234
      %p236 = scmp.ne.s32.totalorder %s227, %s228
      %p237 = scmp.eq.s32.totalorder %s37, 0
      %p238 = por %p236, %p237
      %p239 = scmp.ne.s32.totalorder %s227, %s228
      %p240 = scmp.eq.s32.totalorder %s38, 5
      %p241 = por %p239, %p240
      %p243 = scmp.ne.s32.totalorder %s228, %s242
      %p244 = scmp.eq.s32.totalorder %s38, 0
      %p245 = por %p243, %p244
      %s247 = sadd.s32 %s246, 1
      %p250 = scmp.eq.s32.totalorder %s32, 5
      %p251 = scmp.ne.s32.totalorder %s246, %s248
      %p252 = scmp.eq.s32.totalorder %s32, 0
      %p253 = por %p251, %p252
      %p254 = scmp.ne.s32.totalorder %s246, %s248
      %p255 = scmp.eq.s32.totalorder %s37, 5
      %p256 = por %p254, %p255
      %p257 = scmp.ne.s32.totalorder %s248, %s249
      %p258 = scmp.eq.s32.totalorder %s37, 0
      %p259 = por %p257, %p258
      %p260 = scmp.ne.s32.totalorder %s248, %s249
      %p261 = scmp.eq.s32.totalorder %s38, 5
      %p262 = por %p260, %p261
      %p264 = scmp.ne.s32.totalorder %s249, %s263
      %p265 = scmp.eq.s32.totalorder %s38, 0
      %p266 = por %p264, %p265
      %s268 = sadd.s32 %s267, 1
      %p271 = scmp.eq.s32.totalorder %s32, 5
      %p272 = scmp.ne.s32.totalorder %s267, %s269
      %p273 = scmp.eq.s32.totalorder %s32, 0
      %p274 = por %p272, %p273
      %p275 = scmp.ne.s32.totalorder %s267, %s269
      %p276 = scmp.eq.s32.totalorder %s37, 5
      %p277 = por %p275, %p276
      %p278 = scmp.ne.s32.totalorder %s269, %s270
      %p279 = scmp.eq.s32.totalorder %s37, 0
      %p280 = por %p278, %p279
      %p281 = scmp.ne.s32.totalorder %s269, %s270
      %p282 = scmp.eq.s32.totalorder %s38, 5
      %p283 = por %p281, %p282
      %p285 = scmp.ne.s32.totalorder %s270, %s284
      %p286 = scmp.eq.s32.totalorder %s38, 0
      %p287 = por %p285, %p286
      %s289 = sadd.s32 %s288, 1
      %p292 = scmp.eq.s32.totalorder %s32, 5
      %p293 = scmp.ne.s32.totalorder %s288, %s290
      %p294 = scmp.eq.s32.totalorder %s32, 0
      %p295 = por %p293, %p294
      %p296 = scmp.ne.s32.totalorder %s288, %s290
      %p297 = scmp.eq.s32.totalorder %s37, 5
      %p298 = por %p296, %p297
      %p299 = scmp.ne.s32.totalorder %s290, %s291
      %p300 = scmp.eq.s32.totalorder %s37, 0
      %p301 = por %p299, %p300
      %p302 = scmp.ne.s32.totalorder %s290, %s291
      %p303 = scmp.eq.s32.totalorder %s38, 5
      %p304 = por %p302, %p303
      %p306 = scmp.ne.s32.totalorder %s291, %s305
      %p307 = scmp.eq.s32.totalorder %s38, 0
      %p308 = por %p306, %p307
      %s310 = sadd.s32 %s309, 1
      %p313 = scmp.eq.s32.totalorder %s32, 5
      %p314 = scmp.ne.s32.totalorder %s309, %s311
      %p315 = scmp.eq.s32.totalorder %s32, 0
      %p316 = por %p314, %p315
      %p317 = scmp.ne.s32.totalorder %s309, %s311
      %p318 = scmp.eq.s32.totalorder %s37, 5
      %p319 = por %p317, %p318
      %p320 = scmp.ne.s32.totalorder %s311, %s312
      %p321 = scmp.eq.s32.totalorder %s37, 0
      %p322 = por %p320, %p321
      %p323 = scmp.ne.s32.totalorder %s311, %s312
      %p324 = scmp.eq.s32.totalorder %s38, 5
      %p325 = por %p323, %p324
      %p327 = scmp.ne.s32.totalorder %s312, %s326
      %p328 = scmp.eq.s32.totalorder %s38, 0
      %p329 = por %p327, %p328
      %s331 = sadd.s32 %s330, 1
      %p334 = scmp.eq.s32.totalorder %s32, 5
      %p335 = scmp.ne.s32.totalorder %s330, %s332
      %p336 = scmp.eq.s32.totalorder %s32, 0
      %p337 = por %p335, %p336
      %p338 = scmp.ne.s32.totalorder %s330, %s332
      %p339 = scmp.eq.s32.totalorder %s37, 5
      %p340 = por %p338, %p339
      %p341 = scmp.ne.s32.totalorder %s332, %s333
      %p342 = scmp.eq.s32.totalorder %s37, 0
      %p343 = por %p341, %p342
      %p344 = scmp.ne.s32.totalorder %s332, %s333
      %p345 = scmp.eq.s32.totalorder %s38, 5
      %p346 = por %p344, %p345
      %p348 = scmp.ne.s32.totalorder %s333, %s347
      %p349 = scmp.eq.s32.totalorder %s38, 0
      %p350 = por %p348, %p349
      %s352 = sadd.s32 %s351, 1
      %p355 = scmp.eq.s32.totalorder %s32, 5
      %p356 = scmp.ne.s32.totalorder %s351, %s353
      %p357 = scmp.eq.s32.totalorder %s32, 0
      %p358 = por %p356, %p357
      %p359 = scmp.ne.s32.totalorder %s351, %s353
      %p360 = scmp.eq.s32.totalorder %s37, 5
      %p361 = por %p359, %p360
      %p362 = scmp.ne.s32.totalorder %s353, %s354
      %p363 = scmp.eq.s32.totalorder %s37, 0
      %p364 = por %p362, %p363
      %p365 = scmp.ne.s32.totalorder %s353, %s354
      %p366 = scmp.eq.s32.totalorder %s38, 5
      %p367 = por %p365, %p366
      %p369 = scmp.ne.s32.totalorder %s354, %s368
      %p370 = scmp.eq.s32.totalorder %s38, 0
      %p371 = por %p369, %p370
      %s373 = sadd.s32 %s372, 1
      %p376 = scmp.eq.s32.totalorder %s32, 5
      %p377 = scmp.ne.s32.totalorder %s372, %s374
      %p378 = scmp.eq.s32.totalorder %s32, 0
      %p379 = por %p377, %p378
      %p380 = scmp.ne.s32.totalorder %s372, %s374
      %p381 = scmp.eq.s32.totalorder %s37, 5
      %p382 = por %p380, %p381
      %p383 = scmp.ne.s32.totalorder %s374, %s375
      %p384 = scmp.eq.s32.totalorder %s37, 0
      %p385 = por %p383, %p384
      %p386 = scmp.ne.s32.totalorder %s374, %s375
      %p387 = scmp.eq.s32.totalorder %s38, 5
      %p388 = por %p386, %p387
      %p390 = scmp.ne.s32.totalorder %s375, %s389
      %p391 = scmp.eq.s32.totalorder %s38, 0
      %p392 = por %p390, %p391
      %s394 = sadd.s32 %s393, 1
      %p397 = scmp.eq.s32.totalorder %s32, 5
      %p398 = scmp.ne.s32.totalorder %s393, %s395
      %p399 = scmp.eq.s32.totalorder %s32, 0
      %p400 = por %p398, %p399
      %p401 = scmp.ne.s32.totalorder %s393, %s395
      %p402 = scmp.eq.s32.totalorder %s37, 5
      %p403 = por %p401, %p402
      %p404 = scmp.ne.s32.totalorder %s395, %s396
      %p405 = scmp.eq.s32.totalorder %s37, 0
      %p406 = por %p404, %p405
      %p407 = scmp.ne.s32.totalorder %s395, %s396
      %p408 = scmp.eq.s32.totalorder %s38, 5
      %p409 = por %p407, %p408
      %p411 = scmp.ne.s32.totalorder %s396, %s410
      %p412 = scmp.eq.s32.totalorder %s38, 0
      %p413 = por %p411, %p412
      %s415 = sadd.s32 %s414, 1
      %p418 = scmp.eq.s32.totalorder %s32, 5
      %p419 = scmp.ne.s32.totalorder %s414, %s416
      %p420 = scmp.eq.s32.totalorder %s32, 0
      %p421 = por %p419, %p420
      %p422 = scmp.ne.s32.totalorder %s414, %s416
      %p423 = scmp.eq.s32.totalorder %s37, 5
      %p424 = por %p422, %p423
      %p425 = scmp.ne.s32.totalorder %s416, %s417
      %p426 = scmp.eq.s32.totalorder %s37, 0
      %p427 = por %p425, %p426
      %p428 = scmp.ne.s32.totalorder %s416, %s417
      %p429 = scmp.eq.s32.totalorder %s38, 5
      %p430 = por %p428, %p429
      %p432 = scmp.ne.s32.totalorder %s417, %s431
      %p433 = scmp.eq.s32.totalorder %s38, 0
      %p434 = por %p432, %p433
      %s436 = sadd.s32 %s435, 1
      %p439 = scmp.eq.s32.totalorder %s32, 5
      %p440 = scmp.ne.s32.totalorder %s435, %s437
      %p441 = scmp.eq.s32.totalorder %s32, 0
      %p442 = por %p440, %p441
      %p443 = scmp.ne.s32.totalorder %s435, %s437
      %p444 = scmp.eq.s32.totalorder %s37, 5
      %p445 = por %p443, %p444
      %p446 = scmp.ne.s32.totalorder %s437, %s438
      %p447 = scmp.eq.s32.totalorder %s37, 0
      %p448 = por %p446, %p447
      %p449 = scmp.ne.s32.totalorder %s437, %s438
      %p450 = scmp.eq.s32.totalorder %s38, 5
      %p451 = por %p449, %p450
      %p453 = scmp.ne.s32.totalorder %s438, %s452
      %p454 = scmp.eq.s32.totalorder %s38, 0
      %p455 = por %p453, %p454
      %s457 = sadd.s32 %s456, 1
      %p460 = scmp.eq.s32.totalorder %s32, 5
      %p461 = scmp.ne.s32.totalorder %s456, %s458
      %p462 = scmp.eq.s32.totalorder %s32, 0
      %p463 = por %p461, %p462
      %p464 = scmp.ne.s32.totalorder %s456, %s458
      %p465 = scmp.eq.s32.totalorder %s37, 5
      %p466 = por %p464, %p465
      %p467 = scmp.ne.s32.totalorder %s458, %s459
      %p468 = scmp.eq.s32.totalorder %s37, 0
      %p469 = por %p467, %p468
      %p470 = scmp.ne.s32.totalorder %s458, %s459
      %p471 = scmp.eq.s32.totalorder %s38, 5
      %p472 = por %p470, %p471
      %p474 = scmp.ne.s32.totalorder %s459, %s473
      %p475 = scmp.eq.s32.totalorder %s38, 0
      %p476 = por %p474, %p475
      %s478 = sadd.s32 %s477, 1
      %p481 = scmp.eq.s32.totalorder %s32, 5
      %p482 = scmp.ne.s32.totalorder %s477, %s479
      %p483 = scmp.eq.s32.totalorder %s32, 0
      %p484 = por %p482, %p483
      %p485 = scmp.ne.s32.totalorder %s477, %s479
      %p486 = scmp.eq.s32.totalorder %s37, 5
      %p487 = por %p485, %p486
      %p488 = scmp.ne.s32.totalorder %s479, %s480
      %p489 = scmp.eq.s32.totalorder %s37, 0
      %p490 = por %p488, %p489
      %p491 = scmp.ne.s32.totalorder %s479, %s480
      %p492 = scmp.eq.s32.totalorder %s38, 5
      %p493 = por %p491, %p492
      %p495 = scmp.ne.s32.totalorder %s480, %s494
      %p496 = scmp.eq.s32.totalorder %s38, 0
      %p497 = por %p495, %p496
      %s499 = sadd.s32 %s498, 1
      %p502 = scmp.eq.s32.totalorder %s32, 5
      %p503 = scmp.ne.s32.totalorder %s498, %s500
      %p504 = scmp.eq.s32.totalorder %s32, 0
      %p505 = por %p503, %p504
      %p506 = scmp.ne.s32.totalorder %s498, %s500
      %p507 = scmp.eq.s32.totalorder %s37, 5
      %p508 = por %p506, %p507
      %p509 = scmp.ne.s32.totalorder %s500, %s501
      %p510 = scmp.eq.s32.totalorder %s37, 0
      %p511 = por %p509, %p510
      %p512 = scmp.ne.s32.totalorder %s500, %s501
      %p513 = scmp.eq.s32.totalorder %s38, 5
      %p514 = por %p512, %p513
      %p516 = scmp.ne.s32.totalorder %s501, %s515
      %p517 = scmp.eq.s32.totalorder %s38, 0
      %p518 = por %p516, %p517
      %s520 = sadd.s32 %s519, 1
      %p523 = scmp.eq.s32.totalorder %s32, 5
      %p524 = scmp.ne.s32.totalorder %s519, %s521
      %p525 = scmp.eq.s32.totalorder %s32, 0
      %p526 = por %p524, %p525
      %p527 = scmp.ne.s32.totalorder %s519, %s521
      %p528 = scmp.eq.s32.totalorder %s37, 5
      %p529 = por %p527, %p528
      %p530 = scmp.ne.s32.totalorder %s521, %s522
      %p531 = scmp.eq.s32.totalorder %s37, 0
      %p532 = por %p530, %p531
      %p533 = scmp.ne.s32.totalorder %s521, %s522
      %p534 = scmp.eq.s32.totalorder %s38, 5
      %p535 = por %p533, %p534
      %p537 = scmp.ne.s32.totalorder %s522, %s536
      %p538 = scmp.eq.s32.totalorder %s38, 0
      %p539 = por %p537, %p538
      %s540 = ssub.s32 %s39, %s51
      %s541 = ssub.s32 %s40, %s47
      %s542 = sor.u32 %s540, %s541
      %p543 = scmp.eq.s32.totalorder %s542, 0
      %s545 = sadd.s32 %s544, 1
      %s546 = scalar_select %p543, %s544, %s545
      %p549 = pneg %p543
      %p550 = scmp.eq.s32.totalorder %s32, 5
      %p551 = por %p549, %p550
      %p552 = scmp.ne.s32.totalorder %s544, %s547
      %p553 = scmp.eq.s32.totalorder %s32, 0
      %p554 = por %p552, %p553
      %p555 = scmp.ne.s32.totalorder %s544, %s547
      %p556 = scmp.eq.s32.totalorder %s37, 5
      %p557 = por %p555, %p556
      %p558 = scmp.ne.s32.totalorder %s547, %s548
      %p559 = scmp.eq.s32.totalorder %s37, 0
      %p560 = por %p558, %p559
      %p561 = scmp.ne.s32.totalorder %s547, %s548
      %p562 = scmp.eq.s32.totalorder %s38, 5
      %p563 = por %p561, %p562
      %p565 = scmp.ne.s32.totalorder %s548, %s564
      %p566 = scmp.eq.s32.totalorder %s38, 0
      %p567 = por %p565, %p566
      %p568 = scmp.le.s32.totalorder 1, %s32
      %p569 = scmp.lt.s32.totalorder %s32, 7
      %p570 = pnand %p568, %p569
      %p571 = pneg %p570
      // Predicated region
      $region9: #{pitch_predictor_forward.1} parent=5 // pred_check
        _
      $region10: #{pitch_predictor_forward.1} parent=5 // pred_check_branch
        %573 = sbr.rel (%p570) target = $region12
      $region11: #{pitch_predictor_forward.1} parent=5 // pred_region
        %s574 = ssub.s32 %s32, 1
        // Predicated region
        $region13: #{pitch_predictor_forward.1} parent=11 // pred_check
          %p575 = pneg %p91
        $region14: #{pitch_predictor_forward.1} parent=11 // pred_check_branch
          %577 = sbr.rel (%p575) target = $region16
        $region15: #{pitch_predictor_forward.1} parent=11 // pred_region
          %s579 = ssub.s32 2560, 2560
          %580 = vsyncadd [#allocation3], %s579
          %s581 = sshll.u32 [#allocation2], 4
          %s582 = int_to_ptr.vmem [resolvable:$true] %s581
          %587 = dma.hbm_to_vmem [thread:$0]  %s1, 2560, %s582, [#allocation3], 128, 128, 8
        $region16: #{pitch_predictor_forward.1} parent=11 // pred_fallthru
          _
        // Predicated region
        $region17: #{pitch_predictor_forward.1} parent=11 // pred_check
          %p588 = pneg %p112
        $region18: #{pitch_predictor_forward.1} parent=11 // pred_check_branch
          %590 = sbr.rel (%p588) target = $region20
        $region19: #{pitch_predictor_forward.1} parent=11 // pred_region
          _
        $region20: #{pitch_predictor_forward.1} parent=11 // pred_fallthru
          _
        // Predicated region
        $region21: #{pitch_predictor_forward.1} parent=11 // pred_check
          %p591 = pneg %p133
        $region22: #{pitch_predictor_forward.1} parent=11 // pred_check_branch
          %593 = sbr.rel (%p591) target = $region24
        $region23: #{pitch_predictor_forward.1} parent=11 // pred_region
          _
        $region24: #{pitch_predictor_forward.1} parent=11 // pred_fallthru
          _
        // Predicated region
        $region25: #{pitch_predictor_forward.1} parent=11 // pred_check
          %p594 = pneg %p154
        $region26: #{pitch_predictor_forward.1} parent=11 // pred_check_branch
          %596 = sbr.rel (%p594) target = $region28
        $region27: #{pitch_predictor_forward.1} parent=11 // pred_region
          _
        $region28: #{pitch_predictor_forward.1} parent=11 // pred_fallthru
          _
        // Predicated region
        $region29: #{pitch_predictor_forward.1} parent=11 // pred_check
          %p597 = pneg %p175
        $region30: #{pitch_predictor_forward.1} parent=11 // pred_check_branch
          %599 = sbr.rel (%p597) target = $region32
        $region31: #{pitch_predictor_forward.1} parent=11 // pred_region
          _
        $region32: #{pitch_predictor_forward.1} parent=11 // pred_fallthru
          _
        // Predicated region
        $region33: #{pitch_predictor_forward.1} parent=11 // pred_check
          %p600 = pneg %p196
        $region34: #{pitch_predictor_forward.1} parent=11 // pred_check_branch
          %602 = sbr.rel (%p600) target = $region36
        $region35: #{pitch_predictor_forward.1} parent=11 // pred_region
          _
        $region36: #{pitch_predictor_forward.1} parent=11 // pred_fallthru
          _
        // Predicated region
        $region37: #{pitch_predictor_forward.1} parent=11 // pred_check
          %p603 = pneg %p217
        $region38: #{pitch_predictor_forward.1} parent=11 // pred_check_branch
          %605 = sbr.rel (%p603) target = $region40
        $region39: #{pitch_predictor_forward.1} parent=11 // pred_region
          _
        $region40: #{pitch_predictor_forward.1} parent=11 // pred_fallthru
          _
        // Predicated region
        $region41: #{pitch_predictor_forward.1} parent=11 // pred_check
          %p606 = pneg %p238
        $region42: #{pitch_predictor_forward.1} parent=11 // pred_check_branch
          %608 = sbr.rel (%p606) target = $region44
        $region43: #{pitch_predictor_forward.1} parent=11 // pred_region
          _
        $region44: #{pitch_predictor_forward.1} parent=11 // pred_fallthru
          _
        // Predicated region
        $region45: #{pitch_predictor_forward.1} parent=11 // pred_check
          %p609 = pneg %p259
        $region46: #{pitch_predictor_forward.1} parent=11 // pred_check_branch
          %611 = sbr.rel (%p609) target = $region48
        $region47: #{pitch_predictor_forward.1} parent=11 // pred_region
          %s613 = ssub.s32 5120, 5120
          %614 = vsyncadd [#allocation5], %s613
          %s615 = sshll.u32 [#allocation4], 4
          %s616 = int_to_ptr.vmem [resolvable:$true] %s615
          %621 = dma.hbm_to_vmem [thread:$0]  %s9, 5120, %s616, [#allocation5], 128, 128, 8
        $region48: #{pitch_predictor_forward.1} parent=11 // pred_fallthru
          _
        // Predicated region
        $region49: #{pitch_predictor_forward.1} parent=11 // pred_check
          %p622 = pneg %p280
        $region50: #{pitch_predictor_forward.1} parent=11 // pred_check_branch
          %624 = sbr.rel (%p622) target = $region52
        $region51: #{pitch_predictor_forward.1} parent=11 // pred_region
          _
        $region52: #{pitch_predictor_forward.1} parent=11 // pred_fallthru
          _
        // Predicated region
        $region53: #{pitch_predictor_forward.1} parent=11 // pred_check
          %p625 = pneg %p301
        $region54: #{pitch_predictor_forward.1} parent=11 // pred_check_branch
          %627 = sbr.rel (%p625) target = $region56
        $region55: #{pitch_predictor_forward.1} parent=11 // pred_region
          _
        $region56: #{pitch_predictor_forward.1} parent=11 // pred_fallthru
          _
        // Predicated region
        $region57: #{pitch_predictor_forward.1} parent=11 // pred_check
          %p628 = pneg %p322
        $region58: #{pitch_predictor_forward.1} parent=11 // pred_check_branch
          %630 = sbr.rel (%p628) target = $region60
        $region59: #{pitch_predictor_forward.1} parent=11 // pred_region
          _
        $region60: #{pitch_predictor_forward.1} parent=11 // pred_fallthru
          _
        // Predicated region
        $region61: #{pitch_predictor_forward.1} parent=11 // pred_check
          %p631 = pneg %p343
        $region62: #{pitch_predictor_forward.1} parent=11 // pred_check_branch
          %633 = sbr.rel (%p631) target = $region64
        $region63: #{pitch_predictor_forward.1} parent=11 // pred_region
          %s635 = ssub.s32 5120, 5120
          %636 = vsyncadd [#allocation5], %s635
          %s637 = sshll.u32 [#allocation6], 4
          %s638 = int_to_ptr.vmem [resolvable:$true] %s637
          %643 = dma.hbm_to_vmem [thread:$0]  %s13, 5120, %s638, [#allocation5], 128, 128, 8
        $region64: #{pitch_predictor_forward.1} parent=11 // pred_fallthru
          _
        // Predicated region
        $region65: #{pitch_predictor_forward.1} parent=11 // pred_check
          %p644 = pneg %p364
        $region66: #{pitch_predictor_forward.1} parent=11 // pred_check_branch
          %646 = sbr.rel (%p644) target = $region68
        $region67: #{pitch_predictor_forward.1} parent=11 // pred_region
          _
        $region68: #{pitch_predictor_forward.1} parent=11 // pred_fallthru
          _
        // Predicated region
        $region69: #{pitch_predictor_forward.1} parent=11 // pred_check
          %p647 = pneg %p385
        $region70: #{pitch_predictor_forward.1} parent=11 // pred_check_branch
          %649 = sbr.rel (%p647) target = $region72
        $region71: #{pitch_predictor_forward.1} parent=11 // pred_region
          _
        $region72: #{pitch_predictor_forward.1} parent=11 // pred_fallthru
          _
        // Predicated region
        $region73: #{pitch_predictor_forward.1} parent=11 // pred_check
          %p650 = pneg %p406
        $region74: #{pitch_predictor_forward.1} parent=11 // pred_check_branch
          %652 = sbr.rel (%p650) target = $region76
        $region75: #{pitch_predictor_forward.1} parent=11 // pred_region
          _
        $region76: #{pitch_predictor_forward.1} parent=11 // pred_fallthru
          _
        // Predicated region
        $region77: #{pitch_predictor_forward.1} parent=11 // pred_check
          %p653 = pneg %p427
        $region78: #{pitch_predictor_forward.1} parent=11 // pred_check_branch
          %655 = sbr.rel (%p653) target = $region80
        $region79: #{pitch_predictor_forward.1} parent=11 // pred_region
          %s657 = ssub.s32 5120, 5120
          %658 = vsyncadd [#allocation8], %s657
          %s659 = sshll.u32 [#allocation7], 4
          %s660 = int_to_ptr.vmem [resolvable:$true] %s659
          %665 = dma.hbm_to_vmem [thread:$0]  %s17, 5120, %s660, [#allocation8], 128, 128, 8
        $region80: #{pitch_predictor_forward.1} parent=11 // pred_fallthru
          _
        // Predicated region
        $region81: #{pitch_predictor_forward.1} parent=11 // pred_check
          %p666 = pneg %p448
        $region82: #{pitch_predictor_forward.1} parent=11 // pred_check_branch
          %668 = sbr.rel (%p666) target = $region84
        $region83: #{pitch_predictor_forward.1} parent=11 // pred_region
          _
        $region84: #{pitch_predictor_forward.1} parent=11 // pred_fallthru
          _
        // Predicated region
        $region85: #{pitch_predictor_forward.1} parent=11 // pred_check
          %p669 = pneg %p469
        $region86: #{pitch_predictor_forward.1} parent=11 // pred_check_branch
          %671 = sbr.rel (%p669) target = $region88
        $region87: #{pitch_predictor_forward.1} parent=11 // pred_region
          _
        $region88: #{pitch_predictor_forward.1} parent=11 // pred_fallthru
          _
        // Predicated region
        $region89: #{pitch_predictor_forward.1} parent=11 // pred_check
          %p672 = pneg %p490
        $region90: #{pitch_predictor_forward.1} parent=11 // pred_check_branch
          %674 = sbr.rel (%p672) target = $region92
        $region91: #{pitch_predictor_forward.1} parent=11 // pred_region
          _
        $region92: #{pitch_predictor_forward.1} parent=11 // pred_fallthru
          _
        // Predicated region
        $region93: #{pitch_predictor_forward.1} parent=11 // pred_check
          %p675 = pneg %p511
        $region94: #{pitch_predictor_forward.1} parent=11 // pred_check_branch
          %677 = sbr.rel (%p675) target = $region96
        $region95: #{pitch_predictor_forward.1} parent=11 // pred_region
          _
        $region96: #{pitch_predictor_forward.1} parent=11 // pred_fallthru
          _
        // Predicated region
        $region97: #{pitch_predictor_forward.1} parent=11 // pred_check
          %p678 = pneg %p532
        $region98: #{pitch_predictor_forward.1} parent=11 // pred_check_branch
          %680 = sbr.rel (%p678) target = $region100
        $region99: #{pitch_predictor_forward.1} parent=11 // pred_region
          _
        $region100: #{pitch_predictor_forward.1} parent=11 // pred_fallthru
          _
      $region12: #{pitch_predictor_forward.1} parent=5 // pred_fallthru
        _
      %p681 = scmp.lt.s32.totalorder %s32, 6
      // Predicated region
      $region101: #{pitch_predictor_forward.1} parent=5 // pred_check
        %p682 = pneg %p681
      $region102: #{pitch_predictor_forward.1} parent=5 // pred_check_branch
        %684 = sbr.rel (%p682) target = $region104
      $region103: #{pitch_predictor_forward.1} parent=5 // pred_region
        // Predicated region
        $region105: #{pitch_predictor_forward.1} parent=103 // pred_check
          %p685 = pneg %p64
        $region106: #{pitch_predictor_forward.1} parent=103 // pred_check_branch
          %687 = sbr.rel (%p685) target = $region108
        $region107: #{pitch_predictor_forward.1} parent=103 // pred_region
          %p688 = scmp.lt.s32.totalorder %s39, 1
          %s689 = scalar_select %p688, %s39, 1
          %s690 = smul.addr %s689, 9
          %s691 = smul.addr %s690, 8
          %s692 = scalar_lea.vmem %s0, %s691
        $region108: #{pitch_predictor_forward.1} parent=103 // pred_fallthru
          _
      $region104: #{pitch_predictor_forward.1} parent=5 // pred_fallthru
        _
      %p693 = scmp.le.s32.totalorder 1, %s32
      %p694 = scmp.lt.s32.totalorder %s32, 7
      %p695 = pnand %p693, %p694
      %p696 = pneg %p695
      // Predicated region
      $region109: #{pitch_predictor_forward.1} parent=5 // pred_check
        _
      $region110: #{pitch_predictor_forward.1} parent=5 // pred_check_branch
        %698 = sbr.rel (%p695) target = $region112
      $region111: #{pitch_predictor_forward.1} parent=5 // pred_region
        %s699 = ssub.s32 %s32, 1
        // Predicated region
        $region113: #{pitch_predictor_forward.1} parent=111 // pred_check
          %p700 = pneg %p91
        $region114: #{pitch_predictor_forward.1} parent=111 // pred_check_branch
          %702 = sbr.rel (%p700) target = $region116
        $region115: #{pitch_predictor_forward.1} parent=111 // pred_region
          %703 = dma.done [#allocation3], 2560
        $region116: #{pitch_predictor_forward.1} parent=111 // pred_fallthru
          _
        // Predicated region
        $region117: #{pitch_predictor_forward.1} parent=111 // pred_check
          %p704 = pneg %p259
        $region118: #{pitch_predictor_forward.1} parent=111 // pred_check_branch
          %706 = sbr.rel (%p704) target = $region120
        $region119: #{pitch_predictor_forward.1} parent=111 // pred_region
          %707 = dma.done [#allocation5], 5120
        $region120: #{pitch_predictor_forward.1} parent=111 // pred_fallthru
          _
        // Predicated region
        $region121: #{pitch_predictor_forward.1} parent=111 // pred_check
          %p708 = pneg %p343
        $region122: #{pitch_predictor_forward.1} parent=111 // pred_check_branch
          %710 = sbr.rel (%p708) target = $region124
        $region123: #{pitch_predictor_forward.1} parent=111 // pred_region
          %711 = dma.done [#allocation5], 5120
        $region124: #{pitch_predictor_forward.1} parent=111 // pred_fallthru
          _
        // Predicated region
        $region125: #{pitch_predictor_forward.1} parent=111 // pred_check
          %p712 = pneg %p427
        $region126: #{pitch_predictor_forward.1} parent=111 // pred_check_branch
          %714 = sbr.rel (%p712) target = $region128
        $region127: #{pitch_predictor_forward.1} parent=111 // pred_region
          %715 = dma.done [#allocation8], 5120
        $region128: #{pitch_predictor_forward.1} parent=111 // pred_fallthru
          _
        %p716 = scmp.lt.s32.totalorder %s41, 1
        %s717 = scalar_select %p716, %s41, 1
        %s718 = smul.addr %s717, 9
        %s719 = smul.addr %s718, 8
        %s720 = scalar_lea.vmem %s0, %s719
        %p721 = pneg %p70
        %p722 = pneg %p67
        %p723 = pneg %p91
        %p724 = pneg %p88
        %p725 = pneg %p112
        %p726 = pneg %p109
        %p727 = pneg %p133
        %p728 = pneg %p130
        %p729 = pneg %p154
        %p730 = pneg %p151
        %p731 = pneg %p175
        %p732 = pneg %p172
        %p733 = pneg %p196
        %p734 = pneg %p193
        %p735 = pneg %p217
        %p736 = pneg %p214
        %p737 = pneg %p238
        %p738 = pneg %p235
        %p739 = pneg %p259
        %p740 = pneg %p256
        %p741 = pneg %p280
        %p742 = pneg %p277
        %p743 = pneg %p301
        %p744 = pneg %p298
        %p745 = pneg %p322
        %p746 = pneg %p319
        %p747 = pneg %p343
        %p748 = pneg %p340
        %p749 = pneg %p364
        %p750 = pneg %p361
        %p751 = pneg %p385
        %p752 = pneg %p382
        %p753 = pneg %p406
        %p754 = pneg %p403
        %p755 = pneg %p427
        %p756 = pneg %p424
        %p757 = pneg %p448
        %p758 = pneg %p445
        %p759 = pneg %p469
        %p760 = pneg %p466
        %p761 = pneg %p490
        %p762 = pneg %p487
        %p763 = pneg %p511
        %p764 = pneg %p508
        %p765 = pneg %p532
        %p766 = pneg %p529
        %p767 = pneg %p560
        %p768 = pneg %p557
        %s769 = smul.u32 2, %s42
        %p770 = scmp.lt.s32.totalorder %s41, 1
        %s771 = scalar_select %p770, %s41, 1
        %p772 = scmp.lt.s32.totalorder %s769, 5
        %s773 = scalar_select %p772, %s769, 5
        %s774 = smul.addr %s771, 6
        %s775 = sadd.s32 %s773, %s774
        %s776 = smul.addr %s775, 8
        %s777 = scalar_lea.vmem %s23, %s776
        %p778 = scmp.lt.s32.totalorder %s41, 1
        %s779 = scalar_select %p778, %s41, 1
        %s780 = smul.addr %s779, 9
        %s781 = smul.addr %s780, 8
        %s782 = scalar_lea.vmem %s0, %s781
        %s783 = smul.u32 2, %s42
        %p784 = scmp.lt.s32.totalorder %s41, 1
        %s785 = scalar_select %p784, %s41, 1
        %p786 = scmp.lt.s32.totalorder %s783, 5
        %s787 = scalar_select %p786, %s783, 5
        %s788 = smul.addr %s785, 6
        %s789 = sadd.s32 %s787, %s788
        %s790 = smul.addr %s789, 8
        %s791 = scalar_lea.vmem %s23, %s790
        %s792 = smul.u32 2, %s42
        %s793 = smul.u32 %s42, 16
        %s794 = scalar_lea.vmem %s782, %s793
        %v795 = vld [vmem:[%s794] sm:$0xff]
        %v796 = vld [vmem:[%s794 + $0x8] sm:$0xff]
        %v797 = vld [vmem:[%s794 + $0x10] sm:$0xff]
        %v798 = vld [vmem:[%s794 + $0x18] sm:$0xff]
        %v799 = vld [vmem:[%s794 + $0x20] sm:$0xff]
        %vm805 = vcmask 1046528
        %v806 = vrot.slane %v795, 1
        %v807 = vrot.slane %v796, 1
        %v808 = vsel %vm805, %v806, %v807
        %v809 = vrot.slane %v797, 1
        %v810 = vsel %vm805, %v807, %v809
        %v811 = vrot.slane %v798, 1
        %v812 = vsel %vm805, %v809, %v811
        %v813 = vrot.slane %v799, 1
        %v814 = vsel %vm805, %v811, %v813
        %815 = vrot.lane.b32.xlu0 %v808, 32
        %v816 = vpop.permute.xlu0 %815
        %817 = vrot.lane.b32.xlu0 %v810, 32
        %v818 = vpop.permute.xlu0 %817
        %819 = vrot.lane.b32.xlu0 %v812, 32
        %v820 = vpop.permute.xlu0 %819
        %821 = vrot.lane.b32.xlu0 %v814, 32
        %v822 = vpop.permute.xlu0 %821
        %823 = vrot.lane.b32.xlu0 %v813, 32
        %v824 = vpop.permute.xlu0 %823
        %vm830 = vcmask 1045504
        %v831 = vrot.slane %v795, 2
        %v832 = vrot.slane %v796, 2
        %v833 = vsel %vm830, %v831, %v832
        %v834 = vrot.slane %v797, 2
        %v835 = vsel %vm830, %v832, %v834
        %v836 = vrot.slane %v798, 2
        %v837 = vsel %vm830, %v834, %v836
        %v838 = vrot.slane %v799, 2
        %v839 = vsel %vm830, %v836, %v838
        %840 = vrot.lane.b32.xlu0 %v833, 64
        %v841 = vpop.permute.xlu0 %840
        %842 = vrot.lane.b32.xlu0 %v835, 64
        %v843 = vpop.permute.xlu0 %842
        %844 = vrot.lane.b32.xlu0 %v837, 64
        %v845 = vpop.permute.xlu0 %844
        %846 = vrot.lane.b32.xlu0 %v839, 64
        %v847 = vpop.permute.xlu0 %846
        %848 = vrot.lane.b32.xlu0 %v838, 64
        %v849 = vpop.permute.xlu0 %848
        %vm855 = vcmask 1044480
        %v856 = vrot.slane %v795, 3
        %v857 = vrot.slane %v796, 3
        %v858 = vsel %vm855, %v856, %v857
        %v859 = vrot.slane %v797, 3
        %v860 = vsel %vm855, %v857, %v859
        %v861 = vrot.slane %v798, 3
        %v862 = vsel %vm855, %v859, %v861
        %v863 = vrot.slane %v799, 3
        %v864 = vsel %vm855, %v861, %v863
        %865 = vrot.lane.b32.xlu0 %v858, 96
        %v866 = vpop.permute.xlu0 %865
        %867 = vrot.lane.b32.xlu0 %v860, 96
        %v868 = vpop.permute.xlu0 %867
        %869 = vrot.lane.b32.xlu0 %v862, 96
        %v870 = vpop.permute.xlu0 %869
        %871 = vrot.lane.b32.xlu0 %v864, 96
        %v872 = vpop.permute.xlu0 %871
        %873 = vrot.lane.b32.xlu0 %v863, 96
        %v874 = vpop.permute.xlu0 %873
        %vm880 = vcmask 1043456
        %v881 = vrot.slane %v795, 4
        %v882 = vrot.slane %v796, 4
        %v883 = vsel %vm880, %v881, %v882
        %v884 = vrot.slane %v797, 4
        %v885 = vsel %vm880, %v882, %v884
        %v886 = vrot.slane %v798, 4
        %v887 = vsel %vm880, %v884, %v886
        %v888 = vrot.slane %v799, 4
        %v889 = vsel %vm880, %v886, %v888
        %vm890 = vcmask 261120
        %v891 = vsel %vm890, %v795, %v816
        %v892 = vsel %vm890, %v796, %v818
        %v893 = vsel %vm890, %v797, %v820
        %v894 = vsel %vm890, %v798, %v822
        %v895 = vsel %vm890, %v799, %v824
        %vm896 = vcmask 523264
        %v897 = vsel %vm896, %v891, %v841
        %v898 = vsel %vm896, %v892, %v843
        %v899 = vsel %vm896, %v893, %v845
        %v900 = vsel %vm896, %v894, %v847
        %v901 = vsel %vm896, %v895, %v849
        %vm902 = vcmask 785408
        %v903 = vsel %vm902, %v897, %v866
        %v904 = vsel %vm902, %v898, %v868
        %v905 = vsel %vm902, %v899, %v870
        %v906 = vsel %vm902, %v900, %v872
        %v907 = vsel %vm902, %v901, %v874
        %v908 = vld [vmem:[#allocation2] sm:$0xff]
        %v909 = vld [vmem:[#allocation2 + $0x8] sm:$0xff]
        %v910 = vld [vmem:[#allocation2 + $0x10] sm:$0xff]
        %v911 = vld [vmem:[#allocation2 + $0x18] sm:$0xff]
        %v912 = vld [vmem:[#allocation2 + $0x20] sm:$0xff]
        %v913 = vld [vmem:[#allocation2 + $0x28] sm:$0xff]
        %v914 = vld [vmem:[#allocation2 + $0x30] sm:$0xff]
        %v915 = vld [vmem:[#allocation2 + $0x38] sm:$0xff]
        %v916 = vld [vmem:[#allocation2 + $0x40] sm:$0xff]
        %v917 = vld [vmem:[#allocation2 + $0x48] sm:$0xff]
        %v918 = vld [vmem:[#allocation2 + $0x50] sm:$0xff]
        %v919 = vld [vmem:[#allocation2 + $0x58] sm:$0xff]
        %v920 = vld [vmem:[#allocation2 + $0x60] sm:$0xff]
        %v921 = vld [vmem:[#allocation2 + $0x68] sm:$0xff]
        %v922 = vld [vmem:[#allocation2 + $0x70] sm:$0xff]
        %v923 = vld [vmem:[#allocation2 + $0x78] sm:$0xff]
        %v924 = vld [vmem:[#allocation2 + $0x80] sm:$0xff]
        %v925 = vld [vmem:[#allocation2 + $0x88] sm:$0xff]
        %v926 = vld [vmem:[#allocation2 + $0x90] sm:$0xff]
        %v927 = vld [vmem:[#allocation2 + $0x98] sm:$0xff]
        %v928 = vld [vmem:[%s2] sm:$0x1]
        %v930 = vlaneseq
        %v931 = vshrl.u32 %v930, 7
        %v932 = vsub.s32 0, %v931
        %v933 = vrot.slane %v928, %v932
        %v935 = vsel %vm890, %v883, 0
        %v937 = vsel %vm890, %v885, 0
        %v939 = vsel %vm890, %v887, 0
        %v941 = vsel %vm890, %v889, 0
        %v943 = vsel %vm890, %v888, 0
        %945 = vmatprep.subr.mxu0 0.0
        %946 = vmatpush1.msra.mxu0 %v908
        %947 = vmatprep.subr.mxu0 0.0
        %948 = vmatpush1.msra.mxu0 %v909
        %949 = vmatprep.subr.mxu0 0.0
        %950 = vmatpush1.msra.mxu0 %v910
        %951 = vmatprep.subr.mxu0 0.0
        %952 = vmatpush1.msra.mxu0 %v911
        %953 = vmatprep.subr.mxu0 0.0
        %954 = vmatpush1.msra.mxu0 %v912
        %955 = vmatprep.subr.mxu0 0.0
        %956 = vmatpush1.msra.mxu0 %v913
        %957 = vmatprep.subr.mxu0 0.0
        %958 = vmatpush1.msra.mxu0 %v914
        %959 = vmatprep.subr.mxu0 0.0
        %960 = vmatpush1.msra.mxu0 %v915
        %961 = vmatprep.subr.mxu0 0.0
        %962 = vmatpush1.msra.mxu0 %v916
        %963 = vmatprep.subr.mxu0 0.0
        %964 = vmatpush1.msra.mxu0 %v917
        %965 = vmatprep.subr.mxu0 0.0
        %966 = vmatpush1.msra.mxu0 %v918
        %967 = vmatprep.subr.mxu0 0.0
        %968 = vmatpush1.msra.mxu0 %v919
        %969 = vmatprep.subr.mxu0 0.0
        %970 = vmatpush1.msra.mxu0 %v920
        %971 = vmatprep.subr.mxu0 0.0
        %972 = vmatpush1.msra.mxu0 %v921
        %973 = vmatprep.subr.mxu0 0.0
        %974 = vmatpush1.msra.mxu0 %v922
        %975 = vmatprep.subr.mxu0 0.0
        %976 = vmatpush1.msra.mxu0 %v923
        %977 = vmatprep.subr.mxu0 0.0
        %978 = vmatpush1.msra.mxu0 %v924
        %979 = vmatprep.subr.mxu0 0.0
        %980 = vmatpush1.msra.mxu0 %v925
        %981 = vmatprep.subr.mxu0 0.0
        %982 = vmatpush1.msra.mxu0 %v926
        %983 = vmatprep.subr.mxu0 0.0
        %984 = vmatpush1.msra.mxu0 %v927
        %985 = vmatprep.subr.mxu0 0.0
        %986 = vmatpush1.msra.mxu0 0.0
        %987 = vmatprep.subr.mxu0 0.0
        %988 = vmatpush1.msra.mxu0 0.0
        %989 = vmatprep.subr.mxu0 0.0
        %990 = vmatpush1.msra.mxu0 0.0
        %991 = vmatprep.subr.mxu0 0.0
        %992 = vmatpush1.msra.mxu0 0.0
        %993 = vmatprep.subr.mxu0 0.0
        %994 = vmatpush1.msra.mxu0 0.0
        %995 = vmatprep.subr.mxu0 0.0
        %996 = vmatpush1.msra.mxu0 0.0
        %997 = vmatprep.subr.mxu0 0.0
        %998 = vmatpush1.msra.mxu0 0.0
        %999 = vmatprep.subr.mxu0 0.0
        %1000 = vmatpush1.msra.mxu0 0.0
        %1001 = vmatprep.subr.mxu0 0.0
        %1002 = vmatpush1.msra.mxu0 0.0
        %1003 = vmatprep.subr.mxu0 0.0
        %1004 = vmatpush1.msra.mxu0 0.0
        %1005 = vmatprep.subr.mxu0 0.0
        %1006 = vmatpush1.msra.mxu0 0.0
        %1007 = vmatprep.subr.mxu0 0.0
        %1008 = vmatpush1.msra.mxu0 0.0
        %1009 = vmatprep.mubr.f32.mxu0 %v935
        %1010 = vmatmul.mubr.f32.gmra.mrb[0].mxu0 %v903
        %v1011 = vpop.f32.mrb[0].mxu0
        %v1012 = vadd.f32 %v933, %v1011
        %v1013 = vpop.f32.mrb[0].mxu0
        %1014 = vmatprep.mubr.f32.mxu0 %v937
        %1015 = vmatmul.mubr.f32.gmra.mrb[0].mxu0 %v904
        %v1016 = vpop.f32.mrb[0].mxu0
        %v1017 = vadd.f32 %v933, %v1016
        %v1018 = vpop.f32.mrb[0].mxu0
        %1019 = vmatprep.mubr.f32.mxu0 %v939
        %1020 = vmatmul.mubr.f32.gmra.mrb[0].mxu0 %v905
        %v1021 = vpop.f32.mrb[0].mxu0
        %v1022 = vadd.f32 %v933, %v1021
        %v1023 = vpop.f32.mrb[0].mxu0
        %1024 = vmatprep.mubr.f32.mxu0 %v941
        %1025 = vmatmul.mubr.f32.gmra.mrb[0].mxu0 %v906
        %v1026 = vpop.f32.mrb[0].mxu0
        %v1027 = vadd.f32 %v933, %v1026
        %v1028 = vpop.f32.mrb[0].mxu0
        %1029 = vmatprep.mubr.f32.mxu0 %v943
        %1030 = vmatmul.mubr.f32.gmra.mrb[0].mxu0 %v907
        %v1031 = vpop.f32.mrb[0].mxu0
        %v1032 = vadd.f32 %v933, %v1031
        %v1033 = vpop.f32.mrb[0].mxu0
        %1034 = vdwg.mxu0
        %v1035 = vmax.f32 %v1012, 0.0
        %v1036 = vmax.f32 %v1017, 0.0
        %v1037 = vmax.f32 %v1022, 0.0
        %v1038 = vmax.f32 %v1027, 0.0
        %v1039 = vmax.f32 %v1032, 0.0
        %v1040 = vsel %vm896, %v1035, 0.0
        %1041 = vadd.xlane.f32.xlu0 %v1040
        %v1042 = vpop.xlane.xlu0 %1041
        %v1043 = vsel %vm896, %v1036, 0.0
        %1044 = vadd.xlane.f32.xlu0 %v1043
        %v1045 = vpop.xlane.xlu0 %1044
        %v1046 = vsel %vm896, %v1037, 0.0
        %1047 = vadd.xlane.f32.xlu0 %v1046
        %v1048 = vpop.xlane.xlu0 %1047
        %v1049 = vsel %vm896, %v1038, 0.0
        %1050 = vadd.xlane.f32.xlu0 %v1049
        %v1051 = vpop.xlane.xlu0 %1050
        %vm1052 = vcmask 519168
        %v1053 = vsel %vm1052, %v1039, 0.0
        %1054 = vadd.xlane.f32.xlu0 %v1053
        %v1055 = vpop.xlane.xlu0 %1054
        %v1056 = vrcp.pop 64.0
        %v1057 = vmul.f32 %v1042, %v1056
        %v1058 = vmul.f32 %v1045, %v1056
        %v1059 = vmul.f32 %v1048, %v1056
        %v1060 = vmul.f32 %v1051, %v1056
        %v1061 = vmul.f32 %v1055, %v1056
        %v1062 = vsub.f32 %v1035, %v1057
        %v1063 = vsub.f32 %v1036, %v1058
        %v1064 = vsub.f32 %v1037, %v1059
        %v1065 = vsub.f32 %v1038, %v1060
        %v1066 = vsub.f32 %v1039, %v1061
        %v1067 = vmul.f32 %v1062, %v1062
        %v1068 = vmul.f32 %v1063, %v1063
        %v1069 = vmul.f32 %v1064, %v1064
        %v1070 = vmul.f32 %v1065, %v1065
        %v1071 = vmul.f32 %v1066, %v1066
        %v1072 = vsel %vm896, %v1067, 0.0
        %1073 = vadd.xlane.f32.xlu0 %v1072
        %v1074 = vpop.xlane.xlu0 %1073
        %v1075 = vsel %vm896, %v1068, 0.0
        %1076 = vadd.xlane.f32.xlu0 %v1075
        %v1077 = vpop.xlane.xlu0 %1076
        %v1078 = vsel %vm896, %v1069, 0.0
        %1079 = vadd.xlane.f32.xlu0 %v1078
        %v1080 = vpop.xlane.xlu0 %1079
        %v1081 = vsel %vm896, %v1070, 0.0
        %1082 = vadd.xlane.f32.xlu0 %v1081
        %v1083 = vpop.xlane.xlu0 %1082
        %v1084 = vsel %vm1052, %v1071, 0.0
        %1085 = vadd.xlane.f32.xlu0 %v1084
        %v1086 = vpop.xlane.xlu0 %1085
        %v1087 = vmul.f32 %v1074, %v1056
        %v1088 = vmul.f32 %v1077, %v1056
        %v1089 = vmul.f32 %v1080, %v1056
        %v1090 = vmul.f32 %v1083, %v1056
        %v1091 = vmul.f32 %v1086, %v1056
        %v1092 = vadd.f32 %v1087, 1e-05
        %v1093 = vadd.f32 %v1088, 1e-05
        %v1094 = vadd.f32 %v1089, 1e-05
        %v1095 = vadd.f32 %v1090, 1e-05
        %v1096 = vadd.f32 %v1091, 1e-05
        %v1097 = vrsqrt.pop %v1092
        %v1098 = vrsqrt.pop %v1093
        %v1099 = vrsqrt.pop %v1094
        %v1100 = vrsqrt.pop %v1095
        %v1101 = vrsqrt.pop %v1096
        %v1102 = vmul.f32 %v1062, %v1097
        %v1103 = vmul.f32 %v1063, %v1098
        %v1104 = vmul.f32 %v1064, %v1099
        %v1105 = vmul.f32 %v1065, %v1100
        %v1106 = vmul.f32 %v1066, %v1101
        %v1107 = vld [vmem:[%s3] sm:$0x1]
        %v1109 = vlaneseq
        %v1110 = vshrl.u32 %v1109, 7
        %v1111 = vsub.s32 0, %v1110
        %v1112 = vrot.slane %v1107, %v1111
        %v1114 = vmul.f32 %v1102, %v1112
        %v1115 = vmul.f32 %v1103, %v1112
        %v1116 = vmul.f32 %v1104, %v1112
        %v1117 = vmul.f32 %v1105, %v1112
        %v1118 = vmul.f32 %v1106, %v1112
        %v1119 = vld [vmem:[%s4] sm:$0x1]
        %v1121 = vlaneseq
        %v1122 = vshrl.u32 %v1121, 7
        %v1123 = vsub.s32 0, %v1122
        %v1124 = vrot.slane %v1119, %v1123
        %v1126 = vadd.f32 %v1114, %v1124
        %v1127 = vadd.f32 %v1115, %v1124
        %v1128 = vadd.f32 %v1116, %v1124
        %v1129 = vadd.f32 %v1117, %v1124
        %v1130 = vadd.f32 %v1118, %v1124
        %v1131 = vlaneseq
        %v1132 = vshrl.u32 %v1131, 7
        %v1133 = vadd.s32 %v1132, 8
        %v1134 = vadd.s32 %v1132, 16
        %v1135 = vadd.s32 %v1132, 24
        %v1136 = vadd.s32 %v1132, 32
        %s1137 = ssub.s32 %s793, 10
        %v1138 = vstv %s1137
        %v1139 = vadd.s32 %v1138, %v1132
        %v1140 = vadd.s32 %v1138, %v1133
        %v1141 = vadd.s32 %v1138, %v1134
        %v1142 = vadd.s32 %v1138, %v1135
        %v1143 = vadd.s32 %v1138, %v1136
        %vm1144 = vcmp.ge.s32.totalorder %v1139, 0
        %vm1145 = vcmp.ge.s32.totalorder %v1140, 0
        %vm1146 = vcmp.ge.s32.totalorder %v1141, 0
        %vm1147 = vcmp.ge.s32.totalorder %v1142, 0
        %vm1148 = vcmp.ge.s32.totalorder %v1143, 0
        %vm1149 = vcmp.lt.s32.totalorder %v1139, 40
        %vm1150 = vcmp.lt.s32.totalorder %v1140, 40
        %vm1151 = vcmp.lt.s32.totalorder %v1141, 40
        %vm1152 = vcmp.lt.s32.totalorder %v1142, 40
        %vm1153 = vcmp.lt.s32.totalorder %v1143, 40
        %vm1154 = vmand %vm1144, %vm1149
        %vm1155 = vmand %vm1145, %vm1150
        %vm1156 = vmand %vm1146, %vm1151
        %vm1157 = vmand %vm1147, %vm1152
        %vm1158 = vmand %vm1148, %vm1153
        %v1159 = vsel %vm1154, 1, 0
        %v1160 = vsel %vm1155, 1, 0
        %v1161 = vsel %vm1156, 1, 0
        %v1162 = vsel %vm1157, 1, 0
        %v1163 = vsel %vm1158, 1, 0
        %vm1164 = vcmp.eq.s32.totalorder %v1159, 1
        %vm1165 = vcmp.eq.s32.totalorder %v1160, 1
        %vm1166 = vcmp.eq.s32.totalorder %v1161, 1
        %vm1167 = vcmp.eq.s32.totalorder %v1162, 1
        %vm1168 = vcmp.eq.s32.totalorder %v1163, 1
        %v1169 = vsel %vm1164, %v1126, 0.0
        %v1170 = vsel %vm1165, %v1127, 0.0
        %v1171 = vsel %vm1166, %v1128, 0.0
        %v1172 = vsel %vm1167, %v1129, 0.0
        %v1173 = vsel %vm1168, %v1130, 0.0
        %v1179 = vrot.slane %v1169, 1
        %v1180 = vrot.slane %v1170, 1
        %v1181 = vsel %vm805, %v1179, %v1180
        %v1182 = vrot.slane %v1171, 1
        %v1183 = vsel %vm805, %v1180, %v1182
        %v1184 = vrot.slane %v1172, 1
        %v1185 = vsel %vm805, %v1182, %v1184
        %v1186 = vrot.slane %v1173, 1
        %v1187 = vsel %vm805, %v1184, %v1186
        %1188 = vrot.lane.b32.xlu0 %v1181, 64
        %v1189 = vpop.permute.xlu0 %1188
        %1190 = vrot.lane.b32.xlu0 %v1183, 64
        %v1191 = vpop.permute.xlu0 %1190
        %1192 = vrot.lane.b32.xlu0 %v1185, 64
        %v1193 = vpop.permute.xlu0 %1192
        %1194 = vrot.lane.b32.xlu0 %v1187, 64
        %v1195 = vpop.permute.xlu0 %1194
        %v1200 = vrot.slane %v1169, 2
        %v1201 = vrot.slane %v1170, 2
        %v1202 = vsel %vm830, %v1200, %v1201
        %v1203 = vrot.slane %v1171, 2
        %v1204 = vsel %vm830, %v1201, %v1203
        %v1205 = vrot.slane %v1172, 2
        %v1206 = vsel %vm830, %v1203, %v1205
        %v1207 = vrot.slane %v1173, 2
        %v1208 = vsel %vm830, %v1205, %v1207
        %v1213 = vrot.slane %v1169, 3
        %v1214 = vrot.slane %v1170, 3
        %v1215 = vsel %vm855, %v1213, %v1214
        %v1216 = vrot.slane %v1171, 3
        %v1217 = vsel %vm855, %v1214, %v1216
        %v1218 = vrot.slane %v1172, 3
        %v1219 = vsel %vm855, %v1216, %v1218
        %v1220 = vrot.slane %v1173, 3
        %v1221 = vsel %vm855, %v1218, %v1220
        %1222 = vrot.lane.b32.xlu0 %v1215, 64
        %v1223 = vpop.permute.xlu0 %1222
        %1224 = vrot.lane.b32.xlu0 %v1217, 64
        %v1225 = vpop.permute.xlu0 %1224
        %1226 = vrot.lane.b32.xlu0 %v1219, 64
        %v1227 = vpop.permute.xlu0 %1226
        %1228 = vrot.lane.b32.xlu0 %v1221, 64
        %v1229 = vpop.permute.xlu0 %1228
        %v1234 = vrot.slane %v1169, 4
        %v1235 = vrot.slane %v1170, 4
        %v1236 = vsel %vm880, %v1234, %v1235
        %v1237 = vrot.slane %v1171, 4
        %v1238 = vsel %vm880, %v1235, %v1237
        %v1239 = vrot.slane %v1172, 4
        %v1240 = vsel %vm880, %v1237, %v1239
        %v1241 = vrot.slane %v1173, 4
        %v1242 = vsel %vm880, %v1239, %v1241
        %v1243 = vsel %vm896, %v1169, %v1189
        %v1244 = vsel %vm896, %v1170, %v1191
        %v1245 = vsel %vm896, %v1171, %v1193
        %v1246 = vsel %vm896, %v1172, %v1195
        %v1247 = vsel %vm896, %v1202, %v1223
        %v1248 = vsel %vm896, %v1204, %v1225
        %v1249 = vsel %vm896, %v1206, %v1227
        %v1250 = vsel %vm896, %v1208, %v1229
        %v1251 = vld [vmem:[%s5] sm:$0xff]
        %v1252 = vld [vmem:[%s5 + $0x8] sm:$0xff]
        %v1253 = vld [vmem:[%s5 + $0x10] sm:$0xff]
        %v1254 = vld [vmem:[%s5 + $0x18] sm:$0xff]
        %v1255 = vld [vmem:[%s5 + $0x20] sm:$0xff]
        %v1256 = vld [vmem:[%s5 + $0x28] sm:$0xff]
        %v1257 = vld [vmem:[%s5 + $0x30] sm:$0xff]
        %v1258 = vld [vmem:[%s5 + $0x38] sm:$0xff]
        %v1259 = vld [vmem:[%s5 + $0x40] sm:$0xff]
        %v1260 = vld [vmem:[%s5 + $0x48] sm:$0xff]
        %v1261 = vld [vmem:[%s5 + $0x50] sm:$0xff]
        %v1262 = vld [vmem:[%s5 + $0x58] sm:$0xff]
        %v1263 = vld [vmem:[%s5 + $0x60] sm:$0xff]
        %v1264 = vld [vmem:[%s5 + $0x68] sm:$0xff]
        %v1265 = vld [vmem:[%s5 + $0x70] sm:$0xff]
        %v1266 = vld [vmem:[%s5 + $0x78] sm:$0xff]
        %v1267 = vld [vmem:[%s5 + $0x80] sm:$0xff]
        %v1268 = vld [vmem:[%s5 + $0x88] sm:$0xff]
        %v1269 = vld [vmem:[%s5 + $0x90] sm:$0xff]
        %v1270 = vld [vmem:[%s5 + $0x98] sm:$0xff]
        %v1271 = vld [vmem:[%s5 + $0xa0] sm:$0xff]
        %v1272 = vld [vmem:[%s5 + $0xa8] sm:$0xff]
        %v1273 = vld [vmem:[%s5 + $0xb0] sm:$0xff]
        %v1274 = vld [vmem:[%s5 + $0xb8] sm:$0xff]
        %v1275 = vld [vmem:[%s5 + $0xc0] sm:$0xff]
        %v1276 = vld [vmem:[%s5 + $0xc8] sm:$0xff]
        %v1277 = vld [vmem:[%s5 + $0xd0] sm:$0xff]
        %v1278 = vld [vmem:[%s5 + $0xd8] sm:$0xff]
        %v1279 = vld [vmem:[%s5 + $0xe0] sm:$0xff]
        %v1280 = vld [vmem:[%s5 + $0xe8] sm:$0xff]
        %v1281 = vld [vmem:[%s5 + $0xf0] sm:$0xff]
        %v1282 = vld [vmem:[%s5 + $0xf8] sm:$0xff]
        %v1283 = vld [vmem:[%s5 + $0x100] sm:$0xff]
        %v1284 = vld [vmem:[%s5 + $0x108] sm:$0xff]
        %v1285 = vld [vmem:[%s5 + $0x110] sm:$0xff]
        %v1286 = vld [vmem:[%s5 + $0x118] sm:$0xff]
        %v1287 = vld [vmem:[%s5 + $0x120] sm:$0xff]
        %v1288 = vld [vmem:[%s5 + $0x128] sm:$0xff]
        %v1289 = vld [vmem:[%s5 + $0x130] sm:$0xff]
        %v1290 = vld [vmem:[%s5 + $0x138] sm:$0xff]
        %v1291 = vld [vmem:[%s6] sm:$0x1]
        %v1293 = vlaneseq
        %v1294 = vshrl.u32 %v1293, 7
        %v1295 = vsub.s32 0, %v1294
        %v1296 = vrot.slane %v1291, %v1295
        %v1298 = vsel %vm896, %v1236, 0
        %v1300 = vsel %vm896, %v1238, 0
        %v1302 = vsel %vm896, %v1240, 0
        %v1304 = vsel %vm896, %v1242, 0
        %1306 = vmatprep.subr.mxu0 0.0
        %1307 = vmatpush1.msra.mxu0 %v1251
        %1308 = vmatprep.subr.mxu0 0.0
        %1309 = vmatpush1.msra.mxu0 %v1252
        %1310 = vmatprep.subr.mxu0 0.0
        %1311 = vmatpush1.msra.mxu0 %v1253
        %1312 = vmatprep.subr.mxu0 0.0
        %1313 = vmatpush1.msra.mxu0 %v1254
        %1314 = vmatprep.subr.mxu0 0.0
        %1315 = vmatpush1.msra.mxu0 %v1255
        %1316 = vmatprep.subr.mxu0 0.0
        %1317 = vmatpush1.msra.mxu0 %v1256
        %1318 = vmatprep.subr.mxu0 0.0
        %1319 = vmatpush1.msra.mxu0 %v1257
        %1320 = vmatprep.subr.mxu0 0.0
        %1321 = vmatpush1.msra.mxu0 %v1258
        %1322 = vmatprep.subr.mxu0 0.0
        %1323 = vmatpush1.msra.mxu0 %v1259
        %1324 = vmatprep.subr.mxu0 0.0
        %1325 = vmatpush1.msra.mxu0 %v1260
        %1326 = vmatprep.subr.mxu0 0.0
        %1327 = vmatpush1.msra.mxu0 %v1261
        %1328 = vmatprep.subr.mxu0 0.0
        %1329 = vmatpush1.msra.mxu0 %v1262
        %1330 = vmatprep.subr.mxu0 0.0
        %1331 = vmatpush1.msra.mxu0 %v1263
        %1332 = vmatprep.subr.mxu0 0.0
        %1333 = vmatpush1.msra.mxu0 %v1264
        %1334 = vmatprep.subr.mxu0 0.0
        %1335 = vmatpush1.msra.mxu0 %v1265
        %1336 = vmatprep.subr.mxu0 0.0
        %1337 = vmatpush1.msra.mxu0 %v1266
        %1338 = vmatprep.subr.mxu0 0.0
        %1339 = vmatpush1.msra.mxu0 %v1267
        %1340 = vmatprep.subr.mxu0 0.0
        %1341 = vmatpush1.msra.mxu0 %v1268
        %1342 = vmatprep.subr.mxu0 0.0
        %1343 = vmatpush1.msra.mxu0 %v1269
        %1344 = vmatprep.subr.mxu0 0.0
        %1345 = vmatpush1.msra.mxu0 %v1270
        %1346 = vmatprep.subr.mxu0 0.0
        %1347 = vmatpush1.msra.mxu0 %v1271
        %1348 = vmatprep.subr.mxu0 0.0
        %1349 = vmatpush1.msra.mxu0 %v1272
        %1350 = vmatprep.subr.mxu0 0.0
        %1351 = vmatpush1.msra.mxu0 %v1273
        %1352 = vmatprep.subr.mxu0 0.0
        %1353 = vmatpush1.msra.mxu0 %v1274
        %1354 = vmatprep.subr.mxu0 0.0
        %1355 = vmatpush1.msra.mxu0 %v1275
        %1356 = vmatprep.subr.mxu0 0.0
        %1357 = vmatpush1.msra.mxu0 %v1276
        %1358 = vmatprep.subr.mxu0 0.0
        %1359 = vmatpush1.msra.mxu0 %v1277
        %1360 = vmatprep.subr.mxu0 0.0
        %1361 = vmatpush1.msra.mxu0 %v1278
        %1362 = vmatprep.subr.mxu0 0.0
        %1363 = vmatpush1.msra.mxu0 %v1279
        %1364 = vmatprep.subr.mxu0 0.0
        %1365 = vmatpush1.msra.mxu0 %v1280
        %1366 = vmatprep.subr.mxu0 0.0
        %1367 = vmatpush1.msra.mxu0 %v1281
        %1368 = vmatprep.subr.mxu0 0.0
        %1369 = vmatpush1.msra.mxu0 %v1282
        %1370 = vmatprep.mubr.f32.mxu0 %v1247
        %1371 = vmatmul.mubr.f32.gmra.mrb[0].mxu0 %v1243
        %v1372 = vpop.f32.mrb[0].mxu0
        %v1373 = vadd.f32 %v1296, %v1372
        %v1374 = vpop.f32.mrb[0].mxu0
        %1375 = vmatprep.mubr.f32.mxu0 %v1248
        %1376 = vmatmul.mubr.f32.gmra.mrb[0].mxu0 %v1244
        %v1377 = vpop.f32.mrb[0].mxu0
        %v1378 = vadd.f32 %v1296, %v1377
        %v1379 = vpop.f32.mrb[0].mxu0
        %1380 = vmatprep.mubr.f32.mxu0 %v1249
        %1381 = vmatmul.mubr.f32.gmra.mrb[0].mxu0 %v1245
        %v1382 = vpop.f32.mrb[0].mxu0
        %v1383 = vadd.f32 %v1296, %v1382
        %v1384 = vpop.f32.mrb[0].mxu0
        %1385 = vmatprep.mubr.f32.mxu0 %v1250
        %1386 = vmatmul.mubr.f32.gmra.mrb[0].mxu0 %v1246
        %v1387 = vpop.f32.mrb[0].mxu0
        %v1388 = vadd.f32 %v1296, %v1387
        %v1389 = vpop.f32.mrb[0].mxu0
        %1390 = vdwg.mxu0
        %1391 = vmatprep.subr.mxu0 0.0
        %1392 = vmatpush1.msra.mxu0 %v1283
        %1393 = vmatprep.subr.mxu0 0.0
        %1394 = vmatpush1.msra.mxu0 %v1284
        %1395 = vmatprep.subr.mxu0 0.0
        %1396 = vmatpush1.msra.mxu0 %v1285
        %1397 = vmatprep.subr.mxu0 0.0
        %1398 = vmatpush1.msra.mxu0 %v1286
        %1399 = vmatprep.subr.mxu0 0.0
        %1400 = vmatpush1.msra.mxu0 %v1287
        %1401 = vmatprep.subr.mxu0 0.0
        %1402 = vmatpush1.msra.mxu0 %v1288
        %1403 = vmatprep.subr.mxu0 0.0
        %1404 = vmatpush1.msra.mxu0 %v1289
        %1405 = vmatprep.subr.mxu0 0.0
        %1406 = vmatpush1.msra.mxu0 %v1290
        %1407 = vmatprep.subr.mxu0 0.0
        %1408 = vmatpush1.msra.mxu0 0.0
        %1409 = vmatprep.subr.mxu0 0.0
        %1410 = vmatpush1.msra.mxu0 0.0
        %1411 = vmatprep.subr.mxu0 0.0
        %1412 = vmatpush1.msra.mxu0 0.0
        %1413 = vmatprep.subr.mxu0 0.0
        %1414 = vmatpush1.msra.mxu0 0.0
        %1415 = vmatprep.subr.mxu0 0.0
        %1416 = vmatpush1.msra.mxu0 0.0
        %1417 = vmatprep.subr.mxu0 0.0
        %1418 = vmatpush1.msra.mxu0 0.0
        %1419 = vmatprep.subr.mxu0 0.0
        %1420 = vmatpush1.msra.mxu0 0.0
        %1421 = vmatprep.subr.mxu0 0.0
        %1422 = vmatpush1.msra.mxu0 0.0
        %1423 = vmatprep.subr.mxu0 0.0
        %1424 = vmatpush1.msra.mxu0 0.0
        %1425 = vmatprep.subr.mxu0 0.0
        %1426 = vmatpush1.msra.mxu0 0.0
        %1427 = vmatprep.subr.mxu0 0.0
        %1428 = vmatpush1.msra.mxu0 0.0
        %1429 = vmatprep.subr.mxu0 0.0
        %1430 = vmatpush1.msra.mxu0 0.0
        %1431 = vmatprep.subr.mxu0 0.0
        %1432 = vmatpush1.msra.mxu0 0.0
        %1433 = vmatprep.subr.mxu0 0.0
        %1434 = vmatpush1.msra.mxu0 0.0
        %1435 = vmatprep.subr.mxu0 0.0
        %1436 = vmatpush1.msra.mxu0 0.0
        %1437 = vmatprep.subr.mxu0 0.0
        %1438 = vmatpush1.msra.mxu0 0.0
        %1439 = vmatprep.subr.mxu0 0.0
        %1440 = vmatpush1.msra.mxu0 0.0
        %1441 = vmatprep.subr.mxu0 0.0
        %1442 = vmatpush1.msra.mxu0 0.0
        %1443 = vmatprep.subr.mxu0 0.0
        %1444 = vmatpush1.msra.mxu0 0.0
        %1445 = vmatprep.subr.mxu0 0.0
        %1446 = vmatpush1.msra.mxu0 0.0
        %1447 = vmatprep.subr.mxu0 0.0
        %1448 = vmatpush1.msra.mxu0 0.0
        %1449 = vmatprep.subr.mxu0 0.0
        %1450 = vmatpush1.msra.mxu0 0.0
        %1451 = vmatprep.subr.mxu0 0.0
        %1452 = vmatpush1.msra.mxu0 0.0
        %1453 = vmatprep.subr.mxu0 0.0
        %1454 = vmatpush1.msra.mxu0 0.0
        %1455 = vmatprep.mubr.f32.mxu0 0.0
        %1456 = vmatmul.mubr.f32.gmra.mrb[0].mxu0 %v1298
        %v1457 = vpop.f32.mrb[0].mxu0
        %v1458 = vadd.f32 %v1373, %v1457
        %v1459 = vpop.f32.mrb[0].mxu0
        %1460 = vmatprep.mubr.f32.mxu0 0.0
        %1461 = vmatmul.mubr.f32.gmra.mrb[0].mxu0 %v1300
        %v1462 = vpop.f32.mrb[0].mxu0
        %v1463 = vadd.f32 %v1378, %v1462
        %v1464 = vpop.f32.mrb[0].mxu0
        %1465 = vmatprep.mubr.f32.mxu0 0.0
        %1466 = vmatmul.mubr.f32.gmra.mrb[0].mxu0 %v1302
        %v1467 = vpop.f32.mrb[0].mxu0
        %v1468 = vadd.f32 %v1383, %v1467
        %v1469 = vpop.f32.mrb[0].mxu0
        %1470 = vmatprep.mubr.f32.mxu0 0.0
        %1471 = vmatmul.mubr.f32.gmra.mrb[0].mxu0 %v1304
        %v1472 = vpop.f32.mrb[0].mxu0
        %v1473 = vadd.f32 %v1388, %v1472
        %v1474 = vpop.f32.mrb[0].mxu0
        %1475 = vdwg.mxu0
        %v1476 = vmax.f32 %v1458, 0.0
        %v1477 = vmax.f32 %v1463, 0.0
        %v1478 = vmax.f32 %v1468, 0.0
        %v1479 = vmax.f32 %v1473, 0.0
        %v1480 = vsel %vm896, %v1476, 0.0
        %1481 = vadd.xlane.f32.xlu0 %v1480
        %v1482 = vpop.xlane.xlu0 %1481
        %v1483 = vsel %vm896, %v1477, 0.0
        %1484 = vadd.xlane.f32.xlu0 %v1483
        %v1485 = vpop.xlane.xlu0 %1484
        %v1486 = vsel %vm896, %v1478, 0.0
        %1487 = vadd.xlane.f32.xlu0 %v1486
        %v1488 = vpop.xlane.xlu0 %1487
        %v1489 = vsel %vm896, %v1479, 0.0
        %1490 = vadd.xlane.f32.xlu0 %v1489
        %v1491 = vpop.xlane.xlu0 %1490
        %v1492 = vmul.f32 %v1482, %v1056
        %v1493 = vmul.f32 %v1485, %v1056
        %v1494 = vmul.f32 %v1488, %v1056
        %v1495 = vmul.f32 %v1491, %v1056
        %v1496 = vsub.f32 %v1476, %v1492
        %v1497 = vsub.f32 %v1477, %v1493
        %v1498 = vsub.f32 %v1478, %v1494
        %v1499 = vsub.f32 %v1479, %v1495
        %v1500 = vmul.f32 %v1496, %v1496
        %v1501 = vmul.f32 %v1497, %v1497
        %v1502 = vmul.f32 %v1498, %v1498
        %v1503 = vmul.f32 %v1499, %v1499
        %v1504 = vsel %vm896, %v1500, 0.0
        %1505 = vadd.xlane.f32.xlu0 %v1504
        %v1506 = vpop.xlane.xlu0 %1505
        %v1507 = vsel %vm896, %v1501, 0.0
        %1508 = vadd.xlane.f32.xlu0 %v1507
        %v1509 = vpop.xlane.xlu0 %1508
        %v1510 = vsel %vm896, %v1502, 0.0
        %1511 = vadd.xlane.f32.xlu0 %v1510
        %v1512 = vpop.xlane.xlu0 %1511
        %v1513 = vsel %vm896, %v1503, 0.0
        %1514 = vadd.xlane.f32.xlu0 %v1513
        %v1515 = vpop.xlane.xlu0 %1514
        %v1516 = vmul.f32 %v1506, %v1056
        %v1517 = vmul.f32 %v1509, %v1056
        %v1518 = vmul.f32 %v1512, %v1056
        %v1519 = vmul.f32 %v1515, %v1056
        %v1520 = vadd.f32 %v1516, 1e-05
        %v1521 = vadd.f32 %v1517, 1e-05
        %v1522 = vadd.f32 %v1518, 1e-05
        %v1523 = vadd.f32 %v1519, 1e-05
        %v1524 = vrsqrt.pop %v1520
        %v1525 = vrsqrt.pop %v1521
        %v1526 = vrsqrt.pop %v1522
        %v1527 = vrsqrt.pop %v1523
        %v1528 = vmul.f32 %v1496, %v1524
        %v1529 = vmul.f32 %v1497, %v1525
        %v1530 = vmul.f32 %v1498, %v1526
        %v1531 = vmul.f32 %v1499, %v1527
        %v1532 = vld [vmem:[%s7] sm:$0x1]
        %v1534 = vlaneseq
        %v1535 = vshrl.u32 %v1534, 7
        %v1536 = vsub.s32 0, %v1535
        %v1537 = vrot.slane %v1532, %v1536
        %v1539 = vmul.f32 %v1528, %v1537
        %v1540 = vmul.f32 %v1529, %v1537
        %v1541 = vmul.f32 %v1530, %v1537
        %v1542 = vmul.f32 %v1531, %v1537
        %v1543 = vld [vmem:[%s8] sm:$0x1]
        %v1545 = vlaneseq
        %v1546 = vshrl.u32 %v1545, 7
        %v1547 = vsub.s32 0, %v1546
        %v1548 = vrot.slane %v1543, %v1547
        %v1550 = vadd.f32 %v1539, %v1548
        %v1551 = vadd.f32 %v1540, %v1548
        %v1552 = vadd.f32 %v1541, %v1548
        %v1553 = vadd.f32 %v1542, %v1548
        %s1554 = ssub.s32 %s793, 8
        %v1555 = vstv %s1554
        %v1556 = vadd.s32 %v1555, %v1132
        %v1557 = vadd.s32 %v1555, %v1133
        %v1558 = vadd.s32 %v1555, %v1134
        %v1559 = vadd.s32 %v1555, %v1135
        %vm1560 = vcmp.ge.s32.totalorder %v1556, 0
        %vm1561 = vcmp.ge.s32.totalorder %v1557, 0
        %vm1562 = vcmp.ge.s32.totalorder %v1558, 0
        %vm1563 = vcmp.ge.s32.totalorder %v1559, 0
        %vm1564 = vcmp.lt.s32.totalorder %v1556, 40
        %vm1565 = vcmp.lt.s32.totalorder %v1557, 40
        %vm1566 = vcmp.lt.s32.totalorder %v1558, 40
        %vm1567 = vcmp.lt.s32.totalorder %v1559, 40
        %vm1568 = vmand %vm1560, %vm1564
        %vm1569 = vmand %vm1561, %vm1565
        %vm1570 = vmand %vm1562, %vm1566
        %vm1571 = vmand %vm1563, %vm1567
        %v1572 = vsel %vm1568, 1, 0
        %v1573 = vsel %vm1569, 1, 0
        %v1574 = vsel %vm1570, 1, 0
        %v1575 = vsel %vm1571, 1, 0
        %vm1576 = vcmp.eq.s32.totalorder %v1572, 1
        %vm1577 = vcmp.eq.s32.totalorder %v1573, 1
        %vm1578 = vcmp.eq.s32.totalorder %v1574, 1
        %vm1579 = vcmp.eq.s32.totalorder %v1575, 1
        %v1580 = vsel %vm1576, %v1550, 0.0
        %v1581 = vsel %vm1577, %v1551, 0.0
        %v1582 = vsel %vm1578, %v1552, 0.0
        %v1583 = vsel %vm1579, %v1553, 0.0
        %v1588 = vrot.slane %v1580, 1
        %v1589 = vrot.slane %v1581, 1
        %v1590 = vsel %vm805, %v1588, %v1589
        %v1591 = vrot.slane %v1582, 1
        %v1592 = vsel %vm805, %v1589, %v1591
        %v1593 = vrot.slane %v1583, 1
        %v1594 = vsel %vm805, %v1591, %v1593
        %1595 = vrot.lane.b32.xlu0 %v1590, 64
        %v1596 = vpop.permute.xlu0 %1595
        %1597 = vrot.lane.b32.xlu0 %v1592, 64
        %v1598 = vpop.permute.xlu0 %1597
        %1599 = vrot.lane.b32.xlu0 %v1594, 64
        %v1600 = vpop.permute.xlu0 %1599
        %1601 = vrot.lane.b32.xlu0 %v1593, 64
        %v1602 = vpop.permute.xlu0 %1601
        %v1607 = vrot.slane %v1580, 2
        %v1608 = vrot.slane %v1581, 2
        %v1609 = vsel %vm830, %v1607, %v1608
        %v1610 = vrot.slane %v1582, 2
        %v1611 = vsel %vm830, %v1608, %v1610
        %v1612 = vrot.slane %v1583, 2
        %v1613 = vsel %vm830, %v1610, %v1612
        %v1618 = vrot.slane %v1580, 3
        %v1619 = vrot.slane %v1581, 3
        %v1620 = vsel %vm855, %v1618, %v1619
        %v1621 = vrot.slane %v1582, 3
        %v1622 = vsel %vm855, %v1619, %v1621
        %v1623 = vrot.slane %v1583, 3
        %v1624 = vsel %vm855, %v1621, %v1623
        %1625 = vrot.lane.b32.xlu0 %v1620, 64
        %v1626 = vpop.permute.xlu0 %1625
        %1627 = vrot.lane.b32.xlu0 %v1622, 64
        %v1628 = vpop.permute.xlu0 %1627
        %1629 = vrot.lane.b32.xlu0 %v1624, 64
        %v1630 = vpop.permute.xlu0 %1629
        %1631 = vrot.lane.b32.xlu0 %v1623, 64
        %v1632 = vpop.permute.xlu0 %1631
        %v1637 = vrot.slane %v1580, 4
        %v1638 = vrot.slane %v1581, 4
        %v1639 = vsel %vm880, %v1637, %v1638
        %v1640 = vrot.slane %v1582, 4
        %v1641 = vsel %vm880, %v1638, %v1640
        %v1642 = vrot.slane %v1583, 4
        %v1643 = vsel %vm880, %v1640, %v1642
        %v1644 = vsel %vm896, %v1580, %v1596
        %v1645 = vsel %vm896, %v1581, %v1598
        %v1646 = vsel %vm896, %v1582, %v1600
        %v1647 = vsel %vm896, %v1583, %v1602
        %v1648 = vsel %vm896, %v1609, %v1626
        %v1649 = vsel %vm896, %v1611, %v1628
        %v1650 = vsel %vm896, %v1613, %v1630
        %v1651 = vsel %vm896, %v1612, %v1632
        %v1652 = vld [vmem:[#allocation4] sm:$0xff]
        %v1653 = vld [vmem:[#allocation4 + $0x8] sm:$0xff]
        %v1654 = vld [vmem:[#allocation4 + $0x10] sm:$0xff]
        %v1655 = vld [vmem:[#allocation4 + $0x18] sm:$0xff]
        %v1656 = vld [vmem:[#allocation4 + $0x20] sm:$0xff]
        %v1657 = vld [vmem:[#allocation4 + $0x28] sm:$0xff]
        %v1658 = vld [vmem:[#allocation4 + $0x30] sm:$0xff]
        %v1659 = vld [vmem:[#allocation4 + $0x38] sm:$0xff]
        %v1660 = vld [vmem:[#allocation4 + $0x40] sm:$0xff]
        %v1661 = vld [vmem:[#allocation4 + $0x48] sm:$0xff]
        %v1662 = vld [vmem:[#allocation4 + $0x50] sm:$0xff]
        %v1663 = vld [vmem:[#allocation4 + $0x58] sm:$0xff]
        %v1664 = vld [vmem:[#allocation4 + $0x60] sm:$0xff]
        %v1665 = vld [vmem:[#allocation4 + $0x68] sm:$0xff]
        %v1666 = vld [vmem:[#allocation4 + $0x70] sm:$0xff]
        %v1667 = vld [vmem:[#allocation4 + $0x78] sm:$0xff]
        %v1668 = vld [vmem:[#allocation4 + $0x80] sm:$0xff]
        %v1669 = vld [vmem:[#allocation4 + $0x88] sm:$0xff]
        %v1670 = vld [vmem:[#allocation4 + $0x90] sm:$0xff]
        %v1671 = vld [vmem:[#allocation4 + $0x98] sm:$0xff]
        %v1672 = vld [vmem:[#allocation4 + $0xa0] sm:$0xff]
        %v1673 = vld [vmem:[#allocation4 + $0xa8] sm:$0xff]
        %v1674 = vld [vmem:[#allocation4 + $0xb0] sm:$0xff]
        %v1675 = vld [vmem:[#allocation4 + $0xb8] sm:$0xff]
        %v1676 = vld [vmem:[#allocation4 + $0xc0] sm:$0xff]
        %v1677 = vld [vmem:[#allocation4 + $0xc8] sm:$0xff]
        %v1678 = vld [vmem:[#allocation4 + $0xd0] sm:$0xff]
        %v1679 = vld [vmem:[#allocation4 + $0xd8] sm:$0xff]
        %v1680 = vld [vmem:[#allocation4 + $0xe0] sm:$0xff]
        %v1681 = vld [vmem:[#allocation4 + $0xe8] sm:$0xff]
        %v1682 = vld [vmem:[#allocation4 + $0xf0] sm:$0xff]
        %v1683 = vld [vmem:[#allocation4 + $0xf8] sm:$0xff]
        %v1684 = vld [vmem:[#allocation4 + $0x100] sm:$0xff]
        %v1685 = vld [vmem:[#allocation4 + $0x108] sm:$0xff]
        %v1686 = vld [vmem:[#allocation4 + $0x110] sm:$0xff]
        %v1687 = vld [vmem:[#allocation4 + $0x118] sm:$0xff]
        %v1688 = vld [vmem:[#allocation4 + $0x120] sm:$0xff]
        %v1689 = vld [vmem:[#allocation4 + $0x128] sm:$0xff]
        %v1690 = vld [vmem:[#allocation4 + $0x130] sm:$0xff]
        %v1691 = vld [vmem:[#allocation4 + $0x138] sm:$0xff]
        %v1692 = vld [vmem:[%s10] sm:$0x1]
        %v1694 = vlaneseq
        %v1695 = vshrl.u32 %v1694, 7
        %v1696 = vsub.s32 0, %v1695
        %v1697 = vrot.slane %v1692, %v1696
        %v1699 = vsel %vm896, %v1639, 0
        %v1701 = vsel %vm896, %v1641, 0
        %v1703 = vsel %vm896, %v1643, 0
        %v1705 = vsel %vm896, %v1642, 0
        %1707 = vmatprep.subr.mxu0 0.0
        %1708 = vmatpush1.msra.mxu0 %v1652
        %1709 = vmatprep.subr.mxu0 0.0
        %1710 = vmatpush1.msra.mxu0 %v1653
        %1711 = vmatprep.subr.mxu0 0.0
        %1712 = vmatpush1.msra.mxu0 %v1654
        %1713 = vmatprep.subr.mxu0 0.0
        %1714 = vmatpush1.msra.mxu0 %v1655
        %1715 = vmatprep.subr.mxu0 0.0
        %1716 = vmatpush1.msra.mxu0 %v1656
        %1717 = vmatprep.subr.mxu0 0.0
        %1718 = vmatpush1.msra.mxu0 %v1657
        %1719 = vmatprep.subr.mxu0 0.0
        %1720 = vmatpush1.msra.mxu0 %v1658
        %1721 = vmatprep.subr.mxu0 0.0
        %1722 = vmatpush1.msra.mxu0 %v1659
        %1723 = vmatprep.subr.mxu0 0.0
        %1724 = vmatpush1.msra.mxu0 %v1660
        %1725 = vmatprep.subr.mxu0 0.0
        %1726 = vmatpush1.msra.mxu0 %v1661
        %1727 = vmatprep.subr.mxu0 0.0
        %1728 = vmatpush1.msra.mxu0 %v1662
        %1729 = vmatprep.subr.mxu0 0.0
        %1730 = vmatpush1.msra.mxu0 %v1663
        %1731 = vmatprep.subr.mxu0 0.0
        %1732 = vmatpush1.msra.mxu0 %v1664
        %1733 = vmatprep.subr.mxu0 0.0
        %1734 = vmatpush1.msra.mxu0 %v1665
        %1735 = vmatprep.subr.mxu0 0.0
        %1736 = vmatpush1.msra.mxu0 %v1666
        %1737 = vmatprep.subr.mxu0 0.0
        %1738 = vmatpush1.msra.mxu0 %v1667
        %1739 = vmatprep.subr.mxu0 0.0
        %1740 = vmatpush1.msra.mxu0 %v1668
        %1741 = vmatprep.subr.mxu0 0.0
        %1742 = vmatpush1.msra.mxu0 %v1669
        %1743 = vmatprep.subr.mxu0 0.0
        %1744 = vmatpush1.msra.mxu0 %v1670
        %1745 = vmatprep.subr.mxu0 0.0
        %1746 = vmatpush1.msra.mxu0 %v1671
        %1747 = vmatprep.subr.mxu0 0.0
        %1748 = vmatpush1.msra.mxu0 %v1672
        %1749 = vmatprep.subr.mxu0 0.0
        %1750 = vmatpush1.msra.mxu0 %v1673
        %1751 = vmatprep.subr.mxu0 0.0
        %1752 = vmatpush1.msra.mxu0 %v1674
        %1753 = vmatprep.subr.mxu0 0.0
        %1754 = vmatpush1.msra.mxu0 %v1675
        %1755 = vmatprep.subr.mxu0 0.0
        %1756 = vmatpush1.msra.mxu0 %v1676
        %1757 = vmatprep.subr.mxu0 0.0
        %1758 = vmatpush1.msra.mxu0 %v1677
        %1759 = vmatprep.subr.mxu0 0.0
        %1760 = vmatpush1.msra.mxu0 %v1678
        %1761 = vmatprep.subr.mxu0 0.0
        %1762 = vmatpush1.msra.mxu0 %v1679
        %1763 = vmatprep.subr.mxu0 0.0
        %1764 = vmatpush1.msra.mxu0 %v1680
        %1765 = vmatprep.subr.mxu0 0.0
        %1766 = vmatpush1.msra.mxu0 %v1681
        %1767 = vmatprep.subr.mxu0 0.0
        %1768 = vmatpush1.msra.mxu0 %v1682
        %1769 = vmatprep.subr.mxu0 0.0
        %1770 = vmatpush1.msra.mxu0 %v1683
        %1771 = vmatprep.mubr.f32.mxu0 %v1648
        %1772 = vmatmul.mubr.f32.gmra.mrb[0].mxu0 %v1644
        %v1773 = vpop.f32.mrb[0].mxu0
        %v1774 = vadd.f32 %v1697, %v1773
        %v1775 = vpop.f32.mrb[0].mxu0
        %1776 = vmatprep.mubr.f32.mxu0 %v1649
        %1777 = vmatmul.mubr.f32.gmra.mrb[0].mxu0 %v1645
        %v1778 = vpop.f32.mrb[0].mxu0
        %v1779 = vadd.f32 %v1697, %v1778
        %v1780 = vpop.f32.mrb[0].mxu0
        %1781 = vmatprep.mubr.f32.mxu0 %v1650
        %1782 = vmatmul.mubr.f32.gmra.mrb[0].mxu0 %v1646
        %v1783 = vpop.f32.mrb[0].mxu0
        %v1784 = vadd.f32 %v1697, %v1783
        %v1785 = vpop.f32.mrb[0].mxu0
        %1786 = vmatprep.mubr.f32.mxu0 %v1651
        %1787 = vmatmul.mubr.f32.gmra.mrb[0].mxu0 %v1647
        %v1788 = vpop.f32.mrb[0].mxu0
        %v1789 = vadd.f32 %v1697, %v1788
        %v1790 = vpop.f32.mrb[0].mxu0
        %1791 = vdwg.mxu0
        %1792 = vmatprep.subr.mxu0 0.0
        %1793 = vmatpush1.msra.mxu0 %v1684
        %1794 = vmatprep.subr.mxu0 0.0
        %1795 = vmatpush1.msra.mxu0 %v1685
        %1796 = vmatprep.subr.mxu0 0.0
        %1797 = vmatpush1.msra.mxu0 %v1686
        %1798 = vmatprep.subr.mxu0 0.0
        %1799 = vmatpush1.msra.mxu0 %v1687
        %1800 = vmatprep.subr.mxu0 0.0
        %1801 = vmatpush1.msra.mxu0 %v1688
        %1802 = vmatprep.subr.mxu0 0.0
        %1803 = vmatpush1.msra.mxu0 %v1689
        %1804 = vmatprep.subr.mxu0 0.0
        %1805 = vmatpush1.msra.mxu0 %v1690
        %1806 = vmatprep.subr.mxu0 0.0
        %1807 = vmatpush1.msra.mxu0 %v1691
        %1808 = vmatprep.subr.mxu0 0.0
        %1809 = vmatpush1.msra.mxu0 0.0
        %1810 = vmatprep.subr.mxu0 0.0
        %1811 = vmatpush1.msra.mxu0 0.0
        %1812 = vmatprep.subr.mxu0 0.0
        %1813 = vmatpush1.msra.mxu0 0.0
        %1814 = vmatprep.subr.mxu0 0.0
        %1815 = vmatpush1.msra.mxu0 0.0
        %1816 = vmatprep.subr.mxu0 0.0
        %1817 = vmatpush1.msra.mxu0 0.0
        %1818 = vmatprep.subr.mxu0 0.0
        %1819 = vmatpush1.msra.mxu0 0.0
        %1820 = vmatprep.subr.mxu0 0.0
        %1821 = vmatpush1.msra.mxu0 0.0
        %1822 = vmatprep.subr.mxu0 0.0
        %1823 = vmatpush1.msra.mxu0 0.0
        %1824 = vmatprep.subr.mxu0 0.0
        %1825 = vmatpush1.msra.mxu0 0.0
        %1826 = vmatprep.subr.mxu0 0.0
        %1827 = vmatpush1.msra.mxu0 0.0
        %1828 = vmatprep.subr.mxu0 0.0
        %1829 = vmatpush1.msra.mxu0 0.0
        %1830 = vmatprep.subr.mxu0 0.0
        %1831 = vmatpush1.msra.mxu0 0.0
        %1832 = vmatprep.subr.mxu0 0.0
        %1833 = vmatpush1.msra.mxu0 0.0
        %1834 = vmatprep.subr.mxu0 0.0
        %1835 = vmatpush1.msra.mxu0 0.0
        %1836 = vmatprep.subr.mxu0 0.0
        %1837 = vmatpush1.msra.mxu0 0.0
        %1838 = vmatprep.subr.mxu0 0.0
        %1839 = vmatpush1.msra.mxu0 0.0
        %1840 = vmatprep.subr.mxu0 0.0
        %1841 = vmatpush1.msra.mxu0 0.0
        %1842 = vmatprep.subr.mxu0 0.0
        %1843 = vmatpush1.msra.mxu0 0.0
        %1844 = vmatprep.subr.mxu0 0.0
        %1845 = vmatpush1.msra.mxu0 0.0
        %1846 = vmatprep.subr.mxu0 0.0
        %1847 = vmatpush1.msra.mxu0 0.0
        %1848 = vmatprep.subr.mxu0 0.0
        %1849 = vmatpush1.msra.mxu0 0.0
        %1850 = vmatprep.subr.mxu0 0.0
        %1851 = vmatpush1.msra.mxu0 0.0
        %1852 = vmatprep.subr.mxu0 0.0
        %1853 = vmatpush1.msra.mxu0 0.0
        %1854 = vmatprep.subr.mxu0 0.0
        %1855 = vmatpush1.msra.mxu0 0.0
        %1856 = vmatprep.mubr.f32.mxu0 0.0
        %1857 = vmatmul.mubr.f32.gmra.mrb[0].mxu0 %v1699
        %v1858 = vpop.f32.mrb[0].mxu0
        %v1859 = vadd.f32 %v1774, %v1858
        %v1860 = vpop.f32.mrb[0].mxu0
        %1861 = vmatprep.mubr.f32.mxu0 0.0
        %1862 = vmatmul.mubr.f32.gmra.mrb[0].mxu0 %v1701
        %v1863 = vpop.f32.mrb[0].mxu0
        %v1864 = vadd.f32 %v1779, %v1863
        %v1865 = vpop.f32.mrb[0].mxu0
        %1866 = vmatprep.mubr.f32.mxu0 0.0
        %1867 = vmatmul.mubr.f32.gmra.mrb[0].mxu0 %v1703
        %v1868 = vpop.f32.mrb[0].mxu0
        %v1869 = vadd.f32 %v1784, %v1868
        %v1870 = vpop.f32.mrb[0].mxu0
        %1871 = vmatprep.mubr.f32.mxu0 0.0
        %1872 = vmatmul.mubr.f32.gmra.mrb[0].mxu0 %v1705
        %v1873 = vpop.f32.mrb[0].mxu0
        %v1874 = vadd.f32 %v1789, %v1873
        %v1875 = vpop.f32.mrb[0].mxu0
        %1876 = vdwg.mxu0
        %v1877 = vmax.f32 %v1859, 0.0
        %v1878 = vmax.f32 %v1864, 0.0
        %v1879 = vmax.f32 %v1869, 0.0
        %v1880 = vmax.f32 %v1874, 0.0
        %v1881 = vsel %vm896, %v1877, 0.0
        %1882 = vadd.xlane.f32.xlu0 %v1881
        %v1883 = vpop.xlane.xlu0 %1882
        %v1884 = vsel %vm896, %v1878, 0.0
        %1885 = vadd.xlane.f32.xlu0 %v1884
        %v1886 = vpop.xlane.xlu0 %1885
        %v1887 = vsel %vm896, %v1879, 0.0
        %1888 = vadd.xlane.f32.xlu0 %v1887
        %v1889 = vpop.xlane.xlu0 %1888
        %v1890 = vsel %vm1052, %v1880, 0.0
        %1891 = vadd.xlane.f32.xlu0 %v1890
        %v1892 = vpop.xlane.xlu0 %1891
        %v1893 = vmul.f32 %v1883, %v1056
        %v1894 = vmul.f32 %v1886, %v1056
        %v1895 = vmul.f32 %v1889, %v1056
        %v1896 = vmul.f32 %v1892, %v1056
        %v1897 = vsub.f32 %v1877, %v1893
        %v1898 = vsub.f32 %v1878, %v1894
        %v1899 = vsub.f32 %v1879, %v1895
        %v1900 = vsub.f32 %v1880, %v1896
        %v1901 = vmul.f32 %v1897, %v1897
        %v1902 = vmul.f32 %v1898, %v1898
        %v1903 = vmul.f32 %v1899, %v1899
        %v1904 = vmul.f32 %v1900, %v1900
        %v1905 = vsel %vm896, %v1901, 0.0
        %1906 = vadd.xlane.f32.xlu0 %v1905
        %v1907 = vpop.xlane.xlu0 %1906
        %v1908 = vsel %vm896, %v1902, 0.0
        %1909 = vadd.xlane.f32.xlu0 %v1908
        %v1910 = vpop.xlane.xlu0 %1909
        %v1911 = vsel %vm896, %v1903, 0.0
        %1912 = vadd.xlane.f32.xlu0 %v1911
        %v1913 = vpop.xlane.xlu0 %1912
        %v1914 = vsel %vm1052, %v1904, 0.0
        %1915 = vadd.xlane.f32.xlu0 %v1914
        %v1916 = vpop.xlane.xlu0 %1915
        %v1917 = vmul.f32 %v1907, %v1056
        %v1918 = vmul.f32 %v1910, %v1056
        %v1919 = vmul.f32 %v1913, %v1056
        %v1920 = vmul.f32 %v1916, %v1056
        %v1921 = vadd.f32 %v1917, 1e-05
        %v1922 = vadd.f32 %v1918, 1e-05
        %v1923 = vadd.f32 %v1919, 1e-05
        %v1924 = vadd.f32 %v1920, 1e-05
        %v1925 = vrsqrt.pop %v1921
        %v1926 = vrsqrt.pop %v1922
        %v1927 = vrsqrt.pop %v1923
        %v1928 = vrsqrt.pop %v1924
        %v1929 = vmul.f32 %v1897, %v1925
        %v1930 = vmul.f32 %v1898, %v1926
        %v1931 = vmul.f32 %v1899, %v1927
        %v1932 = vmul.f32 %v1900, %v1928
        %v1933 = vld [vmem:[%s11] sm:$0x1]
        %v1935 = vlaneseq
        %v1936 = vshrl.u32 %v1935, 7
        %v1937 = vsub.s32 0, %v1936
        %v1938 = vrot.slane %v1933, %v1937
        %v1940 = vmul.f32 %v1929, %v1938
        %v1941 = vmul.f32 %v1930, %v1938
        %v1942 = vmul.f32 %v1931, %v1938
        %v1943 = vmul.f32 %v1932, %v1938
        %v1944 = vld [vmem:[%s12] sm:$0x1]
        %v1946 = vlaneseq
        %v1947 = vshrl.u32 %v1946, 7
        %v1948 = vsub.s32 0, %v1947
        %v1949 = vrot.slane %v1944, %v1948
        %v1951 = vadd.f32 %v1940, %v1949
        %v1952 = vadd.f32 %v1941, %v1949
        %v1953 = vadd.f32 %v1942, %v1949
        %v1954 = vadd.f32 %v1943, %v1949
        %s1955 = ssub.s32 %s793, 6
        %v1956 = vstv %s1955
        %v1957 = vadd.s32 %v1956, %v1132
        %v1958 = vadd.s32 %v1956, %v1133
        %v1959 = vadd.s32 %v1956, %v1134
        %v1960 = vadd.s32 %v1956, %v1135
        %vm1961 = vcmp.ge.s32.totalorder %v1957, 0
        %vm1962 = vcmp.ge.s32.totalorder %v1958, 0
        %vm1963 = vcmp.ge.s32.totalorder %v1959, 0
        %vm1964 = vcmp.ge.s32.totalorder %v1960, 0
        %vm1965 = vcmp.lt.s32.totalorder %v1957, 40
        %vm1966 = vcmp.lt.s32.totalorder %v1958, 40
        %vm1967 = vcmp.lt.s32.totalorder %v1959, 40
        %vm1968 = vcmp.lt.s32.totalorder %v1960, 40
        %vm1969 = vmand %vm1961, %vm1965
        %vm1970 = vmand %vm1962, %vm1966
        %vm1971 = vmand %vm1963, %vm1967
        %vm1972 = vmand %vm1964, %vm1968
        %v1973 = vsel %vm1969, 1, 0
        %v1974 = vsel %vm1970, 1, 0
        %v1975 = vsel %vm1971, 1, 0
        %v1976 = vsel %vm1972, 1, 0
        %vm1977 = vcmp.eq.s32.totalorder %v1973, 1
        %vm1978 = vcmp.eq.s32.totalorder %v1974, 1
        %vm1979 = vcmp.eq.s32.totalorder %v1975, 1
        %vm1980 = vcmp.eq.s32.totalorder %v1976, 1
        %v1981 = vsel %vm1977, %v1951, 0.0
        %v1982 = vsel %vm1978, %v1952, 0.0
        %v1983 = vsel %vm1979, %v1953, 0.0
        %v1984 = vsel %vm1980, %v1954, 0.0
        %v1989 = vrot.slane %v1981, 1
        %v1990 = vrot.slane %v1982, 1
        %v1991 = vsel %vm805, %v1989, %v1990
        %v1992 = vrot.slane %v1983, 1
        %v1993 = vsel %vm805, %v1990, %v1992
        %v1994 = vrot.slane %v1984, 1
        %v1995 = vsel %vm805, %v1992, %v1994
        %1996 = vrot.lane.b32.xlu0 %v1991, 64
        %v1997 = vpop.permute.xlu0 %1996
        %1998 = vrot.lane.b32.xlu0 %v1993, 64
        %v1999 = vpop.permute.xlu0 %1998
        %2000 = vrot.lane.b32.xlu0 %v1995, 64
        %v2001 = vpop.permute.xlu0 %2000
        %v2005 = vrot.slane %v1981, 2
        %v2006 = vrot.slane %v1982, 2
        %v2007 = vsel %vm830, %v2005, %v2006
        %v2008 = vrot.slane %v1983, 2
        %v2009 = vsel %vm830, %v2006, %v2008
        %v2010 = vrot.slane %v1984, 2
        %v2011 = vsel %vm830, %v2008, %v2010
        %v2015 = vrot.slane %v1981, 3
        %v2016 = vrot.slane %v1982, 3
        %v2017 = vsel %vm855, %v2015, %v2016
        %v2018 = vrot.slane %v1983, 3
        %v2019 = vsel %vm855, %v2016, %v2018
        %v2020 = vrot.slane %v1984, 3
        %v2021 = vsel %vm855, %v2018, %v2020
        %2022 = vrot.lane.b32.xlu0 %v2017, 64
        %v2023 = vpop.permute.xlu0 %2022
        %2024 = vrot.lane.b32.xlu0 %v2019, 64
        %v2025 = vpop.permute.xlu0 %2024
        %2026 = vrot.lane.b32.xlu0 %v2021, 64
        %v2027 = vpop.permute.xlu0 %2026
        %v2031 = vrot.slane %v1981, 4
        %v2032 = vrot.slane %v1982, 4
        %v2033 = vsel %vm880, %v2031, %v2032
        %v2034 = vrot.slane %v1983, 4
        %v2035 = vsel %vm880, %v2032, %v2034
        %v2036 = vrot.slane %v1984, 4
        %v2037 = vsel %vm880, %v2034, %v2036
        %v2038 = vsel %vm896, %v1981, %v1997
        %v2039 = vsel %vm896, %v1982, %v1999
        %v2040 = vsel %vm896, %v1983, %v2001
        %v2041 = vsel %vm896, %v2007, %v2023
        %v2042 = vsel %vm896, %v2009, %v2025
        %v2043 = vsel %vm896, %v2011, %v2027
        %v2044 = vld [vmem:[#allocation6] sm:$0xff]
        %v2045 = vld [vmem:[#allocation6 + $0x8] sm:$0xff]
        %v2046 = vld [vmem:[#allocation6 + $0x10] sm:$0xff]
        %v2047 = vld [vmem:[#allocation6 + $0x18] sm:$0xff]
        %v2048 = vld [vmem:[#allocation6 + $0x20] sm:$0xff]
        %v2049 = vld [vmem:[#allocation6 + $0x28] sm:$0xff]
        %v2050 = vld [vmem:[#allocation6 + $0x30] sm:$0xff]
        %v2051 = vld [vmem:[#allocation6 + $0x38] sm:$0xff]
        %v2052 = vld [vmem:[#allocation6 + $0x40] sm:$0xff]
        %v2053 = vld [vmem:[#allocation6 + $0x48] sm:$0xff]
        %v2054 = vld [vmem:[#allocation6 + $0x50] sm:$0xff]
        %v2055 = vld [vmem:[#allocation6 + $0x58] sm:$0xff]
        %v2056 = vld [vmem:[#allocation6 + $0x60] sm:$0xff]
        %v2057 = vld [vmem:[#allocation6 + $0x68] sm:$0xff]
        %v2058 = vld [vmem:[#allocation6 + $0x70] sm:$0xff]
        %v2059 = vld [vmem:[#allocation6 + $0x78] sm:$0xff]
        %v2060 = vld [vmem:[#allocation6 + $0x80] sm:$0xff]
        %v2061 = vld [vmem:[#allocation6 + $0x88] sm:$0xff]
        %v2062 = vld [vmem:[#allocation6 + $0x90] sm:$0xff]
        %v2063 = vld [vmem:[#allocation6 + $0x98] sm:$0xff]
        %v2064 = vld [vmem:[#allocation6 + $0xa0] sm:$0xff]
        %v2065 = vld [vmem:[#allocation6 + $0xa8] sm:$0xff]
        %v2066 = vld [vmem:[#allocation6 + $0xb0] sm:$0xff]
        %v2067 = vld [vmem:[#allocation6 + $0xb8] sm:$0xff]
        %v2068 = vld [vmem:[#allocation6 + $0xc0] sm:$0xff]
        %v2069 = vld [vmem:[#allocation6 + $0xc8] sm:$0xff]
        %v2070 = vld [vmem:[#allocation6 + $0xd0] sm:$0xff]
        %v2071 = vld [vmem:[#allocation6 + $0xd8] sm:$0xff]
        %v2072 = vld [vmem:[#allocation6 + $0xe0] sm:$0xff]
        %v2073 = vld [vmem:[#allocation6 + $0xe8] sm:$0xff]
        %v2074 = vld [vmem:[#allocation6 + $0xf0] sm:$0xff]
        %v2075 = vld [vmem:[#allocation6 + $0xf8] sm:$0xff]
        %v2076 = vld [vmem:[#allocation6 + $0x100] sm:$0xff]
        %v2077 = vld [vmem:[#allocation6 + $0x108] sm:$0xff]
        %v2078 = vld [vmem:[#allocation6 + $0x110] sm:$0xff]
        %v2079 = vld [vmem:[#allocation6 + $0x118] sm:$0xff]
        %v2080 = vld [vmem:[#allocation6 + $0x120] sm:$0xff]
        %v2081 = vld [vmem:[#allocation6 + $0x128] sm:$0xff]
        %v2082 = vld [vmem:[#allocation6 + $0x130] sm:$0xff]
        %v2083 = vld [vmem:[#allocation6 + $0x138] sm:$0xff]
        %v2084 = vld [vmem:[%s14] sm:$0x1]
        %v2086 = vlaneseq
        %v2087 = vshrl.u32 %v2086, 7
        %v2088 = vsub.s32 0, %v2087
        %v2089 = vrot.slane %v2084, %v2088
        %v2091 = vsel %vm896, %v2033, 0
        %v2093 = vsel %vm896, %v2035, 0
        %v2095 = vsel %vm896, %v2037, 0
        %2097 = vmatprep.subr.mxu0 0.0
        %2098 = vmatpush1.msra.mxu0 %v2044
        %2099 = vmatprep.subr.mxu0 0.0
        %2100 = vmatpush1.msra.mxu0 %v2045
        %2101 = vmatprep.subr.mxu0 0.0
        %2102 = vmatpush1.msra.mxu0 %v2046
        %2103 = vmatprep.subr.mxu0 0.0
        %2104 = vmatpush1.msra.mxu0 %v2047
        %2105 = vmatprep.subr.mxu0 0.0
        %2106 = vmatpush1.msra.mxu0 %v2048
        %2107 = vmatprep.subr.mxu0 0.0
        %2108 = vmatpush1.msra.mxu0 %v2049
        %2109 = vmatprep.subr.mxu0 0.0
        %2110 = vmatpush1.msra.mxu0 %v2050
        %2111 = vmatprep.subr.mxu0 0.0
        %2112 = vmatpush1.msra.mxu0 %v2051
        %2113 = vmatprep.subr.mxu0 0.0
        %2114 = vmatpush1.msra.mxu0 %v2052
        %2115 = vmatprep.subr.mxu0 0.0
        %2116 = vmatpush1.msra.mxu0 %v2053
        %2117 = vmatprep.subr.mxu0 0.0
        %2118 = vmatpush1.msra.mxu0 %v2054
        %2119 = vmatprep.subr.mxu0 0.0
        %2120 = vmatpush1.msra.mxu0 %v2055
        %2121 = vmatprep.subr.mxu0 0.0
        %2122 = vmatpush1.msra.mxu0 %v2056
        %2123 = vmatprep.subr.mxu0 0.0
        %2124 = vmatpush1.msra.mxu0 %v2057
        %2125 = vmatprep.subr.mxu0 0.0
        %2126 = vmatpush1.msra.mxu0 %v2058
        %2127 = vmatprep.subr.mxu0 0.0
        %2128 = vmatpush1.msra.mxu0 %v2059
        %2129 = vmatprep.subr.mxu0 0.0
        %2130 = vmatpush1.msra.mxu0 %v2060
        %2131 = vmatprep.subr.mxu0 0.0
        %2132 = vmatpush1.msra.mxu0 %v2061
        %2133 = vmatprep.subr.mxu0 0.0
        %2134 = vmatpush1.msra.mxu0 %v2062
        %2135 = vmatprep.subr.mxu0 0.0
        %2136 = vmatpush1.msra.mxu0 %v2063
        %2137 = vmatprep.subr.mxu0 0.0
        %2138 = vmatpush1.msra.mxu0 %v2064
        %2139 = vmatprep.subr.mxu0 0.0
        %2140 = vmatpush1.msra.mxu0 %v2065
        %2141 = vmatprep.subr.mxu0 0.0
        %2142 = vmatpush1.msra.mxu0 %v2066
        %2143 = vmatprep.subr.mxu0 0.0
        %2144 = vmatpush1.msra.mxu0 %v2067
        %2145 = vmatprep.subr.mxu0 0.0
        %2146 = vmatpush1.msra.mxu0 %v2068
        %2147 = vmatprep.subr.mxu0 0.0
        %2148 = vmatpush1.msra.mxu0 %v2069
        %2149 = vmatprep.subr.mxu0 0.0
        %2150 = vmatpush1.msra.mxu0 %v2070
        %2151 = vmatprep.subr.mxu0 0.0
        %2152 = vmatpush1.msra.mxu0 %v2071
        %2153 = vmatprep.subr.mxu0 0.0
        %2154 = vmatpush1.msra.mxu0 %v2072
        %2155 = vmatprep.subr.mxu0 0.0
        %2156 = vmatpush1.msra.mxu0 %v2073
        %2157 = vmatprep.subr.mxu0 0.0
        %2158 = vmatpush1.msra.mxu0 %v2074
        %2159 = vmatprep.subr.mxu0 0.0
        %2160 = vmatpush1.msra.mxu0 %v2075
        %2161 = vmatprep.mubr.f32.mxu0 %v2041
        %2162 = vmatmul.mubr.f32.gmra.mrb[0].mxu0 %v2038
        %v2163 = vpop.f32.mrb[0].mxu0
        %v2164 = vadd.f32 %v2089, %v2163
        %v2165 = vpop.f32.mrb[0].mxu0
        %2166 = vmatprep.mubr.f32.mxu0 %v2042
        %2167 = vmatmul.mubr.f32.gmra.mrb[0].mxu0 %v2039
        %v2168 = vpop.f32.mrb[0].mxu0
        %v2169 = vadd.f32 %v2089, %v2168
        %v2170 = vpop.f32.mrb[0].mxu0
        %2171 = vmatprep.mubr.f32.mxu0 %v2043
        %2172 = vmatmul.mubr.f32.gmra.mrb[0].mxu0 %v2040
        %v2173 = vpop.f32.mrb[0].mxu0
        %v2174 = vadd.f32 %v2089, %v2173
        %v2175 = vpop.f32.mrb[0].mxu0
        %2176 = vdwg.mxu0
        %2177 = vmatprep.subr.mxu0 0.0
        %2178 = vmatpush1.msra.mxu0 %v2076
        %2179 = vmatprep.subr.mxu0 0.0
        %2180 = vmatpush1.msra.mxu0 %v2077
        %2181 = vmatprep.subr.mxu0 0.0
        %2182 = vmatpush1.msra.mxu0 %v2078
        %2183 = vmatprep.subr.mxu0 0.0
        %2184 = vmatpush1.msra.mxu0 %v2079
        %2185 = vmatprep.subr.mxu0 0.0
        %2186 = vmatpush1.msra.mxu0 %v2080
        %2187 = vmatprep.subr.mxu0 0.0
        %2188 = vmatpush1.msra.mxu0 %v2081
        %2189 = vmatprep.subr.mxu0 0.0
        %2190 = vmatpush1.msra.mxu0 %v2082
        %2191 = vmatprep.subr.mxu0 0.0
        %2192 = vmatpush1.msra.mxu0 %v2083
        %2193 = vmatprep.subr.mxu0 0.0
        %2194 = vmatpush1.msra.mxu0 0.0
        %2195 = vmatprep.subr.mxu0 0.0
        %2196 = vmatpush1.msra.mxu0 0.0
        %2197 = vmatprep.subr.mxu0 0.0
        %2198 = vmatpush1.msra.mxu0 0.0
        %2199 = vmatprep.subr.mxu0 0.0
        %2200 = vmatpush1.msra.mxu0 0.0
        %2201 = vmatprep.subr.mxu0 0.0
        %2202 = vmatpush1.msra.mxu0 0.0
        %2203 = vmatprep.subr.mxu0 0.0
        %2204 = vmatpush1.msra.mxu0 0.0
        %2205 = vmatprep.subr.mxu0 0.0
        %2206 = vmatpush1.msra.mxu0 0.0
        %2207 = vmatprep.subr.mxu0 0.0
        %2208 = vmatpush1.msra.mxu0 0.0
        %2209 = vmatprep.subr.mxu0 0.0
        %2210 = vmatpush1.msra.mxu0 0.0
        %2211 = vmatprep.subr.mxu0 0.0
        %2212 = vmatpush1.msra.mxu0 0.0
        %2213 = vmatprep.subr.mxu0 0.0
        %2214 = vmatpush1.msra.mxu0 0.0
        %2215 = vmatprep.subr.mxu0 0.0
        %2216 = vmatpush1.msra.mxu0 0.0
        %2217 = vmatprep.subr.mxu0 0.0
        %2218 = vmatpush1.msra.mxu0 0.0
        %2219 = vmatprep.subr.mxu0 0.0
        %2220 = vmatpush1.msra.mxu0 0.0
        %2221 = vmatprep.subr.mxu0 0.0
        %2222 = vmatpush1.msra.mxu0 0.0
        %2223 = vmatprep.subr.mxu0 0.0
        %2224 = vmatpush1.msra.mxu0 0.0
        %2225 = vmatprep.subr.mxu0 0.0
        %2226 = vmatpush1.msra.mxu0 0.0
        %2227 = vmatprep.subr.mxu0 0.0
        %2228 = vmatpush1.msra.mxu0 0.0
        %2229 = vmatprep.subr.mxu0 0.0
        %2230 = vmatpush1.msra.mxu0 0.0
        %2231 = vmatprep.subr.mxu0 0.0
        %2232 = vmatpush1.msra.mxu0 0.0
        %2233 = vmatprep.subr.mxu0 0.0
        %2234 = vmatpush1.msra.mxu0 0.0
        %2235 = vmatprep.subr.mxu0 0.0
        %2236 = vmatpush1.msra.mxu0 0.0
        %2237 = vmatprep.subr.mxu0 0.0
        %2238 = vmatpush1.msra.mxu0 0.0
        %2239 = vmatprep.subr.mxu0 0.0
        %2240 = vmatpush1.msra.mxu0 0.0
        %2241 = vmatprep.mubr.f32.mxu0 0.0
        %2242 = vmatmul.mubr.f32.gmra.mrb[0].mxu0 %v2091
        %v2243 = vpop.f32.mrb[0].mxu0
        %v2244 = vadd.f32 %v2164, %v2243
        %v2245 = vpop.f32.mrb[0].mxu0
        %2246 = vmatprep.mubr.f32.mxu0 0.0
        %2247 = vmatmul.mubr.f32.gmra.mrb[0].mxu0 %v2093
        %v2248 = vpop.f32.mrb[0].mxu0
        %v2249 = vadd.f32 %v2169, %v2248
        %v2250 = vpop.f32.mrb[0].mxu0
        %2251 = vmatprep.mubr.f32.mxu0 0.0
        %2252 = vmatmul.mubr.f32.gmra.mrb[0].mxu0 %v2095
        %v2253 = vpop.f32.mrb[0].mxu0
        %v2254 = vadd.f32 %v2174, %v2253
        %v2255 = vpop.f32.mrb[0].mxu0
        %2256 = vdwg.mxu0
        %v2257 = vmax.f32 %v2244, 0.0
        %v2258 = vmax.f32 %v2249, 0.0
        %v2259 = vmax.f32 %v2254, 0.0
        %v2260 = vsel %vm896, %v2257, 0.0
        %2261 = vadd.xlane.f32.xlu0 %v2260
        %v2262 = vpop.xlane.xlu0 %2261
        %v2263 = vsel %vm896, %v2258, 0.0
        %2264 = vadd.xlane.f32.xlu0 %v2263
        %v2265 = vpop.xlane.xlu0 %2264
        %v2266 = vsel %vm896, %v2259, 0.0
        %2267 = vadd.xlane.f32.xlu0 %v2266
        %v2268 = vpop.xlane.xlu0 %2267
        %v2269 = vmul.f32 %v2262, %v1056
        %v2270 = vmul.f32 %v2265, %v1056
        %v2271 = vmul.f32 %v2268, %v1056
        %v2272 = vsub.f32 %v2257, %v2269
        %v2273 = vsub.f32 %v2258, %v2270
        %v2274 = vsub.f32 %v2259, %v2271
        %v2275 = vmul.f32 %v2272, %v2272
        %v2276 = vmul.f32 %v2273, %v2273
        %v2277 = vmul.f32 %v2274, %v2274
        %v2278 = vsel %vm896, %v2275, 0.0
        %2279 = vadd.xlane.f32.xlu0 %v2278
        %v2280 = vpop.xlane.xlu0 %2279
        %v2281 = vsel %vm896, %v2276, 0.0
        %2282 = vadd.xlane.f32.xlu0 %v2281
        %v2283 = vpop.xlane.xlu0 %2282
        %v2284 = vsel %vm896, %v2277, 0.0
        %2285 = vadd.xlane.f32.xlu0 %v2284
        %v2286 = vpop.xlane.xlu0 %2285
        %v2287 = vmul.f32 %v2280, %v1056
        %v2288 = vmul.f32 %v2283, %v1056
        %v2289 = vmul.f32 %v2286, %v1056
        %v2290 = vadd.f32 %v2287, 1e-05
        %v2291 = vadd.f32 %v2288, 1e-05
        %v2292 = vadd.f32 %v2289, 1e-05
        %v2293 = vrsqrt.pop %v2290
        %v2294 = vrsqrt.pop %v2291
        %v2295 = vrsqrt.pop %v2292
        %v2296 = vmul.f32 %v2272, %v2293
        %v2297 = vmul.f32 %v2273, %v2294
        %v2298 = vmul.f32 %v2274, %v2295
        %v2299 = vld [vmem:[%s15] sm:$0x1]
        %v2301 = vlaneseq
        %v2302 = vshrl.u32 %v2301, 7
        %v2303 = vsub.s32 0, %v2302
        %v2304 = vrot.slane %v2299, %v2303
        %v2306 = vmul.f32 %v2296, %v2304
        %v2307 = vmul.f32 %v2297, %v2304
        %v2308 = vmul.f32 %v2298, %v2304
        %v2309 = vld [vmem:[%s16] sm:$0x1]
        %v2311 = vlaneseq
        %v2312 = vshrl.u32 %v2311, 7
        %v2313 = vsub.s32 0, %v2312
        %v2314 = vrot.slane %v2309, %v2313
        %v2316 = vadd.f32 %v2306, %v2314
        %v2317 = vadd.f32 %v2307, %v2314
        %v2318 = vadd.f32 %v2308, %v2314
        %s2319 = ssub.s32 %s793, 4
        %v2320 = vstv %s2319
        %v2321 = vadd.s32 %v2320, %v1132
        %v2322 = vadd.s32 %v2320, %v1133
        %v2323 = vadd.s32 %v2320, %v1134
        %vm2324 = vcmp.ge.s32.totalorder %v2321, 0
        %vm2325 = vcmp.ge.s32.totalorder %v2322, 0
        %vm2326 = vcmp.ge.s32.totalorder %v2323, 0
        %vm2327 = vcmp.lt.s32.totalorder %v2321, 40
        %vm2328 = vcmp.lt.s32.totalorder %v2322, 40
        %vm2329 = vcmp.lt.s32.totalorder %v2323, 40
        %vm2330 = vmand %vm2324, %vm2327
        %vm2331 = vmand %vm2325, %vm2328
        %vm2332 = vmand %vm2326, %vm2329
        %v2333 = vsel %vm2330, 1, 0
        %v2334 = vsel %vm2331, 1, 0
        %v2335 = vsel %vm2332, 1, 0
        %vm2336 = vcmp.eq.s32.totalorder %v2333, 1
        %vm2337 = vcmp.eq.s32.totalorder %v2334, 1
        %vm2338 = vcmp.eq.s32.totalorder %v2335, 1
        %v2339 = vsel %vm2336, %v2316, 0.0
        %v2340 = vsel %vm2337, %v2317, 0.0
        %v2341 = vsel %vm2338, %v2318, 0.0
        %v2345 = vrot.slane %v2339, 1
        %v2346 = vrot.slane %v2340, 1
        %v2347 = vsel %vm805, %v2345, %v2346
        %v2348 = vrot.slane %v2341, 1
        %v2349 = vsel %vm805, %v2346, %v2348
        %2350 = vrot.lane.b32.xlu0 %v2347, 64
        %v2351 = vpop.permute.xlu0 %2350
        %2352 = vrot.lane.b32.xlu0 %v2349, 64
        %v2353 = vpop.permute.xlu0 %2352
        %2354 = vrot.lane.b32.xlu0 %v2348, 64
        %v2355 = vpop.permute.xlu0 %2354
        %v2359 = vrot.slane %v2339, 2
        %v2360 = vrot.slane %v2340, 2
        %v2361 = vsel %vm830, %v2359, %v2360
        %v2362 = vrot.slane %v2341, 2
        %v2363 = vsel %vm830, %v2360, %v2362
        %v2367 = vrot.slane %v2339, 3
        %v2368 = vrot.slane %v2340, 3
        %v2369 = vsel %vm855, %v2367, %v2368
        %v2370 = vrot.slane %v2341, 3
        %v2371 = vsel %vm855, %v2368, %v2370
        %2372 = vrot.lane.b32.xlu0 %v2369, 64
        %v2373 = vpop.permute.xlu0 %2372
        %2374 = vrot.lane.b32.xlu0 %v2371, 64
        %v2375 = vpop.permute.xlu0 %2374
        %2376 = vrot.lane.b32.xlu0 %v2370, 64
        %v2377 = vpop.permute.xlu0 %2376
        %v2381 = vrot.slane %v2339, 4
        %v2382 = vrot.slane %v2340, 4
        %v2383 = vsel %vm880, %v2381, %v2382
        %v2384 = vrot.slane %v2341, 4
        %v2385 = vsel %vm880, %v2382, %v2384
        %v2386 = vsel %vm896, %v2339, %v2351
        %v2387 = vsel %vm896, %v2340, %v2353
        %v2388 = vsel %vm896, %v2341, %v2355
        %v2389 = vsel %vm896, %v2361, %v2373
        %v2390 = vsel %vm896, %v2363, %v2375
        %v2391 = vsel %vm896, %v2362, %v2377
        %v2392 = vld [vmem:[#allocation7] sm:$0xff]
        %v2393 = vld [vmem:[#allocation7 + $0x8] sm:$0xff]
        %v2394 = vld [vmem:[#allocation7 + $0x10] sm:$0xff]
        %v2395 = vld [vmem:[#allocation7 + $0x18] sm:$0xff]
        %v2396 = vld [vmem:[#allocation7 + $0x20] sm:$0xff]
        %v2397 = vld [vmem:[#allocation7 + $0x28] sm:$0xff]
        %v2398 = vld [vmem:[#allocation7 + $0x30] sm:$0xff]
        %v2399 = vld [vmem:[#allocation7 + $0x38] sm:$0xff]
        %v2400 = vld [vmem:[#allocation7 + $0x40] sm:$0xff]
        %v2401 = vld [vmem:[#allocation7 + $0x48] sm:$0xff]
        %v2402 = vld [vmem:[#allocation7 + $0x50] sm:$0xff]
        %v2403 = vld [vmem:[#allocation7 + $0x58] sm:$0xff]
        %v2404 = vld [vmem:[#allocation7 + $0x60] sm:$0xff]
        %v2405 = vld [vmem:[#allocation7 + $0x68] sm:$0xff]
        %v2406 = vld [vmem:[#allocation7 + $0x70] sm:$0xff]
        %v2407 = vld [vmem:[#allocation7 + $0x78] sm:$0xff]
        %v2408 = vld [vmem:[#allocation7 + $0x80] sm:$0xff]
        %v2409 = vld [vmem:[#allocation7 + $0x88] sm:$0xff]
        %v2410 = vld [vmem:[#allocation7 + $0x90] sm:$0xff]
        %v2411 = vld [vmem:[#allocation7 + $0x98] sm:$0xff]
        %v2412 = vld [vmem:[#allocation7 + $0xa0] sm:$0xff]
        %v2413 = vld [vmem:[#allocation7 + $0xa8] sm:$0xff]
        %v2414 = vld [vmem:[#allocation7 + $0xb0] sm:$0xff]
        %v2415 = vld [vmem:[#allocation7 + $0xb8] sm:$0xff]
        %v2416 = vld [vmem:[#allocation7 + $0xc0] sm:$0xff]
        %v2417 = vld [vmem:[#allocation7 + $0xc8] sm:$0xff]
        %v2418 = vld [vmem:[#allocation7 + $0xd0] sm:$0xff]
        %v2419 = vld [vmem:[#allocation7 + $0xd8] sm:$0xff]
        %v2420 = vld [vmem:[#allocation7 + $0xe0] sm:$0xff]
        %v2421 = vld [vmem:[#allocation7 + $0xe8] sm:$0xff]
        %v2422 = vld [vmem:[#allocation7 + $0xf0] sm:$0xff]
        %v2423 = vld [vmem:[#allocation7 + $0xf8] sm:$0xff]
        %v2424 = vld [vmem:[#allocation7 + $0x100] sm:$0xff]
        %v2425 = vld [vmem:[#allocation7 + $0x108] sm:$0xff]
        %v2426 = vld [vmem:[#allocation7 + $0x110] sm:$0xff]
        %v2427 = vld [vmem:[#allocation7 + $0x118] sm:$0xff]
        %v2428 = vld [vmem:[#allocation7 + $0x120] sm:$0xff]
        %v2429 = vld [vmem:[#allocation7 + $0x128] sm:$0xff]
        %v2430 = vld [vmem:[#allocation7 + $0x130] sm:$0xff]
        %v2431 = vld [vmem:[#allocation7 + $0x138] sm:$0xff]
        %v2432 = vld [vmem:[%s18] sm:$0x1]
        %v2434 = vlaneseq
        %v2435 = vshrl.u32 %v2434, 7
        %v2436 = vsub.s32 0, %v2435
        %v2437 = vrot.slane %v2432, %v2436
        %v2439 = vsel %vm896, %v2383, 0
        %v2441 = vsel %vm896, %v2385, 0
        %v2443 = vsel %vm896, %v2384, 0
        %2445 = vmatprep.subr.mxu0 0.0
        %2446 = vmatpush1.msra.mxu0 %v2392
        %2447 = vmatprep.subr.mxu0 0.0
        %2448 = vmatpush1.msra.mxu0 %v2393
        %2449 = vmatprep.subr.mxu0 0.0
        %2450 = vmatpush1.msra.mxu0 %v2394
        %2451 = vmatprep.subr.mxu0 0.0
        %2452 = vmatpush1.msra.mxu0 %v2395
        %2453 = vmatprep.subr.mxu0 0.0
        %2454 = vmatpush1.msra.mxu0 %v2396
        %2455 = vmatprep.subr.mxu0 0.0
        %2456 = vmatpush1.msra.mxu0 %v2397
        %2457 = vmatprep.subr.mxu0 0.0
        %2458 = vmatpush1.msra.mxu0 %v2398
        %2459 = vmatprep.subr.mxu0 0.0
        %2460 = vmatpush1.msra.mxu0 %v2399
        %2461 = vmatprep.subr.mxu0 0.0
        %2462 = vmatpush1.msra.mxu0 %v2400
        %2463 = vmatprep.subr.mxu0 0.0
        %2464 = vmatpush1.msra.mxu0 %v2401
        %2465 = vmatprep.subr.mxu0 0.0
        %2466 = vmatpush1.msra.mxu0 %v2402
        %2467 = vmatprep.subr.mxu0 0.0
        %2468 = vmatpush1.msra.mxu0 %v2403
        %2469 = vmatprep.subr.mxu0 0.0
        %2470 = vmatpush1.msra.mxu0 %v2404
        %2471 = vmatprep.subr.mxu0 0.0
        %2472 = vmatpush1.msra.mxu0 %v2405
        %2473 = vmatprep.subr.mxu0 0.0
        %2474 = vmatpush1.msra.mxu0 %v2406
        %2475 = vmatprep.subr.mxu0 0.0
        %2476 = vmatpush1.msra.mxu0 %v2407
        %2477 = vmatprep.subr.mxu0 0.0
        %2478 = vmatpush1.msra.mxu0 %v2408
        %2479 = vmatprep.subr.mxu0 0.0
        %2480 = vmatpush1.msra.mxu0 %v2409
        %2481 = vmatprep.subr.mxu0 0.0
        %2482 = vmatpush1.msra.mxu0 %v2410
        %2483 = vmatprep.subr.mxu0 0.0
        %2484 = vmatpush1.msra.mxu0 %v2411
        %2485 = vmatprep.subr.mxu0 0.0
        %2486 = vmatpush1.msra.mxu0 %v2412
        %2487 = vmatprep.subr.mxu0 0.0
        %2488 = vmatpush1.msra.mxu0 %v2413
        %2489 = vmatprep.subr.mxu0 0.0
        %2490 = vmatpush1.msra.mxu0 %v2414
        %2491 = vmatprep.subr.mxu0 0.0
        %2492 = vmatpush1.msra.mxu0 %v2415
        %2493 = vmatprep.subr.mxu0 0.0
        %2494 = vmatpush1.msra.mxu0 %v2416
        %2495 = vmatprep.subr.mxu0 0.0
        %2496 = vmatpush1.msra.mxu0 %v2417
        %2497 = vmatprep.subr.mxu0 0.0
        %2498 = vmatpush1.msra.mxu0 %v2418
        %2499 = vmatprep.subr.mxu0 0.0
        %2500 = vmatpush1.msra.mxu0 %v2419
        %2501 = vmatprep.subr.mxu0 0.0
        %2502 = vmatpush1.msra.mxu0 %v2420
        %2503 = vmatprep.subr.mxu0 0.0
        %2504 = vmatpush1.msra.mxu0 %v2421
        %2505 = vmatprep.subr.mxu0 0.0
        %2506 = vmatpush1.msra.mxu0 %v2422
        %2507 = vmatprep.subr.mxu0 0.0
        %2508 = vmatpush1.msra.mxu0 %v2423
        %2509 = vmatprep.mubr.f32.mxu0 %v2389
        %2510 = vmatmul.mubr.f32.gmra.mrb[0].mxu0 %v2386
        %v2511 = vpop.f32.mrb[0].mxu0
        %v2512 = vadd.f32 %v2437, %v2511
        %v2513 = vpop.f32.mrb[0].mxu0
        %2514 = vmatprep.mubr.f32.mxu0 %v2390
        %2515 = vmatmul.mubr.f32.gmra.mrb[0].mxu0 %v2387
        %v2516 = vpop.f32.mrb[0].mxu0
        %v2517 = vadd.f32 %v2437, %v2516
        %v2518 = vpop.f32.mrb[0].mxu0
        %2519 = vmatprep.mubr.f32.mxu0 %v2391
        %2520 = vmatmul.mubr.f32.gmra.mrb[0].mxu0 %v2388
        %v2521 = vpop.f32.mrb[0].mxu0
        %v2522 = vadd.f32 %v2437, %v2521
        %v2523 = vpop.f32.mrb[0].mxu0
        %2524 = vdwg.mxu0
        %2525 = vmatprep.subr.mxu0 0.0
        %2526 = vmatpush1.msra.mxu0 %v2424
        %2527 = vmatprep.subr.mxu0 0.0
        %2528 = vmatpush1.msra.mxu0 %v2425
        %2529 = vmatprep.subr.mxu0 0.0
        %2530 = vmatpush1.msra.mxu0 %v2426
        %2531 = vmatprep.subr.mxu0 0.0
        %2532 = vmatpush1.msra.mxu0 %v2427
        %2533 = vmatprep.subr.mxu0 0.0
        %2534 = vmatpush1.msra.mxu0 %v2428
        %2535 = vmatprep.subr.mxu0 0.0
        %2536 = vmatpush1.msra.mxu0 %v2429
        %2537 = vmatprep.subr.mxu0 0.0
        %2538 = vmatpush1.msra.mxu0 %v2430
        %2539 = vmatprep.subr.mxu0 0.0
        %2540 = vmatpush1.msra.mxu0 %v2431
        %2541 = vmatprep.subr.mxu0 0.0
        %2542 = vmatpush1.msra.mxu0 0.0
        %2543 = vmatprep.subr.mxu0 0.0
        %2544 = vmatpush1.msra.mxu0 0.0
        %2545 = vmatprep.subr.mxu0 0.0
        %2546 = vmatpush1.msra.mxu0 0.0
        %2547 = vmatprep.subr.mxu0 0.0
        %2548 = vmatpush1.msra.mxu0 0.0
        %2549 = vmatprep.subr.mxu0 0.0
        %2550 = vmatpush1.msra.mxu0 0.0
        %2551 = vmatprep.subr.mxu0 0.0
        %2552 = vmatpush1.msra.mxu0 0.0
        %2553 = vmatprep.subr.mxu0 0.0
        %2554 = vmatpush1.msra.mxu0 0.0
        %2555 = vmatprep.subr.mxu0 0.0
        %2556 = vmatpush1.msra.mxu0 0.0
        %2557 = vmatprep.subr.mxu0 0.0
        %2558 = vmatpush1.msra.mxu0 0.0
        %2559 = vmatprep.subr.mxu0 0.0
        %2560 = vmatpush1.msra.mxu0 0.0
        %2561 = vmatprep.subr.mxu0 0.0
        %2562 = vmatpush1.msra.mxu0 0.0
        %2563 = vmatprep.subr.mxu0 0.0
        %2564 = vmatpush1.msra.mxu0 0.0
        %2565 = vmatprep.subr.mxu0 0.0
        %2566 = vmatpush1.msra.mxu0 0.0
        %2567 = vmatprep.subr.mxu0 0.0
        %2568 = vmatpush1.msra.mxu0 0.0
        %2569 = vmatprep.subr.mxu0 0.0
        %2570 = vmatpush1.msra.mxu0 0.0
        %2571 = vmatprep.subr.mxu0 0.0
        %2572 = vmatpush1.msra.mxu0 0.0
        %2573 = vmatprep.subr.mxu0 0.0
        %2574 = vmatpush1.msra.mxu0 0.0
        %2575 = vmatprep.subr.mxu0 0.0
        %2576 = vmatpush1.msra.mxu0 0.0
        %2577 = vmatprep.subr.mxu0 0.0
        %2578 = vmatpush1.msra.mxu0 0.0
        %2579 = vmatprep.subr.mxu0 0.0
        %2580 = vmatpush1.msra.mxu0 0.0
        %2581 = vmatprep.subr.mxu0 0.0
        %2582 = vmatpush1.msra.mxu0 0.0
        %2583 = vmatprep.subr.mxu0 0.0
        %2584 = vmatpush1.msra.mxu0 0.0
        %2585 = vmatprep.subr.mxu0 0.0
        %2586 = vmatpush1.msra.mxu0 0.0
        %2587 = vmatprep.subr.mxu0 0.0
        %2588 = vmatpush1.msra.mxu0 0.0
        %2589 = vmatprep.mubr.f32.mxu0 0.0
        %2590 = vmatmul.mubr.f32.gmra.mrb[0].mxu0 %v2439
        %v2591 = vpop.f32.mrb[0].mxu0
        %v2592 = vadd.f32 %v2512, %v2591
        %v2593 = vpop.f32.mrb[0].mxu0
        %2594 = vmatprep.mubr.f32.mxu0 0.0
        %2595 = vmatmul.mubr.f32.gmra.mrb[0].mxu0 %v2441
        %v2596 = vpop.f32.mrb[0].mxu0
        %v2597 = vadd.f32 %v2517, %v2596
        %v2598 = vpop.f32.mrb[0].mxu0
        %2599 = vmatprep.mubr.f32.mxu0 0.0
        %2600 = vmatmul.mubr.f32.gmra.mrb[0].mxu0 %v2443
        %v2601 = vpop.f32.mrb[0].mxu0
        %v2602 = vadd.f32 %v2522, %v2601
        %v2603 = vpop.f32.mrb[0].mxu0
        %2604 = vdwg.mxu0
        %v2605 = vmax.f32 %v2592, 0.0
        %v2606 = vmax.f32 %v2597, 0.0
        %v2607 = vmax.f32 %v2602, 0.0
        %v2608 = vsel %vm896, %v2605, 0.0
        %2609 = vadd.xlane.f32.xlu0 %v2608
        %v2610 = vpop.xlane.xlu0 %2609
        %v2611 = vsel %vm896, %v2606, 0.0
        %2612 = vadd.xlane.f32.xlu0 %v2611
        %v2613 = vpop.xlane.xlu0 %2612
        %v2614 = vsel %vm1052, %v2607, 0.0
        %2615 = vadd.xlane.f32.xlu0 %v2614
        %v2616 = vpop.xlane.xlu0 %2615
        %v2617 = vmul.f32 %v2610, %v1056
        %v2618 = vmul.f32 %v2613, %v1056
        %v2619 = vmul.f32 %v2616, %v1056
        %v2620 = vsub.f32 %v2605, %v2617
        %v2621 = vsub.f32 %v2606, %v2618
        %v2622 = vsub.f32 %v2607, %v2619
        %v2623 = vmul.f32 %v2620, %v2620
        %v2624 = vmul.f32 %v2621, %v2621
        %v2625 = vmul.f32 %v2622, %v2622
        %v2626 = vsel %vm896, %v2623, 0.0
        %2627 = vadd.xlane.f32.xlu0 %v2626
        %v2628 = vpop.xlane.xlu0 %2627
        %v2629 = vsel %vm896, %v2624, 0.0
        %2630 = vadd.xlane.f32.xlu0 %v2629
        %v2631 = vpop.xlane.xlu0 %2630
        %v2632 = vsel %vm1052, %v2625, 0.0
        %2633 = vadd.xlane.f32.xlu0 %v2632
        %v2634 = vpop.xlane.xlu0 %2633
        %v2635 = vmul.f32 %v2628, %v1056
        %v2636 = vmul.f32 %v2631, %v1056
        %v2637 = vmul.f32 %v2634, %v1056
        %v2638 = vadd.f32 %v2635, 1e-05
        %v2639 = vadd.f32 %v2636, 1e-05
        %v2640 = vadd.f32 %v2637, 1e-05
        %v2641 = vrsqrt.pop %v2638
        %v2642 = vrsqrt.pop %v2639
        %v2643 = vrsqrt.pop %v2640
        %v2644 = vmul.f32 %v2620, %v2641
        %v2645 = vmul.f32 %v2621, %v2642
        %v2646 = vmul.f32 %v2622, %v2643
        %v2647 = vld [vmem:[%s19] sm:$0x1]
        %v2649 = vlaneseq
        %v2650 = vshrl.u32 %v2649, 7
        %v2651 = vsub.s32 0, %v2650
        %v2652 = vrot.slane %v2647, %v2651
        %v2654 = vmul.f32 %v2644, %v2652
        %v2655 = vmul.f32 %v2645, %v2652
        %v2656 = vmul.f32 %v2646, %v2652
        %v2657 = vld [vmem:[%s20] sm:$0x1]
        %v2659 = vlaneseq
        %v2660 = vshrl.u32 %v2659, 7
        %v2661 = vsub.s32 0, %v2660
        %v2662 = vrot.slane %v2657, %v2661
        %v2664 = vadd.f32 %v2654, %v2662
        %v2665 = vadd.f32 %v2655, %v2662
        %v2666 = vadd.f32 %v2656, %v2662
        %v2667 = vld [vmem:[%s21] sm:$0xff]
        %v2668 = vld [vmem:[%s21 + $0x8] sm:$0xff]
        %v2669 = vld [vmem:[%s21 + $0x10] sm:$0xff]
        %v2670 = vld [vmem:[%s21 + $0x18] sm:$0xff]
        %v2671 = vld [vmem:[%s21 + $0x20] sm:$0xff]
        %v2672 = vld [vmem:[%s21 + $0x28] sm:$0xff]
        %v2673 = vld [vmem:[%s21 + $0x30] sm:$0xff]
        %v2674 = vld [vmem:[%s21 + $0x38] sm:$0xff]
        %v2675 = vld [vmem:[%s22] sm:$0x1]
        %v2677 = vlaneseq
        %v2678 = vshrl.u32 %v2677, 7
        %v2679 = vsub.s32 0, %v2678
        %v2680 = vrot.slane %v2675, %v2679
        %v2685 = vrot.slane %v2664, 2
        %v2686 = vrot.slane %v2665, 2
        %v2687 = vsel %vm830, %v2685, %v2686
        %v2688 = vrot.slane %v2666, 2
        %v2689 = vsel %vm830, %v2686, %v2688
        %v2690 = vsel %vm896, %v2687, 0
        %v2692 = vsel %vm896, %v2689, 0
        %2694 = vmatprep.subr.mxu0 0.0
        %2695 = vmatpush1.msra.mxu0 %v2667
        %2696 = vmatprep.subr.mxu0 0.0
        %2697 = vmatpush1.msra.mxu0 %v2668
        %2698 = vmatprep.subr.mxu0 0.0
        %2699 = vmatpush1.msra.mxu0 %v2669
        %2700 = vmatprep.subr.mxu0 0.0
        %2701 = vmatpush1.msra.mxu0 %v2670
        %2702 = vmatprep.subr.mxu0 0.0
        %2703 = vmatpush1.msra.mxu0 %v2671
        %2704 = vmatprep.subr.mxu0 0.0
        %2705 = vmatpush1.msra.mxu0 %v2672
        %2706 = vmatprep.subr.mxu0 0.0
        %2707 = vmatpush1.msra.mxu0 %v2673
        %2708 = vmatprep.subr.mxu0 0.0
        %2709 = vmatpush1.msra.mxu0 %v2674
        %2710 = vmatprep.subr.mxu0 0.0
        %2711 = vmatpush1.msra.mxu0 0.0
        %2712 = vmatprep.subr.mxu0 0.0
        %2713 = vmatpush1.msra.mxu0 0.0
        %2714 = vmatprep.subr.mxu0 0.0
        %2715 = vmatpush1.msra.mxu0 0.0
        %2716 = vmatprep.subr.mxu0 0.0
        %2717 = vmatpush1.msra.mxu0 0.0
        %2718 = vmatprep.subr.mxu0 0.0
        %2719 = vmatpush1.msra.mxu0 0.0
        %2720 = vmatprep.subr.mxu0 0.0
        %2721 = vmatpush1.msra.mxu0 0.0
        %2722 = vmatprep.subr.mxu0 0.0
        %2723 = vmatpush1.msra.mxu0 0.0
        %2724 = vmatprep.subr.mxu0 0.0
        %2725 = vmatpush1.msra.mxu0 0.0
        %2726 = vmatprep.subr.mxu0 0.0
        %2727 = vmatpush1.msra.mxu0 0.0
        %2728 = vmatprep.subr.mxu0 0.0
        %2729 = vmatpush1.msra.mxu0 0.0
        %2730 = vmatprep.subr.mxu0 0.0
        %2731 = vmatpush1.msra.mxu0 0.0
        %2732 = vmatprep.subr.mxu0 0.0
        %2733 = vmatpush1.msra.mxu0 0.0
        %2734 = vmatprep.subr.mxu0 0.0
        %2735 = vmatpush1.msra.mxu0 0.0
        %2736 = vmatprep.subr.mxu0 0.0
        %2737 = vmatpush1.msra.mxu0 0.0
        %2738 = vmatprep.subr.mxu0 0.0
        %2739 = vmatpush1.msra.mxu0 0.0
        %2740 = vmatprep.subr.mxu0 0.0
        %2741 = vmatpush1.msra.mxu0 0.0
        %2742 = vmatprep.subr.mxu0 0.0
        %2743 = vmatpush1.msra.mxu0 0.0
        %2744 = vmatprep.subr.mxu0 0.0
        %2745 = vmatpush1.msra.mxu0 0.0
        %2746 = vmatprep.subr.mxu0 0.0
        %2747 = vmatpush1.msra.mxu0 0.0
        %2748 = vmatprep.subr.mxu0 0.0
        %2749 = vmatpush1.msra.mxu0 0.0
        %2750 = vmatprep.subr.mxu0 0.0
        %2751 = vmatpush1.msra.mxu0 0.0
        %2752 = vmatprep.subr.mxu0 0.0
        %2753 = vmatpush1.msra.mxu0 0.0
        %2754 = vmatprep.subr.mxu0 0.0
        %2755 = vmatpush1.msra.mxu0 0.0
        %2756 = vmatprep.subr.mxu0 0.0
        %2757 = vmatpush1.msra.mxu0 0.0
        %2758 = vmatprep.mubr.f32.mxu0 0.0
        %2759 = vmatmul.mubr.f32.gmra.mrb[0].mxu0 %v2690
        %v2760 = vpop.f32.mrb[0].mxu0
        %v2761 = vadd.f32 %v2680, %v2760
        %v2762 = vpop.f32.mrb[0].mxu0
        %2763 = vmatprep.mubr.f32.mxu0 0.0
        %2764 = vmatmul.mubr.f32.gmra.mrb[0].mxu0 %v2692
        %v2765 = vpop.f32.mrb[0].mxu0
        %v2766 = vadd.f32 %v2680, %v2765
        %v2767 = vpop.f32.mrb[0].mxu0
        %2768 = vdwg.mxu0
        %2769 = vst [vmem:[%s791] sm:$0xff] %v2761
        %2770 = vst [vmem:[%s791 + $0x8] sm:$0xff] %v2766
        %s2771 = smul.u32 2, %s42
        %p2772 = scmp.lt.s32.totalorder %s41, 1
        %s2773 = scalar_select %p2772, %s41, 1
        %p2774 = scmp.lt.s32.totalorder %s2771, 5
        %s2775 = scalar_select %p2774, %s2771, 5
        %s2776 = smul.addr %s2773, 6
        %s2777 = sadd.s32 %s2775, %s2776
        %s2778 = smul.addr %s2777, 8
        %s2779 = scalar_lea.vmem %s23, %s2778
        // Predicated region
        $region129: #{pitch_predictor_forward.1} parent=111 // pred_check
          %p2780 = pneg %p557
        $region130: #{pitch_predictor_forward.1} parent=111 // pred_check_branch
          %2782 = sbr.rel (%p2780) target = $region132
        $region131: #{pitch_predictor_forward.1} parent=111 // pred_region
          %s2783 = smul.u32 2, %s42
        $region132: #{pitch_predictor_forward.1} parent=111 // pred_fallthru
          _
      $region112: #{pitch_predictor_forward.1} parent=5 // pred_fallthru
        _
      %p2784 = scmp.le.s32.totalorder 2, %s32
      // Predicated region
      $region133: #{pitch_predictor_forward.1} parent=5 // pred_check
        %p2785 = pneg %p2784
      $region134: #{pitch_predictor_forward.1} parent=5 // pred_check_branch
        %2787 = sbr.rel (%p2785) target = $region136
      $region135: #{pitch_predictor_forward.1} parent=5 // pred_region
        %s2788 = ssub.s32 %s32, 2
        // Predicated region
        $region137: #{pitch_predictor_forward.1} parent=135 // pred_check
          %p2789 = pneg %p563
        $region138: #{pitch_predictor_forward.1} parent=135 // pred_check_branch
          %2791 = sbr.rel (%p2789) target = $region140
        $region139: #{pitch_predictor_forward.1} parent=135 // pred_region
          %s2792 = smul.u32 2, %s44
          %p2793 = scmp.lt.s32.totalorder %s43, 1
          %s2794 = scalar_select %p2793, %s43, 1
          %p2795 = scmp.lt.s32.totalorder %s2792, 5
          %s2796 = scalar_select %p2795, %s2792, 5
          %s2797 = smul.addr %s2794, 6
          %s2798 = sadd.s32 %s2796, %s2797
          %s2799 = smul.addr %s2798, 8
          %s2800 = scalar_lea.vmem %s23, %s2799
        $region140: #{pitch_predictor_forward.1} parent=135 // pred_fallthru
          _
      $region136: #{pitch_predictor_forward.1} parent=5 // pred_fallthru
        _
    $region6: #{pitch_predictor_forward.1} parent=1 // loop_footer
      %s36 = sadd.s32 1, %s32
    $region7: #{pitch_predictor_forward.1} parent=1 // loop_footer_branch
      %31 = sbr.rel target = $region3
    $region8: #{pitch_predictor_forward.1} parent=1 // loop_exit
      _
    %2801 = vsyncpa [#allocation3], 1
    %s2802 = scalar_lea.sflag [#allocation3], 1
    %2803 = vsyncpa %s2802, 1
    %2804 = vsyncpa [#allocation5], 1
    %2805 = vsyncpa [#allocation8], 1

</llo_original>
